<compile_context>
chip_gen: v5e
topology: v5e:2x2
jax: 0.10.0
libtpu: 0.0.40
codegen_flags: <defaults>
</compile_context>

<pallas_src>
import itertools
import math
from functools import partial

import jax
import jax.numpy as jnp
import numpy as np
from jax.experimental import pallas as pl
from jax.experimental.pallas import tpu as pltpu

USE_BF16_MXU = True                      # bf16 MXU operands, f32 accumulation
_ROW_TILE_TARGET = 2048                  # target rows per tile (multiple of lcm(16, W))


# ----------------------------------------------------------------------------
# helpers
# ----------------------------------------------------------------------------
def _pad128(n):
    return max(128, ((n + 127) // 128) * 128)


def _mxu_dtype():
    return jnp.bfloat16 if USE_BF16_MXU else jnp.float32


def _vmem_limit_bytes():
    # Generation-dependent scoped-VMEM budget: ~70% of physical, capped at 96 MiB.
    # v5e/v6e (128 MiB) -> ~89 MiB, v7x (64 MiB per TC) -> ~44 MiB.
    cap = 64 << 20
    try:
        info = pltpu.get_tpu_info()
        cap = int(getattr(info, "vmem_capacity_bytes", cap))
    except Exception:
        pass
    return int(min(96 << 20, (cap * 7) // 10))


def _mish(y, approx=False):
    # Mish(y) = y * tanh(softplus(y)).  Single-transcendental formulation:
    #   tanh(log(1 + e^y)) = ((1+e^y)^2 - 1) / ((1+e^y)^2 + 1)
    # Clamp avoids exp overflow; for y > 20, tanh(softplus(y)) == 1 to f32 precision.
    yc = jnp.minimum(y, 20.0)
    u = 1.0 + jnp.exp(yc)
    u2 = u * u
    if approx:                                        # in-kernel only (EUP vrcp)
        t = (u2 - 1.0) * pl.reciprocal(u2 + 1.0, approx=True)
    else:
        t = (u2 - 1.0) / (u2 + 1.0)
    return jnp.where(y > 20.0, y, y * t)


def _mish_ref(y):
    # Accurate Mish for the pure-JAX reference (stable softplus via log1p).
    sp = jnp.maximum(y, 0.0) + jnp.log1p(jnp.exp(-jnp.abs(y)))
    return y * jnp.tanh(sp)


def _row_tile(m, w, target=_ROW_TILE_TARGET):
    # Row tiles hold complete image rows (multiple of W) and are 16-sublane aligned
    # (bf16 tile), so the (1,k) horizontal conv never needs a halo from a neighbour
    # tile.  Clamp so that grid_m >= 2 when possible (v7x has 2 TensorCores).
    base = (16 * w) // math.gcd(16, w)                # lcm(16, w)
    tm = base * max(1, target // base)
    half = base * max(1, -(-m // (2 * base)))         # ceil(m/2) rounded up to base
    tm = max(base, min(tm, half))
    mp = -(-m // tm) * tm
    return tm, mp


def _bn_scale_shift(psum, psq, count, gamma, beta, eps=1e-5):
    # Finalise BatchNorm batch statistics from the per-tile partial sums produced
    # inside the GEMM kernels (tiny host-side math on (C,)-sized vectors).
    s1 = jnp.sum(psum[:, 0, :], axis=0)
    s2 = jnp.sum(psq[:, 0, :], axis=0)
    mean = s1 / count
    var = jnp.maximum(s2 / count - mean * mean, 0.0)  # guard E[x^2]-E[x]^2 cancellation
    scale = gamma * jax.lax.rsqrt(var + eps)
    shift = beta - mean * scale
    return scale[None, :], shift[None, :]             # (1, C)


# ----------------------------------------------------------------------------
# Pallas kernels
# ----------------------------------------------------------------------------
def _branch_stack_kernel(a1_ref, w1_ref, w2_ref, y2_ref, psum_ref, psq_ref, y1pad_ref,
                         *, taps, tm, nbp, pr, w):
    """All branch (k,1)+(1,k) separable convs in one pass + branch-BN partial stats."""
    # (k,1) vertical convs of every branch: one GEMM over the tap-major im2col input.
    y1 = jnp.dot(a1_ref[...], w1_ref[...], preferred_element_type=jnp.float32)

    # Keep y1 resident in VMEM with a zeroed sublane halo so the (1,k) horizontal
    # convs are in-kernel shifted slices.  Halo reads always land under a zero mask,
    # but the halo must hold zeros (uninitialised VMEM may contain NaN and NaN*0=NaN).
    # It is re-zeroed every step (2*pr rows, negligible) because with "parallel" grid
    # semantics each TensorCore gets its own scratch and would miss a pid==0-only init.
    y1pad_ref[0:pr, :] = jnp.zeros((pr, nbp), jnp.float32)
    y1pad_ref[pr + tm:pr + tm + pr, :] = jnp.zeros((pr, nbp), jnp.float32)
    y1pad_ref[pr:pr + tm, :] = y1

    # In-kernel horizontal-shift validity mask: row position within the image row.
    # (tm is a multiple of W, so local row index mod W == global w coordinate.)
    col = jax.lax.broadcasted_iota(jnp.int32, (tm, 1), 0) % w

    mx = _mxu_dtype()
    pieces = []
    for dx in taps:                                   # static python loop over taps
        shifted = y1pad_ref[pr + dx:pr + dx + tm, :]  # rows (same h, w + dx)
        valid = jnp.logical_and(col + dx >= 0, col + dx < w).astype(jnp.float32)
        pieces.append((shifted * valid).astype(mx))
    stacked = jnp.concatenate(pieces, axis=1)         # (tm, nt*nbp)
    # One accumulation chain over all taps: single MXU dot against the stacked weight.
    acc = jnp.dot(stacked, w2_ref[...], preferred_element_type=jnp.float32)

    y2_ref[...] = acc.astype(y2_ref.dtype)            # bf16 writeback (halves HBM traffic)
    psum_ref[0] = jnp.broadcast_to(jnp.sum(acc, axis=0, keepdims=True), (8, nbp))
    psq_ref[0] = jnp.broadcast_to(jnp.sum(acc * acc, axis=0, keepdims=True), (8, nbp))


def _compress_bn_kernel(y2_ref, xc_ref, scale_ref, shift_ref, wz_ref, wx_ref,
                        o_ref, psum_ref, psq_ref, *, tm, coutp, m_valid):
    """Branch BN+Mish fused as the prologue of the 1x1 compress GEMM + final-BN stats."""
    z = _mish(y2_ref[...].astype(jnp.float32) * scale_ref[...] + shift_ref[...],
              approx=True)
    mx = _mxu_dtype()
    o = jnp.dot(z.astype(mx), wz_ref[...], preferred_element_type=jnp.float32)
    o = o + jnp.dot(xc_ref[...], wx_ref[...], preferred_element_type=jnp.float32)
    if m_valid is not None:
        # Only needed when M was padded: mish(shift) != 0 would pollute final-BN stats.
        rows = jax.lax.broadcasted_iota(jnp.int32, (tm, 1), 0) + pl.program_id(0) * tm
        o = o * (rows < m_valid).astype(jnp.float32)
    o_ref[...] = o.astype(o_ref.dtype)                # bf16 writeback
    psum_ref[0] = jnp.broadcast_to(jnp.sum(o, axis=0, keepdims=True), (8, coutp))
    psq_ref[0] = jnp.broadcast_to(jnp.sum(o * o, axis=0, keepdims=True), (8, coutp))


def _affine_mish_kernel(x_ref, scale_ref, shift_ref, o_ref):
    """Final BatchNorm affine + Mish, tiled over rows, lane-dense output."""
    y = x_ref[...].astype(jnp.float32) * scale_ref[...] + shift_ref[...]
    o_ref[...] = _mish(y, approx=True)


# ----------------------------------------------------------------------------
# deterministic synthetic parameters
# ----------------------------------------------------------------------------
_PARAM_KEY = jax.random.PRNGKey(0)
_PARAM_COUNTER = itertools.count()


def _next_key():
    return jax.random.fold_in(_PARAM_KEY, next(_PARAM_COUNTER))


def _conv_weight(cout, cin, kh, kw):
    bound = 1.0 / math.sqrt(max(cin * kh * kw, 1))
    return jax.random.uniform(_next_key(), (cout, cin, kh, kw),
                              jnp.float32, -bound, bound)


# ----------------------------------------------------------------------------
# EncoderLayer3Conv
# ----------------------------------------------------------------------------
class EncoderLayer3Conv:
    """Pallas/TPU forward pass of the PyTorch EncoderLayer3Conv.

    The per-branch EncoderBlockWithPassthrough modules (separable conv pair +
    BatchNorm2d + Mish) are evaluated batched: their weights are packed into
    block-structured matrices and all branches run inside one Pallas kernel.
    Per-branch BatchNorm2d over each branch's channels is identical to per-channel
    BN over the concatenated branch channels.
    """

    def __init__(self, input_channels, output_channels, num_kernels):
        c1, c2, k = input_channels, output_channels, num_kernels
        out_p_k = (c1 ** 0.5 * (c1 * k ** 2 + 36 * c2) ** 0.5 - c1 * k) / (2 * k)
        self.cin = input_channels
        self.cout = output_channels
        self.nk = num_kernels
        self.opk = round(out_p_k)
        self.nb = self.nk * self.opk
        self.pmax = num_kernels                 # largest padding (kernel 2*nk+1)
        self.ntaps = 2 * self.pmax + 1

        self.w1 = [_conv_weight(self.opk, self.cin, 2 * i + 1, 1)
                   for i in range(1, num_kernels + 1)]
        self.w2 = [_conv_weight(self.opk, self.opk, 1, 2 * i + 1)
                   for i in range(1, num_kernels + 1)]

        # Per-branch BatchNorm2d(opk) == per-channel BN over the concatenated channels.
        self.branch_gamma = jnp.ones((self.nb,), jnp.float32)
        self.branch_beta = jnp.zeros((self.nb,), jnp.float32)
        self.final_gamma = jnp.ones((self.cout,), jnp.float32)
        self.final_beta = jnp.zeros((self.cout,), jnp.float32)

        self.compress_w = None                  # LazyConv2d: built on first call
        self._wz = None
        self._wx = None
        self._pack_branch_weights()

    # -- pack the per-branch separable weights into batched, lane-padded matrices ----
    def _pack_branch_weights(self):
        cin, opk, P, nt = self.cin, self.opk, self.pmax, self.ntaps
        nbp = _pad128(self.nb)
        w1b = np.zeros((nt * cin, nbp), np.float32)       # (K1, NBp)  vertical taps
        w2s = np.zeros((nt * nbp, nbp), np.float32)       # stacked horizontal taps
        for bi in range(self.nk):
            pi = bi + 1
            off = bi * opk
            w1 = np.asarray(self.w1[bi])                  # (opk, cin, 2*pi+1, 1)
            w2 = np.asarray(self.w2[bi])                  # (opk, opk, 1, 2*pi+1)
            for t in range(nt):
                d = t - P
                if abs(d) <= pi:
                    # W1[t*cin + c, off + o] = w1[o, c, d + pi, 0]
                    w1b[t * cin:(t + 1) * cin, off:off + opk] = w1[:, :, d + pi, 0].T
                    # W2[t*nbp + off + c, off + o] = w2[o, c, 0, d + pi]
                    w2s[t * nbp + off:t * nbp + off + opk,
                        off:off + opk] = w2[:, :, 0, d + pi].T
        mx = _mxu_dtype()
        self.nbp = nbp
        self._w1b = jnp.asarray(w1b).astype(mx)
        self._w2s = jnp.asarray(w2s).astype(mx)

    # -- forward -----------------------------------------------------------------
    def __call__(self, x_nchw, xcomp_nchw):
        N, C, H, W = x_nchw.shape
        assert C == self.cin
        M = N * H * W
        P, nt, nbp = self.pmax, self.ntaps, self.nbp
        coutp = _pad128(self.cout)
        mx = _mxu_dtype()

        # channels-last at the module boundary only; bf16 for all MXU operands.
        x = jnp.transpose(x_nchw, (0, 2, 3, 1)).astype(mx)                 # (N,H,W,C)
        xc = jnp.transpose(xcomp_nchw, (0, 2, 3, 1)).reshape(M, -1).astype(mx)
        ccomp = xc.shape[1]

        if self.compress_w is None:                       # LazyConv2d materialisation
            self.compress_w = _conv_weight(self.cout, self.nb + ccomp, 1, 1)[:, :, 0, 0]
            wc = np.asarray(self.compress_w)              # (cout, nb + ccomp)
            wz = np.zeros((nbp, coutp), np.float32)
            wx = np.zeros((ccomp, coutp), np.float32)     # no lane-padding of K for xc
            wz[:self.nb, :self.cout] = wc[:, :self.nb].T
            wx[:, :self.cout] = wc[:, self.nb:].T
            self._wz = jnp.asarray(wz).astype(mx)
            self._wx = jnp.asarray(wx).astype(mx)

        # vertical (k,1) taps: tap-major im2col (nt-fold only on the tiny-Cin input).
        xpad = jnp.pad(x, ((0, 0), (P, P), (0, 0), (0, 0)))
        a1 = jnp.stack([xpad[:, t:t + H] for t in range(nt)], axis=3)      # (N,H,W,nt,C)
        a1 = a1.reshape(M, nt * C)

        tm, mp = _row_tile(M, W)
        grid_m = mp // tm
        m_valid = M if mp != M else None
        a1 = jnp.pad(a1, ((0, mp - M), (0, 0)))
        xcp = jnp.pad(xc, ((0, mp - M), (0, 0)))
        pr = max(8, ((P + 7) // 8) * 8)                   # halo rows (>= P, 8-aligned)

        cparams = pltpu.CompilerParams(dimension_semantics=("parallel",),
                                       vmem_limit_bytes=_vmem_limit_bytes())

        # ---- kernel 1: all branch separable convs + branch-BN partial statistics
        y2, ps1, pq1 = pl.pallas_call(
            partial(_branch_stack_kernel, taps=tuple(range(-P, P + 1)),
                    tm=tm, nbp=nbp, pr=pr, w=W),
            out_shape=(jax.ShapeDtypeStruct((mp, nbp), jnp.bfloat16),
                       jax.ShapeDtypeStruct((grid_m, 8, nbp), jnp.float32),
                       jax.ShapeDtypeStruct((grid_m, 8, nbp), jnp.float32)),
            grid=(grid_m,),
            in_specs=[pl.BlockSpec((tm, nt * C), lambda i: (i, 0)),
                      pl.BlockSpec((nt * C, nbp), lambda i: (0, 0)),
                      pl.BlockSpec((nt * nbp, nbp), lambda i: (0, 0))],
            out_specs=(pl.BlockSpec((tm, nbp), lambda i: (i, 0)),
                       pl.BlockSpec((1, 8, nbp), lambda i: (i, 0, 0)),
                       pl.BlockSpec((1, 8, nbp), lambda i: (i, 0, 0))),
            scratch_shapes=[pltpu.VMEM((tm + 2 * pr, nbp), jnp.float32)],
            compiler_params=cparams,
        )(a1, self._w1b, self._w2s)

        gb = jnp.pad(self.branch_gamma, (0, nbp - self.nb))
        bb = jnp.pad(self.branch_beta, (0, nbp - self.nb))
        scale_b, shift_b = _bn_scale_shift(ps1, pq1, float(M), gb, bb)

        # ---- kernel 2: (branch BN + Mish) -> 1x1 compress GEMM + final-BN stats
        o, ps2, pq2 = pl.pallas_call(
            partial(_compress_bn_kernel, tm=tm, coutp=coutp, m_valid=m_valid),
            out_shape=(jax.ShapeDtypeStruct((mp, coutp), jnp.bfloat16),
                       jax.ShapeDtypeStruct((grid_m, 8, coutp), jnp.float32),
                       jax.ShapeDtypeStruct((grid_m, 8, coutp), jnp.float32)),
            grid=(grid_m,),
            in_specs=[pl.BlockSpec((tm, nbp), lambda i: (i, 0)),
                      pl.BlockSpec((tm, ccomp), lambda i: (i, 0)),
                      pl.BlockSpec((1, nbp), lambda i: (0, 0)),
                      pl.BlockSpec((1, nbp), lambda i: (0, 0)),
                      pl.BlockSpec((nbp, coutp), lambda i: (0, 0)),
                      pl.BlockSpec((ccomp, coutp), lambda i: (0, 0))],
            out_specs=(pl.BlockSpec((tm, coutp), lambda i: (i, 0)),
                       pl.BlockSpec((1, 8, coutp), lambda i: (i, 0, 0)),
                       pl.BlockSpec((1, 8, coutp), lambda i: (i, 0, 0))),
            compiler_params=cparams,
        )(y2, xcp, scale_b, shift_b, self._wz, self._wx)

        gf = jnp.pad(self.final_gamma, (0, coutp - self.cout))
        bf = jnp.pad(self.final_beta, (0, coutp - self.cout))
        scale_f, shift_f = _bn_scale_shift(ps2, pq2, float(M), gf, bf)

        # ---- kernel 3: final BatchNorm affine + Mish
        out = pl.pallas_call(
            _affine_mish_kernel,
            out_shape=jax.ShapeDtypeStruct((mp, coutp), jnp.float32),
            grid=(grid_m,),
            in_specs=[pl.BlockSpec((tm, coutp), lambda i: (i, 0)),
                      pl.BlockSpec((1, coutp), lambda i: (0, 0)),
                      pl.BlockSpec((1, coutp), lambda i: (0, 0))],
            out_specs=pl.BlockSpec((tm, coutp), lambda i: (i, 0)),
            compiler_params=cparams,
        )(o, scale_f, shift_f)

        out = out[:M, :self.cout].reshape(N, H, W, self.cout)
        return jnp.transpose(out, (0, 3, 1, 2))


# ----------------------------------------------------------------------------
# pure-JAX reference (same bf16 MXU-operand policy) used only for the self-check
# ----------------------------------------------------------------------------
def _reference_forward(layer, x_nchw, xc_nchw):
    mx = _mxu_dtype()

    def conv(x, w, pad):
        return jax.lax.conv_general_dilated(
            x.astype(mx), jnp.asarray(w).astype(mx), (1, 1),
            [(pad[0], pad[0]), (pad[1], pad[1])],
            dimension_numbers=("NCHW", "OIHW", "NCHW"),
            preferred_element_type=jnp.float32)

    def bn_mish(y, gamma, beta):
        mean = jnp.mean(y, axis=(0, 2, 3), keepdims=True)
        var = jnp.mean(y * y, axis=(0, 2, 3), keepdims=True) - mean * mean
        yn = (y - mean) * jax.lax.rsqrt(var + 1e-5)
        yn = yn * gamma[None, :, None, None] + beta[None, :, None, None]
        return _mish_ref(yn)

    branches = []
    for bi in range(layer.nk):
        pi = bi + 1
        y1 = conv(x_nchw, layer.w1[bi], (pi, 0))
        branches.append(conv(y1, layer.w2[bi], (0, pi)))
    y2 = jnp.concatenate(branches, axis=1)
    z = bn_mish(y2, layer.branch_gamma, layer.branch_beta)
    cat = jnp.concatenate([z, xc_nchw.astype(jnp.float32)], axis=1)
    o = conv(cat, layer.compress_w[:, :, None, None], (0, 0))
    return bn_mish(o, layer.final_gamma, layer.final_beta)


# ----------------------------------------------------------------------------
if __name__ == "__main__":
    key = jax.random.PRNGKey(0)
    kx, kc = jax.random.split(key)
    # x: (N=2, Cin=8, H=16, W=16); x_compressed: (N=2, 9, 16, 16)
    x = jax.random.normal(kx, (2, 8, 16, 16), jnp.float32)
    x_compressed = jax.random.normal(kc, (2, 9, 16, 16), jnp.float32)

    layer = EncoderLayer3Conv(input_channels=8, output_channels=16, num_kernels=3)
    out = jax.block_until_ready(layer(x, x_compressed))

    assert out.shape == (2, 16, 16, 16), out.shape
    assert bool(jnp.all(jnp.isfinite(out)))

    ref = jax.block_until_ready(_reference_forward(layer, x, x_compressed))
    err = float(jnp.max(jnp.abs(out - ref)))
    # bf16 intermediates + approx-reciprocal Mish loosen the tolerance slightly.
    assert err < 1e-1, f"max |pallas - reference| = {err}"

    print("KERNEL_OK")
</pallas_src>

<mosaic_0001>
module attributes {stable_mosaic.version = 11 : i64} {
  func.func @_branch_stack_kernel(%arg0: i32, %arg1: memref<256x56xbf16, #tpu.memory_space<vmem>>, %arg2: memref<56x128xbf16, #tpu.memory_space<vmem>>, %arg3: memref<896x128xbf16, #tpu.memory_space<vmem>>, %arg4: memref<256x128xbf16, #tpu.memory_space<vmem>>, %arg5: memref<1x8x128xf32, #tpu.memory_space<vmem>>, %arg6: memref<1x8x128xf32, #tpu.memory_space<vmem>>, %arg7: memref<272x128xf32, #tpu.memory_space<vmem>>) attributes {dimension_semantics = [#tpu.dimension_semantics<parallel>], iteration_bounds = array<i64: 2>, scalar_prefetch = 0 : i64, scratch_operands = 1 : i64, tpu.core_type = #tpu.core_type<tc>, window_params = [{transform_indices = @transform_0, window_bounds = array<i64: 256, 56>}, {pipeline_mode = #tpu.pipeline_mode<synchronous>, transform_indices = @transform_1, window_bounds = array<i64: 56, 128>}, {pipeline_mode = #tpu.pipeline_mode<synchronous>, transform_indices = @transform_2, window_bounds = array<i64: 896, 128>}, {transform_indices = @transform_3, window_bounds = array<i64: 256, 128>}, {transform_indices = @transform_4, window_bounds = array<i64: 1, 8, 128>}, {transform_indices = @transform_5, window_bounds = array<i64: 1, 8, 128>}]} {
    %c0 = arith.constant 0 : index
    %c0_0 = arith.constant 0 : index
    %0 = vector.load %arg1[%c0, %c0_0] : memref<256x56xbf16, #tpu.memory_space<vmem>>, vector<256x56xbf16>
    %c0_1 = arith.constant 0 : index
    %c0_2 = arith.constant 0 : index
    %1 = vector.load %arg2[%c0_1, %c0_2] : memref<56x128xbf16, #tpu.memory_space<vmem>>, vector<56x128xbf16>
    %cst = arith.constant dense<0.000000e+00> : vector<256x128xf32>
    %2 = tpu.matmul %0, %1, %cst {dimension_numbers = #tpu.dot_dimension_numbers<[1], [0], [0], [1], [0, 0, 1, 1], [], []>} : vector<256x56xbf16>, vector<56x128xbf16>, vector<256x128xf32> -> vector<256x128xf32>
    %cst_3 = arith.constant 0.000000e+00 : f32
    %3 = vector.broadcast %cst_3 : f32 to vector<8x128xf32>
    %c0_4 = arith.constant 0 : index
    %c0_5 = arith.constant 0 : index
    %4 = vector.load %arg7[%c0_4, %c0_5] : memref<272x128xf32, #tpu.memory_space<vmem>>, vector<8x128xf32>
    tpu.vector_store %arg7[%c0_4, %c0_5], %3 {strides = array<i32>} : memref<272x128xf32, #tpu.memory_space<vmem>>, vector<8x128xf32>,
    %cst_6 = arith.constant 0.000000e+00 : f32
    %5 = vector.broadcast %cst_6 : f32 to vector<8x128xf32>
    %c264 = arith.constant 264 : index
    %c0_7 = arith.constant 0 : index
    %6 = vector.load %arg7[%c264, %c0_7] : memref<272x128xf32, #tpu.memory_space<vmem>>, vector<8x128xf32>
    tpu.vector_store %arg7[%c264, %c0_7], %5 {strides = array<i32>} : memref<272x128xf32, #tpu.memory_space<vmem>>, vector<8x128xf32>,
    %c8 = arith.constant 8 : index
    %c0_8 = arith.constant 0 : index
    %7 = vector.load %arg7[%c8, %c0_8] : memref<272x128xf32, #tpu.memory_space<vmem>>, vector<256x128xf32>
    tpu.vector_store %arg7[%c8, %c0_8], %2 {strides = array<i32>} : memref<272x128xf32, #tpu.memory_space<vmem>>, vector<256x128xf32>,
    %8 = tpu.iota {dimensions = array<i32: 0>} : vector<256x1xi32>
    %c16_i32 = arith.constant 16 : i32
    %c0_i32 = arith.constant 0 : i32
    %9 = arith.cmpi eq, %c16_i32, %c0_i32 : i32
    %c1_i32 = arith.constant 1 : i32
    %10 = arith.select %9, %c1_i32, %c16_i32 : i32
    %11 = vector.broadcast %10 : i32 to vector<256x1xi32>
    %12 = arith.remsi %8, %11 : vector<256x1xi32>
    %c0_i32_9 = arith.constant 0 : i32
    %13 = vector.broadcast %c0_i32_9 : i32 to vector<256x1xi32>
    %14 = arith.cmpi ne, %12, %13 : vector<256x1xi32>
    %c0_i32_10 = arith.constant 0 : i32
    %15 = vector.broadcast %c0_i32_10 : i32 to vector<256x1xi32>
    %16 = arith.cmpi slt, %12, %15 : vector<256x1xi32>
    %c0_i32_11 = arith.constant 0 : i32
    %17 = arith.cmpi slt, %10, %c0_i32_11 : i32
    %18 = vector.broadcast %17 : i1 to vector<256x1xi1>
    %19 = vector.broadcast %18 : vector<256x1xi1> to vector<256x1xi1>
    %20 = arith.xori %16, %19 : vector<256x1xi1>
    %21 = arith.andi %20, %14 : vector<256x1xi1>
    %22 = vector.broadcast %10 : i32 to vector<256x1xi32>
    %23 = arith.addi %12, %22 : vector<256x1xi32>
    %24 = arith.select %21, %23, %12 : vector<256x1xi1>, vector<256x1xi32>
    %c5 = arith.constant 5 : index
    %c0_12 = arith.constant 0 : index
    %25 = vector.load %arg7[%c5, %c0_12] : memref<272x128xf32, #tpu.memory_space<vmem>>, vector<256x128xf32>
    %c-3_i32 = arith.constant -3 : i32
    %26 = vector.broadcast %c-3_i32 : i32 to vector<256x1xi32>
    %27 = arith.addi %24, %26 : vector<256x1xi32>
    %c0_i32_13 = arith.constant 0 : i32
    %28 = vector.broadcast %c0_i32_13 : i32 to vector<256x1xi32>
    %29 = arith.cmpi sge, %27, %28 : vector<256x1xi32>
    %c-3_i32_14 = arith.constant -3 : i32
    %30 = vector.broadcast %c-3_i32_14 : i32 to vector<256x1xi32>
    %31 = arith.addi %24, %30 : vector<256x1xi32>
    %c16_i32_15 = arith.constant 16 : i32
    %32 = vector.broadcast %c16_i32_15 : i32 to vector<256x1xi32>
    %33 = arith.cmpi slt, %31, %32 : vector<256x1xi32>
    %34 = arith.andi %29, %33 : vector<256x1xi1>
    %35 = arith.extui %34 : vector<256x1xi1> to vector<256x1xi32>
    %36 = arith.sitofp %35 : vector<256x1xi32> to vector<256x1xf32>
    %37 = vector.broadcast %36 : vector<256x1xf32> to vector<256x128xf32>
    %38 = arith.mulf %25, %37 : vector<256x128xf32>
    %39 = arith.truncf %38 : vector<256x128xf32> to vector<256x128xbf16>
    %c6 = arith.constant 6 : index
    %c0_16 = arith.constant 0 : index
    %40 = vector.load %arg7[%c6, %c0_16] : memref<272x128xf32, #tpu.memory_space<vmem>>, vector<256x128xf32>
    %c-2_i32 = arith.constant -2 : i32
    %41 = vector.broadcast %c-2_i32 : i32 to vector<256x1xi32>
    %42 = arith.addi %24, %41 : vector<256x1xi32>
    %c0_i32_17 = arith.constant 0 : i32
    %43 = vector.broadcast %c0_i32_17 : i32 to vector<256x1xi32>
    %44 = arith.cmpi sge, %42, %43 : vector<256x1xi32>
    %c-2_i32_18 = arith.constant -2 : i32
    %45 = vector.broadcast %c-2_i32_18 : i32 to vector<256x1xi32>
    %46 = arith.addi %24, %45 : vector<256x1xi32>
    %c16_i32_19 = arith.constant 16 : i32
    %47 = vector.broadcast %c16_i32_19 : i32 to vector<256x1xi32>
    %48 = arith.cmpi slt, %46, %47 : vector<256x1xi32>
    %49 = arith.andi %44, %48 : vector<256x1xi1>
    %50 = arith.extui %49 : vector<256x1xi1> to vector<256x1xi32>
    %51 = arith.sitofp %50 : vector<256x1xi32> to vector<256x1xf32>
    %52 = vector.broadcast %51 : vector<256x1xf32> to vector<256x128xf32>
    %53 = arith.mulf %40, %52 : vector<256x128xf32>
    %54 = arith.truncf %53 : vector<256x128xf32> to vector<256x128xbf16>
    %c7 = arith.constant 7 : index
    %c0_20 = arith.constant 0 : index
    %55 = vector.load %arg7[%c7, %c0_20] : memref<272x128xf32, #tpu.memory_space<vmem>>, vector<256x128xf32>
    %c-1_i32 = arith.constant -1 : i32
    %56 = vector.broadcast %c-1_i32 : i32 to vector<256x1xi32>
    %57 = arith.addi %24, %56 : vector<256x1xi32>
    %c0_i32_21 = arith.constant 0 : i32
    %58 = vector.broadcast %c0_i32_21 : i32 to vector<256x1xi32>
    %59 = arith.cmpi sge, %57, %58 : vector<256x1xi32>
    %c-1_i32_22 = arith.constant -1 : i32
    %60 = vector.broadcast %c-1_i32_22 : i32 to vector<256x1xi32>
    %61 = arith.addi %24, %60 : vector<256x1xi32>
    %c16_i32_23 = arith.constant 16 : i32
    %62 = vector.broadcast %c16_i32_23 : i32 to vector<256x1xi32>
    %63 = arith.cmpi slt, %61, %62 : vector<256x1xi32>
    %64 = arith.andi %59, %63 : vector<256x1xi1>
    %65 = arith.extui %64 : vector<256x1xi1> to vector<256x1xi32>
    %66 = arith.sitofp %65 : vector<256x1xi32> to vector<256x1xf32>
    %67 = vector.broadcast %66 : vector<256x1xf32> to vector<256x128xf32>
    %68 = arith.mulf %55, %67 : vector<256x128xf32>
    %69 = arith.truncf %68 : vector<256x128xf32> to vector<256x128xbf16>
    %c8_24 = arith.constant 8 : index
    %c0_25 = arith.constant 0 : index
    %70 = vector.load %arg7[%c8_24, %c0_25] : memref<272x128xf32, #tpu.memory_space<vmem>>, vector<256x128xf32>
    %c0_i32_26 = arith.constant 0 : i32
    %71 = vector.broadcast %c0_i32_26 : i32 to vector<256x1xi32>
    %72 = arith.addi %24, %71 : vector<256x1xi32>
    %c0_i32_27 = arith.constant 0 : i32
    %73 = vector.broadcast %c0_i32_27 : i32 to vector<256x1xi32>
    %74 = arith.cmpi sge, %72, %73 : vector<256x1xi32>
    %c0_i32_28 = arith.constant 0 : i32
    %75 = vector.broadcast %c0_i32_28 : i32 to vector<256x1xi32>
    %76 = arith.addi %24, %75 : vector<256x1xi32>
    %c16_i32_29 = arith.constant 16 : i32
    %77 = vector.broadcast %c16_i32_29 : i32 to vector<256x1xi32>
    %78 = arith.cmpi slt, %76, %77 : vector<256x1xi32>
    %79 = arith.andi %74, %78 : vector<256x1xi1>
    %80 = arith.extui %79 : vector<256x1xi1> to vector<256x1xi32>
    %81 = arith.sitofp %80 : vector<256x1xi32> to vector<256x1xf32>
    %82 = vector.broadcast %81 : vector<256x1xf32> to vector<256x128xf32>
    %83 = arith.mulf %70, %82 : vector<256x128xf32>
    %84 = arith.truncf %83 : vector<256x128xf32> to vector<256x128xbf16>
    %c9 = arith.constant 9 : index
    %c0_30 = arith.constant 0 : index
    %85 = vector.load %arg7[%c9, %c0_30] : memref<272x128xf32, #tpu.memory_space<vmem>>, vector<256x128xf32>
    %c1_i32_31 = arith.constant 1 : i32
    %86 = vector.broadcast %c1_i32_31 : i32 to vector<256x1xi32>
    %87 = arith.addi %24, %86 : vector<256x1xi32>
    %c0_i32_32 = arith.constant 0 : i32
    %88 = vector.broadcast %c0_i32_32 : i32 to vector<256x1xi32>
    %89 = arith.cmpi sge, %87, %88 : vector<256x1xi32>
    %c1_i32_33 = arith.constant 1 : i32
    %90 = vector.broadcast %c1_i32_33 : i32 to vector<256x1xi32>
    %91 = arith.addi %24, %90 : vector<256x1xi32>
    %c16_i32_34 = arith.constant 16 : i32
    %92 = vector.broadcast %c16_i32_34 : i32 to vector<256x1xi32>
    %93 = arith.cmpi slt, %91, %92 : vector<256x1xi32>
    %94 = arith.andi %89, %93 : vector<256x1xi1>
    %95 = arith.extui %94 : vector<256x1xi1> to vector<256x1xi32>
    %96 = arith.sitofp %95 : vector<256x1xi32> to vector<256x1xf32>
    %97 = vector.broadcast %96 : vector<256x1xf32> to vector<256x128xf32>
    %98 = arith.mulf %85, %97 : vector<256x128xf32>
    %99 = arith.truncf %98 : vector<256x128xf32> to vector<256x128xbf16>
    %c10 = arith.constant 10 : index
    %c0_35 = arith.constant 0 : index
    %100 = vector.load %arg7[%c10, %c0_35] : memref<272x128xf32, #tpu.memory_space<vmem>>, vector<256x128xf32>
    %c2_i32 = arith.constant 2 : i32
    %101 = vector.broadcast %c2_i32 : i32 to vector<256x1xi32>
    %102 = arith.addi %24, %101 : vector<256x1xi32>
    %c0_i32_36 = arith.constant 0 : i32
    %103 = vector.broadcast %c0_i32_36 : i32 to vector<256x1xi32>
    %104 = arith.cmpi sge, %102, %103 : vector<256x1xi32>
    %c2_i32_37 = arith.constant 2 : i32
    %105 = vector.broadcast %c2_i32_37 : i32 to vector<256x1xi32>
    %106 = arith.addi %24, %105 : vector<256x1xi32>
    %c16_i32_38 = arith.constant 16 : i32
    %107 = vector.broadcast %c16_i32_38 : i32 to vector<256x1xi32>
    %108 = arith.cmpi slt, %106, %107 : vector<256x1xi32>
    %109 = arith.andi %104, %108 : vector<256x1xi1>
    %110 = arith.extui %109 : vector<256x1xi1> to vector<256x1xi32>
    %111 = arith.sitofp %110 : vector<256x1xi32> to vector<256x1xf32>
    %112 = vector.broadcast %111 : vector<256x1xf32> to vector<256x128xf32>
    %113 = arith.mulf %100, %112 : vector<256x128xf32>
    %114 = arith.truncf %113 : vector<256x128xf32> to vector<256x128xbf16>
    %c11 = arith.constant 11 : index
    %c0_39 = arith.constant 0 : index
    %115 = vector.load %arg7[%c11, %c0_39] : memref<272x128xf32, #tpu.memory_space<vmem>>, vector<256x128xf32>
    %c3_i32 = arith.constant 3 : i32
    %116 = vector.broadcast %c3_i32 : i32 to vector<256x1xi32>
    %117 = arith.addi %24, %116 : vector<256x1xi32>
    %c0_i32_40 = arith.constant 0 : i32
    %118 = vector.broadcast %c0_i32_40 : i32 to vector<256x1xi32>
    %119 = arith.cmpi sge, %117, %118 : vector<256x1xi32>
    %c3_i32_41 = arith.constant 3 : i32
    %120 = vector.broadcast %c3_i32_41 : i32 to vector<256x1xi32>
    %121 = arith.addi %24, %120 : vector<256x1xi32>
    %c16_i32_42 = arith.constant 16 : i32
    %122 = vector.broadcast %c16_i32_42 : i32 to vector<256x1xi32>
    %123 = arith.cmpi slt, %121, %122 : vector<256x1xi32>
    %124 = arith.andi %119, %123 : vector<256x1xi1>
    %125 = arith.extui %124 : vector<256x1xi1> to vector<256x1xi32>
    %126 = arith.sitofp %125 : vector<256x1xi32> to vector<256x1xf32>
    %127 = vector.broadcast %126 : vector<256x1xf32> to vector<256x128xf32>
    %128 = arith.mulf %115, %127 : vector<256x128xf32>
    %129 = arith.truncf %128 : vector<256x128xf32> to vector<256x128xbf16>
    %130 = tpu.concatenate %39, %54, %69, %84, %99, %114, %129 in 1 : vector<256x128xbf16>, vector<256x128xbf16>, vector<256x128xbf16>, vector<256x128xbf16>, vector<256x128xbf16>, vector<256x128xbf16>, vector<256x128xbf16> -> vector<256x896xbf16>
    %c0_43 = arith.constant 0 : index
    %c0_44 = arith.constant 0 : index
    %131 = vector.load %arg3[%c0_43, %c0_44] : memref<896x128xbf16, #tpu.memory_space<vmem>>, vector<896x128xbf16>
    %cst_45 = arith.constant dense<0.000000e+00> : vector<256x128xf32>
    %132 = tpu.matmul %130, %131, %cst_45 {dimension_numbers = #tpu.dot_dimension_numbers<[1], [0], [0], [1], [0, 0, 1, 1], [], []>} : vector<256x896xbf16>, vector<896x128xbf16>, vector<256x128xf32> -> vector<256x128xf32>
    %133 = arith.truncf %132 : vector<256x128xf32> to vector<256x128xbf16>
    %c0_46 = arith.constant 0 : index
    %c0_47 = arith.constant 0 : index
    %134 = vector.load %arg4[%c0_46, %c0_47] : memref<256x128xbf16, #tpu.memory_space<vmem>>, vector<256x128xbf16>
    tpu.vector_store %arg4[%c0_46, %c0_47], %133 {strides = array<i32>} : memref<256x128xbf16, #tpu.memory_space<vmem>>, vector<256x128xbf16>,
    %cst_48 = arith.constant dense<0.000000e+00> : vector<128xf32>
    %135 = vector.multi_reduction <add>, %132, %cst_48 [0] : vector<256x128xf32> to vector<128xf32>
    %136 = vector.shape_cast %135 : vector<128xf32> to vector<1x128xf32>
    %137 = vector.shape_cast %136 : vector<1x128xf32> to vector<1x128xf32>
    %138 = vector.broadcast %137 : vector<1x128xf32> to vector<8x128xf32>
    %c0_49 = arith.constant 0 : index
    %c0_50 = arith.constant 0 : index
    %c0_51 = arith.constant 0 : index
    %139 = vector.load %arg5[%c0_49, %c0_50, %c0_51] : memref<1x8x128xf32, #tpu.memory_space<vmem>>, vector<1x8x128xf32>
    %140 = vector.shape_cast %139 : vector<1x8x128xf32> to vector<8x128xf32>
    %141 = vector.shape_cast %138 : vector<8x128xf32> to vector<1x8x128xf32>
    tpu.vector_store %arg5[%c0_49, %c0_50, %c0_51], %141 {strides = array<i32>} : memref<1x8x128xf32, #tpu.memory_space<vmem>>, vector<1x8x128xf32>,
    %142 = arith.mulf %132, %132 : vector<256x128xf32>
    %cst_52 = arith.constant dense<0.000000e+00> : vector<128xf32>
    %143 = vector.multi_reduction <add>, %142, %cst_52 [0] : vector<256x128xf32> to vector<128xf32>
    %144 = vector.shape_cast %143 : vector<128xf32> to vector<1x128xf32>
    %145 = vector.shape_cast %144 : vector<1x128xf32> to vector<1x128xf32>
    %146 = vector.broadcast %145 : vector<1x128xf32> to vector<8x128xf32>
    %c0_53 = arith.constant 0 : index
    %c0_54 = arith.constant 0 : index
    %c0_55 = arith.constant 0 : index
    %147 = vector.load %arg6[%c0_53, %c0_54, %c0_55] : memref<1x8x128xf32, #tpu.memory_space<vmem>>, vector<1x8x128xf32>
    %148 = vector.shape_cast %147 : vector<1x8x128xf32> to vector<8x128xf32>
    %149 = vector.shape_cast %146 : vector<8x128xf32> to vector<1x8x128xf32>
    tpu.vector_store %arg6[%c0_53, %c0_54, %c0_55], %149 {strides = array<i32>} : memref<1x8x128xf32, #tpu.memory_space<vmem>>, vector<1x8x128xf32>,
    return
  }
  func.func @transform_0(%arg0: i32) -> (i32, i32) {
    %c0_i32 = arith.constant 0 : i32
    %c0_i32_0 = arith.constant 0 : i32
    return %arg0, %c0_i32 : i32, i32
  }
  func.func @transform_1(%arg0: i32) -> (i32, i32) {
    %c0_i32 = arith.constant 0 : i32
    %c0_i32_0 = arith.constant 0 : i32
    %c0_i32_1 = arith.constant 0 : i32
    return %c0_i32, %c0_i32_0 : i32, i32
  }
  func.func @transform_2(%arg0: i32) -> (i32, i32) {
    %c0_i32 = arith.constant 0 : i32
    %c0_i32_0 = arith.constant 0 : i32
    %c0_i32_1 = arith.constant 0 : i32
    return %c0_i32, %c0_i32_0 : i32, i32
  }
  func.func @transform_3(%arg0: i32) -> (i32, i32) {
    %c0_i32 = arith.constant 0 : i32
    %c0_i32_0 = arith.constant 0 : i32
    return %arg0, %c0_i32 : i32, i32
  }
  func.func @transform_4(%arg0: i32) -> (i32, i32, i32) {
    %c0_i32 = arith.constant 0 : i32
    %c0_i32_0 = arith.constant 0 : i32
    %c0_i32_1 = arith.constant 0 : i32
    return %arg0, %c0_i32, %c0_i32_0 : i32, i32, i32
  }
  func.func @transform_5(%arg0: i32) -> (i32, i32, i32) {
    %c0_i32 = arith.constant 0 : i32
    %c0_i32_0 = arith.constant 0 : i32
    %c0_i32_1 = arith.constant 0 : i32
    return %arg0, %c0_i32, %c0_i32_0 : i32, i32, i32
  }
}

</mosaic_0001>

<llo_original>
// kernel: tpu_custom_call.1
$region0: #{tpu_custom_call.1}
  #allocation0 [shape = 'u32[]', space=smem, size = 0x4, offset = 0x4, fixed_abs, tag = 'smem constant byte address 0x4 - core index']
  #allocation1 [shape = 'u32[72,128]{1,0:T(1,128)}', space=vmem, size = 0x9000, scoped, tag = 'internal scratch']
  #allocation2 [shape = 'f32[272,128]{1,0:T(8,128)}', space=vmem, size = 0x22000, scoped, tag = 'scratch operand']
  %s0 = inlined_call_operand.vmem [shape: bf16[512,56], index: 0, kind: input, shape index: {}]
  %s1 = inlined_call_operand.vmem [shape: bf16[56,128], index: 1, kind: input, shape index: {}]
  %s2 = inlined_call_operand.hbm [shape: bf16[896,128], index: 2, kind: input, shape index: {}]
  %s3 = inlined_call_operand.hbm [shape: bf16[512,128], index: 3, kind: output, shape index: {0}]
  %s4 = inlined_call_operand.hbm [shape: f32[2,8,128], index: 4, kind: output, shape index: {1}]
  %s5 = inlined_call_operand.hbm [shape: f32[2,8,128], index: 5, kind: output, shape index: {2}]
  %6 = xla_tuple %s3, %s4, %s5
  %s7 = sld [smem:[#allocation0]]
  $region65: #{tpu_custom_call.1} parent=0
    _
  %s9 = ssub.s32 1, %s7
  %s10 = scalar_select 0, %s9, %s7
  $region1: #{tpu_custom_call.1} parent=0
    #allocation3 [shape = 'u8[229376]{0}', space=vmem, size = 0x38000, scoped, tag = 'input window, operand 2, single buffered']
    #allocation4 [shape = 's32[2]{0}', space=sflag, size = 0x8, scoped, tag = 'scoped memory for tpu_custom_call.1']
    #allocation5 [shape = 's32[2]{0}', space=sflag, size = 0x8, scoped, tag = 'scoped memory for tpu_custom_call.1']
    #allocation6 [shape = 'u8[131072]{0}', space=vmem, size = 0x20000, scoped, tag = 'output window, operand 0']
    #allocation7 [shape = 'u8[8192]{0}', space=vmem, size = 0x2000, scoped, tag = 'output window, operand 1']
    #allocation8 [shape = 's32[2]{0}', space=sflag, size = 0x8, scoped, tag = 'scoped memory for tpu_custom_call.1']
    #allocation9 [shape = 'u8[8192]{0}', space=vmem, size = 0x2000, scoped, tag = 'output window, operand 2']
    %11 = vsyncpa [#allocation4], 0
    %12 = vsyncpa [#allocation5], 0
    %s13 = scalar_lea.sflag [#allocation5], 1
    %14 = vsyncpa %s13, 0
    %15 = vsyncpa [#allocation8], 0
    %s16 = scalar_lea.sflag [#allocation8], 1
    %17 = vsyncpa %s16, 0
    loop: start=0, step=1, limit=4
    $region2: #{tpu_custom_call.1} parent=1 // loop_pre_header
      _
    $region3: #{tpu_custom_call.1} parent=1 // loop_header
      %s19 = sphi 0, %s23
      %p20 = scmp.ge.s32.totalorder %s19, 4
      %s29 = sphi 0, %s31
      %s32 = sphi 0, %s29
      %s33 = sphi 0, %s32
      %s49 = sphi 0, %s33
      %s53 = sphi 0, %s53
      %s55 = sphi 0, %s53
      %s56 = sphi 0, %s55
      %s70 = sphi 0, %s56
      %s74 = sphi 0, %s74
      %s76 = sphi 0, %s74
      %s77 = sphi 0, %s76
      %s91 = sphi 0, %s77
      %s97 = sphi 0, %s99
      %s100 = sphi 0, %s97
      %s101 = sphi 0, %s100
      %s117 = sphi 0, %s101
      %s123 = sphi 0, %s125
      %s126 = sphi 0, %s123
      %s127 = sphi 0, %s126
      %s143 = sphi 0, %s127
      %s149 = sphi 0, %s151
      %s152 = sphi 0, %s149
      %s153 = sphi 0, %s152
      %s169 = sphi 0, %s153
    $region4: #{tpu_custom_call.1} parent=1 // loop_header_branch
      %22 = sbr.rel (%p20) target = $region8
    $region5: #{tpu_custom_call.1} parent=1 // loop_body
      %s24 = ssub.s32 %s19, 1
      %s25 = ssub.s32 %s19, 2
      %s26 = sadd.s32 %s19, 1
      %s27 = ssub.s32 %s19, %s26
      %p28 = scmp.eq.s32.totalorder %s27, 0
      %s30 = sadd.s32 %s29, 1
      %s31 = scalar_select %p28, %s29, %s30
      %p34 = pneg %p28
      %p35 = scmp.eq.s32.totalorder %s19, 1
      %p36 = por %p34, %p35
      %p37 = scmp.ne.s32.totalorder %s29, %s32
      %p38 = scmp.eq.s32.totalorder %s19, 0
      %p39 = por %p37, %p38
      %p40 = scmp.ne.s32.totalorder %s29, %s32
      %p41 = scmp.eq.s32.totalorder %s24, 1
      %p42 = por %p40, %p41
      %p43 = scmp.ne.s32.totalorder %s32, %s33
      %p44 = scmp.eq.s32.totalorder %s24, 0
      %p45 = por %p43, %p44
      %p46 = scmp.ne.s32.totalorder %s32, %s33
      %p47 = scmp.eq.s32.totalorder %s25, 1
      %p48 = por %p46, %p47
      %p50 = scmp.ne.s32.totalorder %s33, %s49
      %p51 = scmp.eq.s32.totalorder %s25, 0
      %p52 = por %p50, %p51
      %s54 = sadd.s32 %s53, 1
      %p57 = scmp.eq.s32.totalorder %s19, 1
      %p58 = scmp.ne.s32.totalorder %s53, %s55
      %p59 = scmp.eq.s32.totalorder %s19, 0
      %p60 = por %p58, %p59
      %p61 = scmp.ne.s32.totalorder %s53, %s55
      %p62 = scmp.eq.s32.totalorder %s24, 1
      %p63 = por %p61, %p62
      %p64 = scmp.ne.s32.totalorder %s55, %s56
      %p65 = scmp.eq.s32.totalorder %s24, 0
      %p66 = por %p64, %p65
      %p67 = scmp.ne.s32.totalorder %s55, %s56
      %p68 = scmp.eq.s32.totalorder %s25, 1
      %p69 = por %p67, %p68
      %p71 = scmp.ne.s32.totalorder %s56, %s70
      %p72 = scmp.eq.s32.totalorder %s25, 0
      %p73 = por %p71, %p72
      %s75 = sadd.s32 %s74, 1
      %p78 = scmp.eq.s32.totalorder %s19, 1
      %p79 = scmp.ne.s32.totalorder %s74, %s76
      %p80 = scmp.eq.s32.totalorder %s19, 0
      %p81 = por %p79, %p80
      %p82 = scmp.ne.s32.totalorder %s74, %s76
      %p83 = scmp.eq.s32.totalorder %s24, 1
      %p84 = por %p82, %p83
      %p85 = scmp.ne.s32.totalorder %s76, %s77
      %p86 = scmp.eq.s32.totalorder %s24, 0
      %p87 = por %p85, %p86
      %p88 = scmp.ne.s32.totalorder %s76, %s77
      %p89 = scmp.eq.s32.totalorder %s25, 1
      %p90 = por %p88, %p89
      %p92 = scmp.ne.s32.totalorder %s77, %s91
      %p93 = scmp.eq.s32.totalorder %s25, 0
      %p94 = por %p92, %p93
      %s95 = ssub.s32 %s19, %s26
      %p96 = scmp.eq.s32.totalorder %s95, 0
      %s98 = sadd.s32 %s97, 1
      %s99 = scalar_select %p96, %s97, %s98
      %p102 = pneg %p96
      %p103 = scmp.eq.s32.totalorder %s19, 1
      %p104 = por %p102, %p103
      %p105 = scmp.ne.s32.totalorder %s97, %s100
      %p106 = scmp.eq.s32.totalorder %s19, 0
      %p107 = por %p105, %p106
      %p108 = scmp.ne.s32.totalorder %s97, %s100
      %p109 = scmp.eq.s32.totalorder %s24, 1
      %p110 = por %p108, %p109
      %p111 = scmp.ne.s32.totalorder %s100, %s101
      %p112 = scmp.eq.s32.totalorder %s24, 0
      %p113 = por %p111, %p112
      %p114 = scmp.ne.s32.totalorder %s100, %s101
      %p115 = scmp.eq.s32.totalorder %s25, 1
      %p116 = por %p114, %p115
      %p118 = scmp.ne.s32.totalorder %s101, %s117
      %p119 = scmp.eq.s32.totalorder %s25, 0
      %p120 = por %p118, %p119
      %s121 = ssub.s32 %s19, %s26
      %p122 = scmp.eq.s32.totalorder %s121, 0
      %s124 = sadd.s32 %s123, 1
      %s125 = scalar_select %p122, %s123, %s124
      %p128 = pneg %p122
      %p129 = scmp.eq.s32.totalorder %s19, 1
      %p130 = por %p128, %p129
      %p131 = scmp.ne.s32.totalorder %s123, %s126
      %p132 = scmp.eq.s32.totalorder %s19, 0
      %p133 = por %p131, %p132
      %p134 = scmp.ne.s32.totalorder %s123, %s126
      %p135 = scmp.eq.s32.totalorder %s24, 1
      %p136 = por %p134, %p135
      %p137 = scmp.ne.s32.totalorder %s126, %s127
      %p138 = scmp.eq.s32.totalorder %s24, 0
      %p139 = por %p137, %p138
      %p140 = scmp.ne.s32.totalorder %s126, %s127
      %p141 = scmp.eq.s32.totalorder %s25, 1
      %p142 = por %p140, %p141
      %p144 = scmp.ne.s32.totalorder %s127, %s143
      %p145 = scmp.eq.s32.totalorder %s25, 0
      %p146 = por %p144, %p145
      %s147 = ssub.s32 %s19, %s26
      %p148 = scmp.eq.s32.totalorder %s147, 0
      %s150 = sadd.s32 %s149, 1
      %s151 = scalar_select %p148, %s149, %s150
      %p154 = pneg %p148
      %p155 = scmp.eq.s32.totalorder %s19, 1
      %p156 = por %p154, %p155
      %p157 = scmp.ne.s32.totalorder %s149, %s152
      %p158 = scmp.eq.s32.totalorder %s19, 0
      %p159 = por %p157, %p158
      %p160 = scmp.ne.s32.totalorder %s149, %s152
      %p161 = scmp.eq.s32.totalorder %s24, 1
      %p162 = por %p160, %p161
      %p163 = scmp.ne.s32.totalorder %s152, %s153
      %p164 = scmp.eq.s32.totalorder %s24, 0
      %p165 = por %p163, %p164
      %p166 = scmp.ne.s32.totalorder %s152, %s153
      %p167 = scmp.eq.s32.totalorder %s25, 1
      %p168 = por %p166, %p167
      %p170 = scmp.ne.s32.totalorder %s153, %s169
      %p171 = scmp.eq.s32.totalorder %s25, 0
      %p172 = por %p170, %p171
      %p173 = scmp.le.s32.totalorder 1, %s19
      %p174 = scmp.lt.s32.totalorder %s19, 3
      %p175 = pnand %p173, %p174
      %p176 = pneg %p175
      // Predicated region
      $region9: #{tpu_custom_call.1} parent=5 // pred_check
        _
      $region10: #{tpu_custom_call.1} parent=5 // pred_check_branch
        %178 = sbr.rel (%p175) target = $region12
      $region11: #{tpu_custom_call.1} parent=5 // pred_region
        %s179 = ssub.s32 %s19, 1
        // Predicated region
        $region13: #{tpu_custom_call.1} parent=11 // pred_check
          %p180 = pneg %p66
        $region14: #{tpu_custom_call.1} parent=11 // pred_check_branch
          %182 = sbr.rel (%p180) target = $region16
        $region15: #{tpu_custom_call.1} parent=11 // pred_region
          _
        $region16: #{tpu_custom_call.1} parent=11 // pred_fallthru
          _
        // Predicated region
        $region17: #{tpu_custom_call.1} parent=11 // pred_check
          %p183 = pneg %p87
        $region18: #{tpu_custom_call.1} parent=11 // pred_check_branch
          %185 = sbr.rel (%p183) target = $region20
        $region19: #{tpu_custom_call.1} parent=11 // pred_region
          %187 = vsyncadd [#allocation4], 0
          %s188 = sshll.u32 %s2, 4
          %s189 = int_to_ptr.hbm [resolvable:$true] %s188
          %s190 = sshll.u32 [#allocation3], 4
          %s191 = int_to_ptr.vmem [resolvable:$true] %s190
          %196 = dma.hbm_to_vmem [thread:$0]  %s189, 7168, %s191, [#allocation4], 64, 64, 4
        $region20: #{tpu_custom_call.1} parent=11 // pred_fallthru
          _
      $region12: #{tpu_custom_call.1} parent=5 // pred_fallthru
        _
      %p197 = scmp.lt.s32.totalorder %s19, 2
      // Predicated region
      $region21: #{tpu_custom_call.1} parent=5 // pred_check
        %p198 = pneg %p197
      $region22: #{tpu_custom_call.1} parent=5 // pred_check_branch
        %200 = sbr.rel (%p198) target = $region24
      $region23: #{tpu_custom_call.1} parent=5 // pred_region
        // Predicated region
        $region25: #{tpu_custom_call.1} parent=23 // pred_check
          %p201 = pneg %p39
        $region26: #{tpu_custom_call.1} parent=23 // pred_check_branch
          %203 = sbr.rel (%p201) target = $region28
        $region27: #{tpu_custom_call.1} parent=23 // pred_region
          %s204 = smul.u32 32, %s19
          %p205 = scmp.lt.s32.totalorder %s204, 63
          %s206 = scalar_select %p205, %s204, 63
          %s207 = smul.addr %s206, 4
          %s208 = scalar_lea.vmem %s0, %s207
          %s209 = smul.u32 32, %s19
        $region28: #{tpu_custom_call.1} parent=23 // pred_fallthru
          _
      $region24: #{tpu_custom_call.1} parent=5 // pred_fallthru
        _
      %p210 = scmp.le.s32.totalorder 1, %s19
      %p211 = scmp.lt.s32.totalorder %s19, 3
      %p212 = pnand %p210, %p211
      %p213 = pneg %p212
      // Predicated region
      $region29: #{tpu_custom_call.1} parent=5 // pred_check
        _
      $region30: #{tpu_custom_call.1} parent=5 // pred_check_branch
        %215 = sbr.rel (%p212) target = $region32
      $region31: #{tpu_custom_call.1} parent=5 // pred_region
        %s216 = ssub.s32 %s19, 1
        // Predicated region
        $region33: #{tpu_custom_call.1} parent=31 // pred_check
          %p217 = pneg %p87
        $region34: #{tpu_custom_call.1} parent=31 // pred_check_branch
          %219 = sbr.rel (%p217) target = $region36
        $region35: #{tpu_custom_call.1} parent=31 // pred_region
          %221 = dma.done [#allocation4], 7168
        $region36: #{tpu_custom_call.1} parent=31 // pred_fallthru
          _
        %s222 = smul.u32 32, %s24
        %p223 = scmp.lt.s32.totalorder %s222, 63
        %s224 = scalar_select %p223, %s222, 63
        %s225 = smul.addr %s224, 4
        %s226 = scalar_lea.vmem %s0, %s225
        %p227 = pneg %p45
        %p228 = pneg %p42
        %p229 = pneg %p66
        %p230 = pneg %p63
        %p231 = pneg %p87
        %p232 = pneg %p84
        %p233 = pneg %p113
        %p234 = pneg %p110
        %s235 = sand.u32 %s100, 1
        %s236 = scalar_lea.sflag [#allocation5], %s235
        %s237 = sand.u32 %s100, 1
        %s238 = smul.addr %s237, 128
        %s239 = scalar_lea.vmem [#allocation6], %s238
        %p240 = pneg %p139
        %p241 = pneg %p136
        %s242 = sand.u32 %s24, 1
        %s243 = scalar_lea.sflag [#allocation8], %s242
        %s244 = sand.u32 %s126, 1
        %s245 = smul.addr %s244, 8
        %s246 = scalar_lea.vmem [#allocation7], %s245
        %p247 = pneg %p165
        %p248 = pneg %p162
        %s249 = sand.u32 %s24, 1
        %s250 = scalar_lea.sflag [#allocation8], %s249
        %s251 = sand.u32 %s152, 1
        %s252 = smul.addr %s251, 8
        %s253 = scalar_lea.vmem [#allocation9], %s252
        %s254 = smul.u32 32, %s24
        %p255 = scmp.lt.s32.totalorder %s254, 63
        %s256 = scalar_select %p255, %s254, 63
        %s257 = smul.addr %s256, 4
        %s258 = scalar_lea.vmem %s0, %s257
        %s259 = smul.u32 32, %s24
        %s260 = smul.u32 32, %s24
        %v262 = vld [vmem:[%s258] sm:$0xf]
        %v263 = vld [vmem:[%s258 + $0x4] sm:$0xf]
        %v264 = vld [vmem:[%s258 + $0x8] sm:$0xf]
        %v265 = vld [vmem:[%s258 + $0xc] sm:$0xf]
        %v266 = vld [vmem:[%s258 + $0x10] sm:$0xf]
        %v267 = vld [vmem:[%s258 + $0x14] sm:$0xf]
        %v268 = vld [vmem:[%s258 + $0x18] sm:$0xf]
        %v269 = vld [vmem:[%s258 + $0x1c] sm:$0xf]
        %v270 = vld [vmem:[%s258 + $0x20] sm:$0xf]
        %v271 = vld [vmem:[%s258 + $0x24] sm:$0xf]
        %v272 = vld [vmem:[%s258 + $0x28] sm:$0xf]
        %v273 = vld [vmem:[%s258 + $0x2c] sm:$0xf]
        %v274 = vld [vmem:[%s258 + $0x30] sm:$0xf]
        %v275 = vld [vmem:[%s258 + $0x34] sm:$0xf]
        %v276 = vld [vmem:[%s258 + $0x38] sm:$0xf]
        %v277 = vld [vmem:[%s258 + $0x3c] sm:$0xf]
        %v278 = vld [vmem:[%s258 + $0x40] sm:$0xf]
        %v279 = vld [vmem:[%s258 + $0x44] sm:$0xf]
        %v280 = vld [vmem:[%s258 + $0x48] sm:$0xf]
        %v281 = vld [vmem:[%s258 + $0x4c] sm:$0xf]
        %v282 = vld [vmem:[%s258 + $0x50] sm:$0xf]
        %v283 = vld [vmem:[%s258 + $0x54] sm:$0xf]
        %v284 = vld [vmem:[%s258 + $0x58] sm:$0xf]
        %v285 = vld [vmem:[%s258 + $0x5c] sm:$0xf]
        %v286 = vld [vmem:[%s258 + $0x60] sm:$0xf]
        %v287 = vld [vmem:[%s258 + $0x64] sm:$0xf]
        %v288 = vld [vmem:[%s258 + $0x68] sm:$0xf]
        %v289 = vld [vmem:[%s258 + $0x6c] sm:$0xf]
        %v290 = vld [vmem:[%s258 + $0x70] sm:$0xf]
        %v291 = vld [vmem:[%s258 + $0x74] sm:$0xf]
        %v292 = vld [vmem:[%s258 + $0x78] sm:$0xf]
        %v293 = vld [vmem:[%s258 + $0x7c] sm:$0xf]
        %v294 = vld [vmem:[%s1] sm:$0xf]
        %v295 = vld [vmem:[%s1 + $0x4] sm:$0xf]
        %v296 = vld [vmem:[%s1 + $0x8] sm:$0xf]
        %v297 = vld [vmem:[%s1 + $0xc] sm:$0xf]
        %v298 = vld [vmem:[%s1 + $0x10] sm:$0xf]
        %v299 = vld [vmem:[%s1 + $0x14] sm:$0xf]
        %v300 = vld [vmem:[%s1 + $0x18] sm:$0xf]
        %v333 = vunpack.c.l.b16 %v262
        %v334 = vunpack.c.l.b16 %v263
        %v335 = vunpack.c.l.b16 %v264
        %v336 = vunpack.c.l.b16 %v265
        %v337 = vunpack.c.l.b16 %v266
        %v338 = vunpack.c.l.b16 %v267
        %v339 = vunpack.c.l.b16 %v268
        %v340 = vunpack.c.l.b16 %v269
        %v341 = vunpack.c.l.b16 %v270
        %v342 = vunpack.c.l.b16 %v271
        %v343 = vunpack.c.l.b16 %v272
        %v344 = vunpack.c.l.b16 %v273
        %v345 = vunpack.c.l.b16 %v274
        %v346 = vunpack.c.l.b16 %v275
        %v347 = vunpack.c.l.b16 %v276
        %v348 = vunpack.c.l.b16 %v277
        %v349 = vunpack.c.l.b16 %v278
        %v350 = vunpack.c.l.b16 %v279
        %v351 = vunpack.c.l.b16 %v280
        %v352 = vunpack.c.l.b16 %v281
        %v353 = vunpack.c.l.b16 %v282
        %v354 = vunpack.c.l.b16 %v283
        %v355 = vunpack.c.l.b16 %v284
        %v356 = vunpack.c.l.b16 %v285
        %v357 = vunpack.c.l.b16 %v286
        %v358 = vunpack.c.l.b16 %v287
        %v359 = vunpack.c.l.b16 %v288
        %v360 = vunpack.c.l.b16 %v289
        %v361 = vunpack.c.l.b16 %v290
        %v362 = vunpack.c.l.b16 %v291
        %v363 = vunpack.c.l.b16 %v292
        %v364 = vunpack.c.l.b16 %v293
        %v365 = vpack.c.b16 %v334, %v333
        %v366 = vpack.c.b16 %v336, %v335
        %v367 = vpack.c.b16 %v338, %v337
        %v368 = vpack.c.b16 %v340, %v339
        %v369 = vpack.c.b16 %v342, %v341
        %v370 = vpack.c.b16 %v344, %v343
        %v371 = vpack.c.b16 %v346, %v345
        %v372 = vpack.c.b16 %v348, %v347
        %v373 = vpack.c.b16 %v350, %v349
        %v374 = vpack.c.b16 %v352, %v351
        %v375 = vpack.c.b16 %v354, %v353
        %v376 = vpack.c.b16 %v356, %v355
        %v377 = vpack.c.b16 %v358, %v357
        %v378 = vpack.c.b16 %v360, %v359
        %v379 = vpack.c.b16 %v362, %v361
        %v380 = vpack.c.b16 %v364, %v363
        %v388 = vunpack.c.l.b16 %v294
        %v389 = vunpack.c.l.b16 %v295
        %v390 = vunpack.c.l.b16 %v296
        %v391 = vunpack.c.l.b16 %v297
        %v392 = vunpack.c.l.b16 %v298
        %v393 = vunpack.c.l.b16 %v299
        %v394 = vunpack.c.l.b16 %v300
        %v395 = vpack.c.b16 %v389, %v388
        %v396 = vpack.c.b16 %v391, %v390
        %v397 = vpack.c.b16 %v393, %v392
        %v398 = vpack.c.b16 %v394, %v394
        %vm402 = vcmask 457728
        %v404 = vsel %vm402, %v365, 0
        %v407 = vsel %vm402, %v366, 0
        %v410 = vsel %vm402, %v367, 0
        %v413 = vsel %vm402, %v368, 0
        %v416 = vsel %vm402, %v369, 0
        %v419 = vsel %vm402, %v370, 0
        %v422 = vsel %vm402, %v371, 0
        %v425 = vsel %vm402, %v372, 0
        %v428 = vsel %vm402, %v373, 0
        %v431 = vsel %vm402, %v374, 0
        %v434 = vsel %vm402, %v375, 0
        %v437 = vsel %vm402, %v376, 0
        %v440 = vsel %vm402, %v377, 0
        %v443 = vsel %vm402, %v378, 0
        %v446 = vsel %vm402, %v379, 0
        %v449 = vsel %vm402, %v380, 0
        %vm451 = vcmask 1043456
        %v453 = vsel %vm451, %v398, 0
        %455 = vmatpush.bf16.msra.mxu0 0
        %456 = vmatpush.bf16.msra.mxu0 0
        %457 = vmatpush.bf16.msra.mxu0 0
        %458 = vmatpush.bf16.msra.mxu0 0
        %459 = vmatpush.bf16.msra.mxu0 %v453
        %460 = vmatpush.bf16.msra.mxu0 %v397
        %461 = vmatpush.bf16.msra.mxu0 %v396
        %462 = vmatpush.bf16.msra.mxu0 %v395
        %463 = vmatmul.bf16.gmra.mxu0 %v404
        %v464 = vpop.f32.mrf.mxu0
        %v465 = vadd.f32 0.0, %v464
        %v466 = vpop.f32.mrf.mxu0
        %v467 = vadd.f32 0.0, %v466
        %468 = vmatmul.bf16.gmra.mxu0 %v407
        %v469 = vpop.f32.mrf.mxu0
        %v470 = vadd.f32 0.0, %v469
        %v471 = vpop.f32.mrf.mxu0
        %v472 = vadd.f32 0.0, %v471
        %473 = vmatmul.bf16.gmra.mxu0 %v410
        %v474 = vpop.f32.mrf.mxu0
        %v475 = vadd.f32 0.0, %v474
        %v476 = vpop.f32.mrf.mxu0
        %v477 = vadd.f32 0.0, %v476
        %478 = vmatmul.bf16.gmra.mxu0 %v413
        %v479 = vpop.f32.mrf.mxu0
        %v480 = vadd.f32 0.0, %v479
        %v481 = vpop.f32.mrf.mxu0
        %v482 = vadd.f32 0.0, %v481
        %483 = vmatmul.bf16.gmra.mxu0 %v416
        %v484 = vpop.f32.mrf.mxu0
        %v485 = vadd.f32 0.0, %v484
        %v486 = vpop.f32.mrf.mxu0
        %v487 = vadd.f32 0.0, %v486
        %488 = vmatmul.bf16.gmra.mxu0 %v419
        %v489 = vpop.f32.mrf.mxu0
        %v490 = vadd.f32 0.0, %v489
        %v491 = vpop.f32.mrf.mxu0
        %v492 = vadd.f32 0.0, %v491
        %493 = vmatmul.bf16.gmra.mxu0 %v422
        %v494 = vpop.f32.mrf.mxu0
        %v495 = vadd.f32 0.0, %v494
        %v496 = vpop.f32.mrf.mxu0
        %v497 = vadd.f32 0.0, %v496
        %498 = vmatmul.bf16.gmra.mxu0 %v425
        %v499 = vpop.f32.mrf.mxu0
        %v500 = vadd.f32 0.0, %v499
        %v501 = vpop.f32.mrf.mxu0
        %v502 = vadd.f32 0.0, %v501
        %503 = vmatmul.bf16.gmra.mxu0 %v428
        %v504 = vpop.f32.mrf.mxu0
        %v505 = vadd.f32 0.0, %v504
        %v506 = vpop.f32.mrf.mxu0
        %v507 = vadd.f32 0.0, %v506
        %508 = vmatmul.bf16.gmra.mxu0 %v431
        %v509 = vpop.f32.mrf.mxu0
        %v510 = vadd.f32 0.0, %v509
        %v511 = vpop.f32.mrf.mxu0
        %v512 = vadd.f32 0.0, %v511
        %513 = vmatmul.bf16.gmra.mxu0 %v434
        %v514 = vpop.f32.mrf.mxu0
        %v515 = vadd.f32 0.0, %v514
        %v516 = vpop.f32.mrf.mxu0
        %v517 = vadd.f32 0.0, %v516
        %518 = vmatmul.bf16.gmra.mxu0 %v437
        %v519 = vpop.f32.mrf.mxu0
        %v520 = vadd.f32 0.0, %v519
        %v521 = vpop.f32.mrf.mxu0
        %v522 = vadd.f32 0.0, %v521
        %523 = vmatmul.bf16.gmra.mxu0 %v440
        %v524 = vpop.f32.mrf.mxu0
        %v525 = vadd.f32 0.0, %v524
        %v526 = vpop.f32.mrf.mxu0
        %v527 = vadd.f32 0.0, %v526
        %528 = vmatmul.bf16.gmra.mxu0 %v443
        %v529 = vpop.f32.mrf.mxu0
        %v530 = vadd.f32 0.0, %v529
        %v531 = vpop.f32.mrf.mxu0
        %v532 = vadd.f32 0.0, %v531
        %533 = vmatmul.bf16.gmra.mxu0 %v446
        %v534 = vpop.f32.mrf.mxu0
        %v535 = vadd.f32 0.0, %v534
        %v536 = vpop.f32.mrf.mxu0
        %v537 = vadd.f32 0.0, %v536
        %538 = vmatmul.bf16.gmra.mxu0 %v449
        %v539 = vpop.f32.mrf.mxu0
        %v540 = vadd.f32 0.0, %v539
        %v541 = vpop.f32.mrf.mxu0
        %v542 = vadd.f32 0.0, %v541
        %543 = vdwg.mxu0
        %544 = vst [vmem:[#allocation2] sm:$0xff] 0.0
        %545 = vst [vmem:[#allocation2 + $0x108] sm:$0xff] 0.0
        %546 = vst [vmem:[#allocation2 + $0x8] sm:$0xff] %v465
        %547 = vst [vmem:[#allocation2 + $0x10] sm:$0xff] %v467
        %548 = vst [vmem:[#allocation2 + $0x18] sm:$0xff] %v470
        %549 = vst [vmem:[#allocation2 + $0x20] sm:$0xff] %v472
        %550 = vst [vmem:[#allocation2 + $0x28] sm:$0xff] %v475
        %551 = vst [vmem:[#allocation2 + $0x30] sm:$0xff] %v477
        %552 = vst [vmem:[#allocation2 + $0x38] sm:$0xff] %v480
        %553 = vst [vmem:[#allocation2 + $0x40] sm:$0xff] %v482
        %554 = vst [vmem:[#allocation2 + $0x48] sm:$0xff] %v485
        %555 = vst [vmem:[#allocation2 + $0x50] sm:$0xff] %v487
        %556 = vst [vmem:[#allocation2 + $0x58] sm:$0xff] %v490
        %557 = vst [vmem:[#allocation2 + $0x60] sm:$0xff] %v492
        %558 = vst [vmem:[#allocation2 + $0x68] sm:$0xff] %v495
        %559 = vst [vmem:[#allocation2 + $0x70] sm:$0xff] %v497
        %560 = vst [vmem:[#allocation2 + $0x78] sm:$0xff] %v500
        %561 = vst [vmem:[#allocation2 + $0x80] sm:$0xff] %v502
        %562 = vst [vmem:[#allocation2 + $0x88] sm:$0xff] %v505
        %563 = vst [vmem:[#allocation2 + $0x90] sm:$0xff] %v507
        %564 = vst [vmem:[#allocation2 + $0x98] sm:$0xff] %v510
        %565 = vst [vmem:[#allocation2 + $0xa0] sm:$0xff] %v512
        %566 = vst [vmem:[#allocation2 + $0xa8] sm:$0xff] %v515
        %567 = vst [vmem:[#allocation2 + $0xb0] sm:$0xff] %v517
        %568 = vst [vmem:[#allocation2 + $0xb8] sm:$0xff] %v520
        %569 = vst [vmem:[#allocation2 + $0xc0] sm:$0xff] %v522
        %570 = vst [vmem:[#allocation2 + $0xc8] sm:$0xff] %v525
        %571 = vst [vmem:[#allocation2 + $0xd0] sm:$0xff] %v527
        %572 = vst [vmem:[#allocation2 + $0xd8] sm:$0xff] %v530
        %573 = vst [vmem:[#allocation2 + $0xe0] sm:$0xff] %v532
        %574 = vst [vmem:[#allocation2 + $0xe8] sm:$0xff] %v535
        %575 = vst [vmem:[#allocation2 + $0xf0] sm:$0xff] %v537
        %576 = vst [vmem:[#allocation2 + $0xf8] sm:$0xff] %v540
        %577 = vst [vmem:[#allocation2 + $0x100] sm:$0xff] %v542
        %v578 = vlaneseq
        %v579 = vshrl.u32 %v578, 7
        %v580 = vadd.s32 %v579, 8
        %v581 = vadd.s32 %v579, 16
        %v582 = vadd.s32 %v579, 24
        %v583 = vadd.s32 %v579, 32
        %v584 = vadd.s32 %v579, 40
        %v585 = vadd.s32 %v579, 48
        %v586 = vadd.s32 %v579, 56
        %v587 = vadd.s32 %v579, 64
        %v588 = vadd.s32 %v579, 72
        %v589 = vadd.s32 %v579, 80
        %v590 = vadd.s32 %v579, 88
        %v591 = vadd.s32 %v579, 96
        %v592 = vadd.s32 %v579, 104
        %v593 = vadd.s32 %v579, 112
        %v594 = vadd.s32 %v579, 120
        %v595 = vadd.s32 %v579, 128
        %v596 = vadd.s32 %v579, 136
        %v597 = vadd.s32 %v579, 144
        %v598 = vadd.s32 %v579, 152
        %v599 = vadd.s32 %v579, 160
        %v600 = vadd.s32 %v579, 168
        %v601 = vadd.s32 %v579, 176
        %v602 = vadd.s32 %v579, 184
        %v603 = vadd.s32 %v579, 192
        %v604 = vadd.s32 %v579, 200
        %v605 = vadd.s32 %v579, 208
        %v606 = vadd.s32 %v579, 216
        %v607 = vadd.s32 %v579, 224
        %v608 = vadd.s32 %v579, 232
        %v609 = vadd.s32 %v579, 240
        %v610 = vadd.s32 %v579, 248
        %vm611 = vcmp.lt.s32.totalorder %v579, 0
        %v612 = vsub.s32 0, %v579
        %v613 = vsel %vm611, %v612, %v579
        %v614 = vshrl.u32 %v613, 4
        %v615 = vand.u32 %v613, 15
        %v616 = vsub.s32 0, %v615
        %v617 = vsel %vm611, %v616, %v615
        %vm618 = vcmp.lt.s32.totalorder %v580, 0
        %v619 = vsub.s32 0, %v580
        %v620 = vsel %vm618, %v619, %v580
        %v621 = vshrl.u32 %v620, 4
        %v622 = vand.u32 %v620, 15
        %v623 = vsub.s32 0, %v622
        %v624 = vsel %vm618, %v623, %v622
        %vm625 = vcmp.lt.s32.totalorder %v581, 0
        %v626 = vsub.s32 0, %v581
        %v627 = vsel %vm625, %v626, %v581
        %v628 = vshrl.u32 %v627, 4
        %v629 = vand.u32 %v627, 15
        %v630 = vsub.s32 0, %v629
        %v631 = vsel %vm625, %v630, %v629
        %vm632 = vcmp.lt.s32.totalorder %v582, 0
        %v633 = vsub.s32 0, %v582
        %v634 = vsel %vm632, %v633, %v582
        %v635 = vshrl.u32 %v634, 4
        %v636 = vand.u32 %v634, 15
        %v637 = vsub.s32 0, %v636
        %v638 = vsel %vm632, %v637, %v636
        %vm639 = vcmp.lt.s32.totalorder %v583, 0
        %v640 = vsub.s32 0, %v583
        %v641 = vsel %vm639, %v640, %v583
        %v642 = vshrl.u32 %v641, 4
        %v643 = vand.u32 %v641, 15
        %v644 = vsub.s32 0, %v643
        %v645 = vsel %vm639, %v644, %v643
        %vm646 = vcmp.lt.s32.totalorder %v584, 0
        %v647 = vsub.s32 0, %v584
        %v648 = vsel %vm646, %v647, %v584
        %v649 = vshrl.u32 %v648, 4
        %v650 = vand.u32 %v648, 15
        %v651 = vsub.s32 0, %v650
        %v652 = vsel %vm646, %v651, %v650
        %vm653 = vcmp.lt.s32.totalorder %v585, 0
        %v654 = vsub.s32 0, %v585
        %v655 = vsel %vm653, %v654, %v585
        %v656 = vshrl.u32 %v655, 4
        %v657 = vand.u32 %v655, 15
        %v658 = vsub.s32 0, %v657
        %v659 = vsel %vm653, %v658, %v657
        %vm660 = vcmp.lt.s32.totalorder %v586, 0
        %v661 = vsub.s32 0, %v586
        %v662 = vsel %vm660, %v661, %v586
        %v663 = vshrl.u32 %v662, 4
        %v664 = vand.u32 %v662, 15
        %v665 = vsub.s32 0, %v664
        %v666 = vsel %vm660, %v665, %v664
        %vm667 = vcmp.lt.s32.totalorder %v587, 0
        %v668 = vsub.s32 0, %v587
        %v669 = vsel %vm667, %v668, %v587
        %v670 = vshrl.u32 %v669, 4
        %v671 = vand.u32 %v669, 15
        %v672 = vsub.s32 0, %v671
        %v673 = vsel %vm667, %v672, %v671
        %vm674 = vcmp.lt.s32.totalorder %v588, 0
        %v675 = vsub.s32 0, %v588
        %v676 = vsel %vm674, %v675, %v588
        %v677 = vshrl.u32 %v676, 4
        %v678 = vand.u32 %v676, 15
        %v679 = vsub.s32 0, %v678
        %v680 = vsel %vm674, %v679, %v678
        %vm681 = vcmp.lt.s32.totalorder %v589, 0
        %v682 = vsub.s32 0, %v589
        %v683 = vsel %vm681, %v682, %v589
        %v684 = vshrl.u32 %v683, 4
        %v685 = vand.u32 %v683, 15
        %v686 = vsub.s32 0, %v685
        %v687 = vsel %vm681, %v686, %v685
        %vm688 = vcmp.lt.s32.totalorder %v590, 0
        %v689 = vsub.s32 0, %v590
        %v690 = vsel %vm688, %v689, %v590
        %v691 = vshrl.u32 %v690, 4
        %v692 = vand.u32 %v690, 15
        %v693 = vsub.s32 0, %v692
        %v694 = vsel %vm688, %v693, %v692
        %vm695 = vcmp.lt.s32.totalorder %v591, 0
        %v696 = vsub.s32 0, %v591
        %v697 = vsel %vm695, %v696, %v591
        %v698 = vshrl.u32 %v697, 4
        %v699 = vand.u32 %v697, 15
        %v700 = vsub.s32 0, %v699
        %v701 = vsel %vm695, %v700, %v699
        %vm702 = vcmp.lt.s32.totalorder %v592, 0
        %v703 = vsub.s32 0, %v592
        %v704 = vsel %vm702, %v703, %v592
        %v705 = vshrl.u32 %v704, 4
        %v706 = vand.u32 %v704, 15
        %v707 = vsub.s32 0, %v706
        %v708 = vsel %vm702, %v707, %v706
        %vm709 = vcmp.lt.s32.totalorder %v593, 0
        %v710 = vsub.s32 0, %v593
        %v711 = vsel %vm709, %v710, %v593
        %v712 = vshrl.u32 %v711, 4
        %v713 = vand.u32 %v711, 15
        %v714 = vsub.s32 0, %v713
        %v715 = vsel %vm709, %v714, %v713
        %vm716 = vcmp.lt.s32.totalorder %v594, 0
        %v717 = vsub.s32 0, %v594
        %v718 = vsel %vm716, %v717, %v594
        %v719 = vshrl.u32 %v718, 4
        %v720 = vand.u32 %v718, 15
        %v721 = vsub.s32 0, %v720
        %v722 = vsel %vm716, %v721, %v720
        %vm723 = vcmp.lt.s32.totalorder %v595, 0
        %v724 = vsub.s32 0, %v595
        %v725 = vsel %vm723, %v724, %v595
        %v726 = vshrl.u32 %v725, 4
        %v727 = vand.u32 %v725, 15
        %v728 = vsub.s32 0, %v727
        %v729 = vsel %vm723, %v728, %v727
        %vm730 = vcmp.lt.s32.totalorder %v596, 0
        %v731 = vsub.s32 0, %v596
        %v732 = vsel %vm730, %v731, %v596
        %v733 = vshrl.u32 %v732, 4
        %v734 = vand.u32 %v732, 15
        %v735 = vsub.s32 0, %v734
        %v736 = vsel %vm730, %v735, %v734
        %vm737 = vcmp.lt.s32.totalorder %v597, 0
        %v738 = vsub.s32 0, %v597
        %v739 = vsel %vm737, %v738, %v597
        %v740 = vshrl.u32 %v739, 4
        %v741 = vand.u32 %v739, 15
        %v742 = vsub.s32 0, %v741
        %v743 = vsel %vm737, %v742, %v741
        %vm744 = vcmp.lt.s32.totalorder %v598, 0
        %v745 = vsub.s32 0, %v598
        %v746 = vsel %vm744, %v745, %v598
        %v747 = vshrl.u32 %v746, 4
        %v748 = vand.u32 %v746, 15
        %v749 = vsub.s32 0, %v748
        %v750 = vsel %vm744, %v749, %v748
        %vm751 = vcmp.lt.s32.totalorder %v599, 0
        %v752 = vsub.s32 0, %v599
        %v753 = vsel %vm751, %v752, %v599
        %v754 = vshrl.u32 %v753, 4
        %v755 = vand.u32 %v753, 15
        %v756 = vsub.s32 0, %v755
        %v757 = vsel %vm751, %v756, %v755
        %vm758 = vcmp.lt.s32.totalorder %v600, 0
        %v759 = vsub.s32 0, %v600
        %v760 = vsel %vm758, %v759, %v600
        %v761 = vshrl.u32 %v760, 4
        %v762 = vand.u32 %v760, 15
        %v763 = vsub.s32 0, %v762
        %v764 = vsel %vm758, %v763, %v762
        %vm765 = vcmp.lt.s32.totalorder %v601, 0
        %v766 = vsub.s32 0, %v601
        %v767 = vsel %vm765, %v766, %v601
        %v768 = vshrl.u32 %v767, 4
        %v769 = vand.u32 %v767, 15
        %v770 = vsub.s32 0, %v769
        %v771 = vsel %vm765, %v770, %v769
        %vm772 = vcmp.lt.s32.totalorder %v602, 0
        %v773 = vsub.s32 0, %v602
        %v774 = vsel %vm772, %v773, %v602
        %v775 = vshrl.u32 %v774, 4
        %v776 = vand.u32 %v774, 15
        %v777 = vsub.s32 0, %v776
        %v778 = vsel %vm772, %v777, %v776
        %vm779 = vcmp.lt.s32.totalorder %v603, 0
        %v780 = vsub.s32 0, %v603
        %v781 = vsel %vm779, %v780, %v603
        %v782 = vshrl.u32 %v781, 4
        %v783 = vand.u32 %v781, 15
        %v784 = vsub.s32 0, %v783
        %v785 = vsel %vm779, %v784, %v783
        %vm786 = vcmp.lt.s32.totalorder %v604, 0
        %v787 = vsub.s32 0, %v604
        %v788 = vsel %vm786, %v787, %v604
        %v789 = vshrl.u32 %v788, 4
        %v790 = vand.u32 %v788, 15
        %v791 = vsub.s32 0, %v790
        %v792 = vsel %vm786, %v791, %v790
        %vm793 = vcmp.lt.s32.totalorder %v605, 0
        %v794 = vsub.s32 0, %v605
        %v795 = vsel %vm793, %v794, %v605
        %v796 = vshrl.u32 %v795, 4
        %v797 = vand.u32 %v795, 15
        %v798 = vsub.s32 0, %v797
        %v799 = vsel %vm793, %v798, %v797
        %vm800 = vcmp.lt.s32.totalorder %v606, 0
        %v801 = vsub.s32 0, %v606
        %v802 = vsel %vm800, %v801, %v606
        %v803 = vshrl.u32 %v802, 4
        %v804 = vand.u32 %v802, 15
        %v805 = vsub.s32 0, %v804
        %v806 = vsel %vm800, %v805, %v804
        %vm807 = vcmp.lt.s32.totalorder %v607, 0
        %v808 = vsub.s32 0, %v607
        %v809 = vsel %vm807, %v808, %v607
        %v810 = vshrl.u32 %v809, 4
        %v811 = vand.u32 %v809, 15
        %v812 = vsub.s32 0, %v811
        %v813 = vsel %vm807, %v812, %v811
        %vm814 = vcmp.lt.s32.totalorder %v608, 0
        %v815 = vsub.s32 0, %v608
        %v816 = vsel %vm814, %v815, %v608
        %v817 = vshrl.u32 %v816, 4
        %v818 = vand.u32 %v816, 15
        %v819 = vsub.s32 0, %v818
        %v820 = vsel %vm814, %v819, %v818
        %vm821 = vcmp.lt.s32.totalorder %v609, 0
        %v822 = vsub.s32 0, %v609
        %v823 = vsel %vm821, %v822, %v609
        %v824 = vshrl.u32 %v823, 4
        %v825 = vand.u32 %v823, 15
        %v826 = vsub.s32 0, %v825
        %v827 = vsel %vm821, %v826, %v825
        %vm828 = vcmp.lt.s32.totalorder %v610, 0
        %v829 = vsub.s32 0, %v610
        %v830 = vsel %vm828, %v829, %v610
        %v831 = vshrl.u32 %v830, 4
        %v832 = vand.u32 %v830, 15
        %v833 = vsub.s32 0, %v832
        %v834 = vsel %vm828, %v833, %v832
        %vm835 = vcmp.ne.s32.totalorder %v617, 0
        %vm836 = vcmp.ne.s32.totalorder %v624, 0
        %vm837 = vcmp.ne.s32.totalorder %v631, 0
        %vm838 = vcmp.ne.s32.totalorder %v638, 0
        %vm839 = vcmp.ne.s32.totalorder %v645, 0
        %vm840 = vcmp.ne.s32.totalorder %v652, 0
        %vm841 = vcmp.ne.s32.totalorder %v659, 0
        %vm842 = vcmp.ne.s32.totalorder %v666, 0
        %vm843 = vcmp.ne.s32.totalorder %v673, 0
        %vm844 = vcmp.ne.s32.totalorder %v680, 0
        %vm845 = vcmp.ne.s32.totalorder %v687, 0
        %vm846 = vcmp.ne.s32.totalorder %v694, 0
        %vm847 = vcmp.ne.s32.totalorder %v701, 0
        %vm848 = vcmp.ne.s32.totalorder %v708, 0
        %vm849 = vcmp.ne.s32.totalorder %v715, 0
        %vm850 = vcmp.ne.s32.totalorder %v722, 0
        %vm851 = vcmp.ne.s32.totalorder %v729, 0
        %vm852 = vcmp.ne.s32.totalorder %v736, 0
        %vm853 = vcmp.ne.s32.totalorder %v743, 0
        %vm854 = vcmp.ne.s32.totalorder %v750, 0
        %vm855 = vcmp.ne.s32.totalorder %v757, 0
        %vm856 = vcmp.ne.s32.totalorder %v764, 0
        %vm857 = vcmp.ne.s32.totalorder %v771, 0
        %vm858 = vcmp.ne.s32.totalorder %v778, 0
        %vm859 = vcmp.ne.s32.totalorder %v785, 0
        %vm860 = vcmp.ne.s32.totalorder %v792, 0
        %vm861 = vcmp.ne.s32.totalorder %v799, 0
        %vm862 = vcmp.ne.s32.totalorder %v806, 0
        %vm863 = vcmp.ne.s32.totalorder %v813, 0
        %vm864 = vcmp.ne.s32.totalorder %v820, 0
        %vm865 = vcmp.ne.s32.totalorder %v827, 0
        %vm866 = vcmp.ne.s32.totalorder %v834, 0
        %vm867 = vcmp.lt.s32.totalorder %v617, 0
        %vm868 = vcmp.lt.s32.totalorder %v624, 0
        %vm869 = vcmp.lt.s32.totalorder %v631, 0
        %vm870 = vcmp.lt.s32.totalorder %v638, 0
        %vm871 = vcmp.lt.s32.totalorder %v645, 0
        %vm872 = vcmp.lt.s32.totalorder %v652, 0
        %vm873 = vcmp.lt.s32.totalorder %v659, 0
        %vm874 = vcmp.lt.s32.totalorder %v666, 0
        %vm875 = vcmp.lt.s32.totalorder %v673, 0
        %vm876 = vcmp.lt.s32.totalorder %v680, 0
        %vm877 = vcmp.lt.s32.totalorder %v687, 0
        %vm878 = vcmp.lt.s32.totalorder %v694, 0
        %vm879 = vcmp.lt.s32.totalorder %v701, 0
        %vm880 = vcmp.lt.s32.totalorder %v708, 0
        %vm881 = vcmp.lt.s32.totalorder %v715, 0
        %vm882 = vcmp.lt.s32.totalorder %v722, 0
        %vm883 = vcmp.lt.s32.totalorder %v729, 0
        %vm884 = vcmp.lt.s32.totalorder %v736, 0
        %vm885 = vcmp.lt.s32.totalorder %v743, 0
        %vm886 = vcmp.lt.s32.totalorder %v750, 0
        %vm887 = vcmp.lt.s32.totalorder %v757, 0
        %vm888 = vcmp.lt.s32.totalorder %v764, 0
        %vm889 = vcmp.lt.s32.totalorder %v771, 0
        %vm890 = vcmp.lt.s32.totalorder %v778, 0
        %vm891 = vcmp.lt.s32.totalorder %v785, 0
        %vm892 = vcmp.lt.s32.totalorder %v792, 0
        %vm893 = vcmp.lt.s32.totalorder %v799, 0
        %vm894 = vcmp.lt.s32.totalorder %v806, 0
        %vm895 = vcmp.lt.s32.totalorder %v813, 0
        %vm896 = vcmp.lt.s32.totalorder %v820, 0
        %vm897 = vcmp.lt.s32.totalorder %v827, 0
        %vm898 = vcmp.lt.s32.totalorder %v834, 0
        %vm899 = vmand %vm867, %vm835
        %vm900 = vmand %vm868, %vm836
        %vm901 = vmand %vm869, %vm837
        %vm902 = vmand %vm870, %vm838
        %vm903 = vmand %vm871, %vm839
        %vm904 = vmand %vm872, %vm840
        %vm905 = vmand %vm873, %vm841
        %vm906 = vmand %vm874, %vm842
        %vm907 = vmand %vm875, %vm843
        %vm908 = vmand %vm876, %vm844
        %vm909 = vmand %vm877, %vm845
        %vm910 = vmand %vm878, %vm846
        %vm911 = vmand %vm879, %vm847
        %vm912 = vmand %vm880, %vm848
        %vm913 = vmand %vm881, %vm849
        %vm914 = vmand %vm882, %vm850
        %vm915 = vmand %vm883, %vm851
        %vm916 = vmand %vm884, %vm852
        %vm917 = vmand %vm885, %vm853
        %vm918 = vmand %vm886, %vm854
        %vm919 = vmand %vm887, %vm855
        %vm920 = vmand %vm888, %vm856
        %vm921 = vmand %vm889, %vm857
        %vm922 = vmand %vm890, %vm858
        %vm923 = vmand %vm891, %vm859
        %vm924 = vmand %vm892, %vm860
        %vm925 = vmand %vm893, %vm861
        %vm926 = vmand %vm894, %vm862
        %vm927 = vmand %vm895, %vm863
        %vm928 = vmand %vm896, %vm864
        %vm929 = vmand %vm897, %vm865
        %vm930 = vmand %vm898, %vm866
        %v931 = vadd.s32 %v617, 16
        %v932 = vadd.s32 %v624, 16
        %v933 = vadd.s32 %v631, 16
        %v934 = vadd.s32 %v638, 16
        %v935 = vadd.s32 %v645, 16
        %v936 = vadd.s32 %v652, 16
        %v937 = vadd.s32 %v659, 16
        %v938 = vadd.s32 %v666, 16
        %v939 = vadd.s32 %v673, 16
        %v940 = vadd.s32 %v680, 16
        %v941 = vadd.s32 %v687, 16
        %v942 = vadd.s32 %v694, 16
        %v943 = vadd.s32 %v701, 16
        %v944 = vadd.s32 %v708, 16
        %v945 = vadd.s32 %v715, 16
        %v946 = vadd.s32 %v722, 16
        %v947 = vadd.s32 %v729, 16
        %v948 = vadd.s32 %v736, 16
        %v949 = vadd.s32 %v743, 16
        %v950 = vadd.s32 %v750, 16
        %v951 = vadd.s32 %v757, 16
        %v952 = vadd.s32 %v764, 16
        %v953 = vadd.s32 %v771, 16
        %v954 = vadd.s32 %v778, 16
        %v955 = vadd.s32 %v785, 16
        %v956 = vadd.s32 %v792, 16
        %v957 = vadd.s32 %v799, 16
        %v958 = vadd.s32 %v806, 16
        %v959 = vadd.s32 %v813, 16
        %v960 = vadd.s32 %v820, 16
        %v961 = vadd.s32 %v827, 16
        %v962 = vadd.s32 %v834, 16
        %v963 = vsel %vm899, %v931, %v617
        %v964 = vsel %vm900, %v932, %v624
        %v965 = vsel %vm901, %v933, %v631
        %v966 = vsel %vm902, %v934, %v638
        %v967 = vsel %vm903, %v935, %v645
        %v968 = vsel %vm904, %v936, %v652
        %v969 = vsel %vm905, %v937, %v659
        %v970 = vsel %vm906, %v938, %v666
        %v971 = vsel %vm907, %v939, %v673
        %v972 = vsel %vm908, %v940, %v680
        %v973 = vsel %vm909, %v941, %v687
        %v974 = vsel %vm910, %v942, %v694
        %v975 = vsel %vm911, %v943, %v701
        %v976 = vsel %vm912, %v944, %v708
        %v977 = vsel %vm913, %v945, %v715
        %v978 = vsel %vm914, %v946, %v722
        %v979 = vsel %vm915, %v947, %v729
        %v980 = vsel %vm916, %v948, %v736
        %v981 = vsel %vm917, %v949, %v743
        %v982 = vsel %vm918, %v950, %v750
        %v983 = vsel %vm919, %v951, %v757
        %v984 = vsel %vm920, %v952, %v764
        %v985 = vsel %vm921, %v953, %v771
        %v986 = vsel %vm922, %v954, %v778
        %v987 = vsel %vm923, %v955, %v785
        %v988 = vsel %vm924, %v956, %v792
        %v989 = vsel %vm925, %v957, %v799
        %v990 = vsel %vm926, %v958, %v806
        %v991 = vsel %vm927, %v959, %v813
        %v992 = vsel %vm928, %v960, %v820
        %v993 = vsel %vm929, %v961, %v827
        %v994 = vsel %vm930, %v962, %v834
        %v995 = vld [vmem:[#allocation2 + $0x5] sm:$0xff]
        %v996 = vld [vmem:[#allocation2 + $0xd] sm:$0xff]
        %v997 = vld [vmem:[#allocation2 + $0x15] sm:$0xff]
        %v998 = vld [vmem:[#allocation2 + $0x1d] sm:$0xff]
        %v999 = vld [vmem:[#allocation2 + $0x25] sm:$0xff]
        %v1000 = vld [vmem:[#allocation2 + $0x2d] sm:$0xff]
        %v1001 = vld [vmem:[#allocation2 + $0x35] sm:$0xff]
        %v1002 = vld [vmem:[#allocation2 + $0x3d] sm:$0xff]
        %v1003 = vld [vmem:[#allocation2 + $0x45] sm:$0xff]
        %v1004 = vld [vmem:[#allocation2 + $0x4d] sm:$0xff]
        %v1005 = vld [vmem:[#allocation2 + $0x55] sm:$0xff]
        %v1006 = vld [vmem:[#allocation2 + $0x5d] sm:$0xff]
        %v1007 = vld [vmem:[#allocation2 + $0x65] sm:$0xff]
        %v1008 = vld [vmem:[#allocation2 + $0x6d] sm:$0xff]
        %v1009 = vld [vmem:[#allocation2 + $0x75] sm:$0xff]
        %v1010 = vld [vmem:[#allocation2 + $0x7d] sm:$0xff]
        %v1011 = vld [vmem:[#allocation2 + $0x85] sm:$0xff]
        %v1012 = vld [vmem:[#allocation2 + $0x8d] sm:$0xff]
        %v1013 = vld [vmem:[#allocation2 + $0x95] sm:$0xff]
        %v1014 = vld [vmem:[#allocation2 + $0x9d] sm:$0xff]
        %v1015 = vld [vmem:[#allocation2 + $0xa5] sm:$0xff]
        %v1016 = vld [vmem:[#allocation2 + $0xad] sm:$0xff]
        %v1017 = vld [vmem:[#allocation2 + $0xb5] sm:$0xff]
        %v1018 = vld [vmem:[#allocation2 + $0xbd] sm:$0xff]
        %v1019 = vld [vmem:[#allocation2 + $0xc5] sm:$0xff]
        %v1020 = vld [vmem:[#allocation2 + $0xcd] sm:$0xff]
        %v1021 = vld [vmem:[#allocation2 + $0xd5] sm:$0xff]
        %v1022 = vld [vmem:[#allocation2 + $0xdd] sm:$0xff]
        %v1023 = vld [vmem:[#allocation2 + $0xe5] sm:$0xff]
        %v1024 = vld [vmem:[#allocation2 + $0xed] sm:$0xff]
        %v1025 = vld [vmem:[#allocation2 + $0xf5] sm:$0xff]
        %v1026 = vld [vmem:[#allocation2 + $0xfd] sm:$0xff]
        %v1027 = vadd.s32 %v963, 4294967293
        %v1028 = vadd.s32 %v964, 4294967293
        %v1029 = vadd.s32 %v965, 4294967293
        %v1030 = vadd.s32 %v966, 4294967293
        %v1031 = vadd.s32 %v967, 4294967293
        %v1032 = vadd.s32 %v968, 4294967293
        %v1033 = vadd.s32 %v969, 4294967293
        %v1034 = vadd.s32 %v970, 4294967293
        %v1035 = vadd.s32 %v971, 4294967293
        %v1036 = vadd.s32 %v972, 4294967293
        %v1037 = vadd.s32 %v973, 4294967293
        %v1038 = vadd.s32 %v974, 4294967293
        %v1039 = vadd.s32 %v975, 4294967293
        %v1040 = vadd.s32 %v976, 4294967293
        %v1041 = vadd.s32 %v977, 4294967293
        %v1042 = vadd.s32 %v978, 4294967293
        %v1043 = vadd.s32 %v979, 4294967293
        %v1044 = vadd.s32 %v980, 4294967293
        %v1045 = vadd.s32 %v981, 4294967293
        %v1046 = vadd.s32 %v982, 4294967293
        %v1047 = vadd.s32 %v983, 4294967293
        %v1048 = vadd.s32 %v984, 4294967293
        %v1049 = vadd.s32 %v985, 4294967293
        %v1050 = vadd.s32 %v986, 4294967293
        %v1051 = vadd.s32 %v987, 4294967293
        %v1052 = vadd.s32 %v988, 4294967293
        %v1053 = vadd.s32 %v989, 4294967293
        %v1054 = vadd.s32 %v990, 4294967293
        %v1055 = vadd.s32 %v991, 4294967293
        %v1056 = vadd.s32 %v992, 4294967293
        %v1057 = vadd.s32 %v993, 4294967293
        %v1058 = vadd.s32 %v994, 4294967293
        %vm1059 = vcmp.ge.s32.totalorder %v1027, 0
        %vm1060 = vcmp.ge.s32.totalorder %v1028, 0
        %vm1061 = vcmp.ge.s32.totalorder %v1029, 0
        %vm1062 = vcmp.ge.s32.totalorder %v1030, 0
        %vm1063 = vcmp.ge.s32.totalorder %v1031, 0
        %vm1064 = vcmp.ge.s32.totalorder %v1032, 0
        %vm1065 = vcmp.ge.s32.totalorder %v1033, 0
        %vm1066 = vcmp.ge.s32.totalorder %v1034, 0
        %vm1067 = vcmp.ge.s32.totalorder %v1035, 0
        %vm1068 = vcmp.ge.s32.totalorder %v1036, 0
        %vm1069 = vcmp.ge.s32.totalorder %v1037, 0
        %vm1070 = vcmp.ge.s32.totalorder %v1038, 0
        %vm1071 = vcmp.ge.s32.totalorder %v1039, 0
        %vm1072 = vcmp.ge.s32.totalorder %v1040, 0
        %vm1073 = vcmp.ge.s32.totalorder %v1041, 0
        %vm1074 = vcmp.ge.s32.totalorder %v1042, 0
        %vm1075 = vcmp.ge.s32.totalorder %v1043, 0
        %vm1076 = vcmp.ge.s32.totalorder %v1044, 0
        %vm1077 = vcmp.ge.s32.totalorder %v1045, 0
        %vm1078 = vcmp.ge.s32.totalorder %v1046, 0
        %vm1079 = vcmp.ge.s32.totalorder %v1047, 0
        %vm1080 = vcmp.ge.s32.totalorder %v1048, 0
        %vm1081 = vcmp.ge.s32.totalorder %v1049, 0
        %vm1082 = vcmp.ge.s32.totalorder %v1050, 0
        %vm1083 = vcmp.ge.s32.totalorder %v1051, 0
        %vm1084 = vcmp.ge.s32.totalorder %v1052, 0
        %vm1085 = vcmp.ge.s32.totalorder %v1053, 0
        %vm1086 = vcmp.ge.s32.totalorder %v1054, 0
        %vm1087 = vcmp.ge.s32.totalorder %v1055, 0
        %vm1088 = vcmp.ge.s32.totalorder %v1056, 0
        %vm1089 = vcmp.ge.s32.totalorder %v1057, 0
        %vm1090 = vcmp.ge.s32.totalorder %v1058, 0
        %vm1091 = vcmp.lt.s32.totalorder %v1027, 16
        %vm1092 = vcmp.lt.s32.totalorder %v1028, 16
        %vm1093 = vcmp.lt.s32.totalorder %v1029, 16
        %vm1094 = vcmp.lt.s32.totalorder %v1030, 16
        %vm1095 = vcmp.lt.s32.totalorder %v1031, 16
        %vm1096 = vcmp.lt.s32.totalorder %v1032, 16
        %vm1097 = vcmp.lt.s32.totalorder %v1033, 16
        %vm1098 = vcmp.lt.s32.totalorder %v1034, 16
        %vm1099 = vcmp.lt.s32.totalorder %v1035, 16
        %vm1100 = vcmp.lt.s32.totalorder %v1036, 16
        %vm1101 = vcmp.lt.s32.totalorder %v1037, 16
        %vm1102 = vcmp.lt.s32.totalorder %v1038, 16
        %vm1103 = vcmp.lt.s32.totalorder %v1039, 16
        %vm1104 = vcmp.lt.s32.totalorder %v1040, 16
        %vm1105 = vcmp.lt.s32.totalorder %v1041, 16
        %vm1106 = vcmp.lt.s32.totalorder %v1042, 16
        %vm1107 = vcmp.lt.s32.totalorder %v1043, 16
        %vm1108 = vcmp.lt.s32.totalorder %v1044, 16
        %vm1109 = vcmp.lt.s32.totalorder %v1045, 16
        %vm1110 = vcmp.lt.s32.totalorder %v1046, 16
        %vm1111 = vcmp.lt.s32.totalorder %v1047, 16
        %vm1112 = vcmp.lt.s32.totalorder %v1048, 16
        %vm1113 = vcmp.lt.s32.totalorder %v1049, 16
        %vm1114 = vcmp.lt.s32.totalorder %v1050, 16
        %vm1115 = vcmp.lt.s32.totalorder %v1051, 16
        %vm1116 = vcmp.lt.s32.totalorder %v1052, 16
        %vm1117 = vcmp.lt.s32.totalorder %v1053, 16
        %vm1118 = vcmp.lt.s32.totalorder %v1054, 16
        %vm1119 = vcmp.lt.s32.totalorder %v1055, 16
        %vm1120 = vcmp.lt.s32.totalorder %v1056, 16
        %vm1121 = vcmp.lt.s32.totalorder %v1057, 16
        %vm1122 = vcmp.lt.s32.totalorder %v1058, 16
        %vm1123 = vmand %vm1059, %vm1091
        %vm1124 = vmand %vm1060, %vm1092
        %vm1125 = vmand %vm1061, %vm1093
        %vm1126 = vmand %vm1062, %vm1094
        %vm1127 = vmand %vm1063, %vm1095
        %vm1128 = vmand %vm1064, %vm1096
        %vm1129 = vmand %vm1065, %vm1097
        %vm1130 = vmand %vm1066, %vm1098
        %vm1131 = vmand %vm1067, %vm1099
        %vm1132 = vmand %vm1068, %vm1100
        %vm1133 = vmand %vm1069, %vm1101
        %vm1134 = vmand %vm1070, %vm1102
        %vm1135 = vmand %vm1071, %vm1103
        %vm1136 = vmand %vm1072, %vm1104
        %vm1137 = vmand %vm1073, %vm1105
        %vm1138 = vmand %vm1074, %vm1106
        %vm1139 = vmand %vm1075, %vm1107
        %vm1140 = vmand %vm1076, %vm1108
        %vm1141 = vmand %vm1077, %vm1109
        %vm1142 = vmand %vm1078, %vm1110
        %vm1143 = vmand %vm1079, %vm1111
        %vm1144 = vmand %vm1080, %vm1112
        %vm1145 = vmand %vm1081, %vm1113
        %vm1146 = vmand %vm1082, %vm1114
        %vm1147 = vmand %vm1083, %vm1115
        %vm1148 = vmand %vm1084, %vm1116
        %vm1149 = vmand %vm1085, %vm1117
        %vm1150 = vmand %vm1086, %vm1118
        %vm1151 = vmand %vm1087, %vm1119
        %vm1152 = vmand %vm1088, %vm1120
        %vm1153 = vmand %vm1089, %vm1121
        %vm1154 = vmand %vm1090, %vm1122
        %v1155 = vsel %vm1123, 1, 0
        %v1156 = vsel %vm1124, 1, 0
        %v1157 = vsel %vm1125, 1, 0
        %v1158 = vsel %vm1126, 1, 0
        %v1159 = vsel %vm1127, 1, 0
        %v1160 = vsel %vm1128, 1, 0
        %v1161 = vsel %vm1129, 1, 0
        %v1162 = vsel %vm1130, 1, 0
        %v1163 = vsel %vm1131, 1, 0
        %v1164 = vsel %vm1132, 1, 0
        %v1165 = vsel %vm1133, 1, 0
        %v1166 = vsel %vm1134, 1, 0
        %v1167 = vsel %vm1135, 1, 0
        %v1168 = vsel %vm1136, 1, 0
        %v1169 = vsel %vm1137, 1, 0
        %v1170 = vsel %vm1138, 1, 0
        %v1171 = vsel %vm1139, 1, 0
        %v1172 = vsel %vm1140, 1, 0
        %v1173 = vsel %vm1141, 1, 0
        %v1174 = vsel %vm1142, 1, 0
        %v1175 = vsel %vm1143, 1, 0
        %v1176 = vsel %vm1144, 1, 0
        %v1177 = vsel %vm1145, 1, 0
        %v1178 = vsel %vm1146, 1, 0
        %v1179 = vsel %vm1147, 1, 0
        %v1180 = vsel %vm1148, 1, 0
        %v1181 = vsel %vm1149, 1, 0
        %v1182 = vsel %vm1150, 1, 0
        %v1183 = vsel %vm1151, 1, 0
        %v1184 = vsel %vm1152, 1, 0
        %v1185 = vsel %vm1153, 1, 0
        %v1186 = vsel %vm1154, 1, 0
        %v1187 = vcvt.s32.f32 %v1155
        %v1188 = vcvt.s32.f32 %v1156
        %v1189 = vcvt.s32.f32 %v1157
        %v1190 = vcvt.s32.f32 %v1158
        %v1191 = vcvt.s32.f32 %v1159
        %v1192 = vcvt.s32.f32 %v1160
        %v1193 = vcvt.s32.f32 %v1161
        %v1194 = vcvt.s32.f32 %v1162
        %v1195 = vcvt.s32.f32 %v1163
        %v1196 = vcvt.s32.f32 %v1164
        %v1197 = vcvt.s32.f32 %v1165
        %v1198 = vcvt.s32.f32 %v1166
        %v1199 = vcvt.s32.f32 %v1167
        %v1200 = vcvt.s32.f32 %v1168
        %v1201 = vcvt.s32.f32 %v1169
        %v1202 = vcvt.s32.f32 %v1170
        %v1203 = vcvt.s32.f32 %v1171
        %v1204 = vcvt.s32.f32 %v1172
        %v1205 = vcvt.s32.f32 %v1173
        %v1206 = vcvt.s32.f32 %v1174
        %v1207 = vcvt.s32.f32 %v1175
        %v1208 = vcvt.s32.f32 %v1176
        %v1209 = vcvt.s32.f32 %v1177
        %v1210 = vcvt.s32.f32 %v1178
        %v1211 = vcvt.s32.f32 %v1179
        %v1212 = vcvt.s32.f32 %v1180
        %v1213 = vcvt.s32.f32 %v1181
        %v1214 = vcvt.s32.f32 %v1182
        %v1215 = vcvt.s32.f32 %v1183
        %v1216 = vcvt.s32.f32 %v1184
        %v1217 = vcvt.s32.f32 %v1185
        %v1218 = vcvt.s32.f32 %v1186
        %v1219 = vmul.f32 %v995, %v1187
        %v1220 = vmul.f32 %v996, %v1188
        %v1221 = vmul.f32 %v997, %v1189
        %v1222 = vmul.f32 %v998, %v1190
        %v1223 = vmul.f32 %v999, %v1191
        %v1224 = vmul.f32 %v1000, %v1192
        %v1225 = vmul.f32 %v1001, %v1193
        %v1226 = vmul.f32 %v1002, %v1194
        %v1227 = vmul.f32 %v1003, %v1195
        %v1228 = vmul.f32 %v1004, %v1196
        %v1229 = vmul.f32 %v1005, %v1197
        %v1230 = vmul.f32 %v1006, %v1198
        %v1231 = vmul.f32 %v1007, %v1199
        %v1232 = vmul.f32 %v1008, %v1200
        %v1233 = vmul.f32 %v1009, %v1201
        %v1234 = vmul.f32 %v1010, %v1202
        %v1235 = vmul.f32 %v1011, %v1203
        %v1236 = vmul.f32 %v1012, %v1204
        %v1237 = vmul.f32 %v1013, %v1205
        %v1238 = vmul.f32 %v1014, %v1206
        %v1239 = vmul.f32 %v1015, %v1207
        %v1240 = vmul.f32 %v1016, %v1208
        %v1241 = vmul.f32 %v1017, %v1209
        %v1242 = vmul.f32 %v1018, %v1210
        %v1243 = vmul.f32 %v1019, %v1211
        %v1244 = vmul.f32 %v1020, %v1212
        %v1245 = vmul.f32 %v1021, %v1213
        %v1246 = vmul.f32 %v1022, %v1214
        %v1247 = vmul.f32 %v1023, %v1215
        %v1248 = vmul.f32 %v1024, %v1216
        %v1249 = vmul.f32 %v1025, %v1217
        %v1250 = vmul.f32 %v1026, %v1218
        %v1251 = vpack.c.bf16 %v1219, %v1219
        %v1252 = vpack.c.bf16 %v1220, %v1220
        %v1253 = vpack.c.bf16 %v1221, %v1221
        %v1254 = vpack.c.bf16 %v1222, %v1222
        %v1255 = vpack.c.bf16 %v1223, %v1223
        %v1256 = vpack.c.bf16 %v1224, %v1224
        %v1257 = vpack.c.bf16 %v1225, %v1225
        %v1258 = vpack.c.bf16 %v1226, %v1226
        %v1259 = vpack.c.bf16 %v1227, %v1227
        %v1260 = vpack.c.bf16 %v1228, %v1228
        %v1261 = vpack.c.bf16 %v1229, %v1229
        %v1262 = vpack.c.bf16 %v1230, %v1230
        %v1263 = vpack.c.bf16 %v1231, %v1231
        %v1264 = vpack.c.bf16 %v1232, %v1232
        %v1265 = vpack.c.bf16 %v1233, %v1233
        %v1266 = vpack.c.bf16 %v1234, %v1234
        %v1267 = vpack.c.bf16 %v1235, %v1235
        %v1268 = vpack.c.bf16 %v1236, %v1236
        %v1269 = vpack.c.bf16 %v1237, %v1237
        %v1270 = vpack.c.bf16 %v1238, %v1238
        %v1271 = vpack.c.bf16 %v1239, %v1239
        %v1272 = vpack.c.bf16 %v1240, %v1240
        %v1273 = vpack.c.bf16 %v1241, %v1241
        %v1274 = vpack.c.bf16 %v1242, %v1242
        %v1275 = vpack.c.bf16 %v1243, %v1243
        %v1276 = vpack.c.bf16 %v1244, %v1244
        %v1277 = vpack.c.bf16 %v1245, %v1245
        %v1278 = vpack.c.bf16 %v1246, %v1246
        %v1279 = vpack.c.bf16 %v1247, %v1247
        %v1280 = vpack.c.bf16 %v1248, %v1248
        %v1281 = vpack.c.bf16 %v1249, %v1249
        %v1282 = vpack.c.bf16 %v1250, %v1250
        %v1283 = vld [vmem:[#allocation2 + $0x6] sm:$0xff]
        %v1284 = vld [vmem:[#allocation2 + $0xe] sm:$0xff]
        %v1285 = vld [vmem:[#allocation2 + $0x16] sm:$0xff]
        %v1286 = vld [vmem:[#allocation2 + $0x1e] sm:$0xff]
        %v1287 = vld [vmem:[#allocation2 + $0x26] sm:$0xff]
        %v1288 = vld [vmem:[#allocation2 + $0x2e] sm:$0xff]
        %v1289 = vld [vmem:[#allocation2 + $0x36] sm:$0xff]
        %v1290 = vld [vmem:[#allocation2 + $0x3e] sm:$0xff]
        %v1291 = vld [vmem:[#allocation2 + $0x46] sm:$0xff]
        %v1292 = vld [vmem:[#allocation2 + $0x4e] sm:$0xff]
        %v1293 = vld [vmem:[#allocation2 + $0x56] sm:$0xff]
        %v1294 = vld [vmem:[#allocation2 + $0x5e] sm:$0xff]
        %v1295 = vld [vmem:[#allocation2 + $0x66] sm:$0xff]
        %v1296 = vld [vmem:[#allocation2 + $0x6e] sm:$0xff]
        %v1297 = vld [vmem:[#allocation2 + $0x76] sm:$0xff]
        %v1298 = vld [vmem:[#allocation2 + $0x7e] sm:$0xff]
        %v1299 = vld [vmem:[#allocation2 + $0x86] sm:$0xff]
        %v1300 = vld [vmem:[#allocation2 + $0x8e] sm:$0xff]
        %v1301 = vld [vmem:[#allocation2 + $0x96] sm:$0xff]
        %v1302 = vld [vmem:[#allocation2 + $0x9e] sm:$0xff]
        %v1303 = vld [vmem:[#allocation2 + $0xa6] sm:$0xff]
        %v1304 = vld [vmem:[#allocation2 + $0xae] sm:$0xff]
        %v1305 = vld [vmem:[#allocation2 + $0xb6] sm:$0xff]
        %v1306 = vld [vmem:[#allocation2 + $0xbe] sm:$0xff]
        %v1307 = vld [vmem:[#allocation2 + $0xc6] sm:$0xff]
        %v1308 = vld [vmem:[#allocation2 + $0xce] sm:$0xff]
        %v1309 = vld [vmem:[#allocation2 + $0xd6] sm:$0xff]
        %v1310 = vld [vmem:[#allocation2 + $0xde] sm:$0xff]
        %v1311 = vld [vmem:[#allocation2 + $0xe6] sm:$0xff]
        %v1312 = vld [vmem:[#allocation2 + $0xee] sm:$0xff]
        %v1313 = vld [vmem:[#allocation2 + $0xf6] sm:$0xff]
        %v1314 = vld [vmem:[#allocation2 + $0xfe] sm:$0xff]
        %v1315 = vadd.s32 %v963, 4294967294
        %v1316 = vadd.s32 %v964, 4294967294
        %v1317 = vadd.s32 %v965, 4294967294
        %v1318 = vadd.s32 %v966, 4294967294
        %v1319 = vadd.s32 %v967, 4294967294
        %v1320 = vadd.s32 %v968, 4294967294
        %v1321 = vadd.s32 %v969, 4294967294
        %v1322 = vadd.s32 %v970, 4294967294
        %v1323 = vadd.s32 %v971, 4294967294
        %v1324 = vadd.s32 %v972, 4294967294
        %v1325 = vadd.s32 %v973, 4294967294
        %v1326 = vadd.s32 %v974, 4294967294
        %v1327 = vadd.s32 %v975, 4294967294
        %v1328 = vadd.s32 %v976, 4294967294
        %v1329 = vadd.s32 %v977, 4294967294
        %v1330 = vadd.s32 %v978, 4294967294
        %v1331 = vadd.s32 %v979, 4294967294
        %v1332 = vadd.s32 %v980, 4294967294
        %v1333 = vadd.s32 %v981, 4294967294
        %v1334 = vadd.s32 %v982, 4294967294
        %v1335 = vadd.s32 %v983, 4294967294
        %v1336 = vadd.s32 %v984, 4294967294
        %v1337 = vadd.s32 %v985, 4294967294
        %v1338 = vadd.s32 %v986, 4294967294
        %v1339 = vadd.s32 %v987, 4294967294
        %v1340 = vadd.s32 %v988, 4294967294
        %v1341 = vadd.s32 %v989, 4294967294
        %v1342 = vadd.s32 %v990, 4294967294
        %v1343 = vadd.s32 %v991, 4294967294
        %v1344 = vadd.s32 %v992, 4294967294
        %v1345 = vadd.s32 %v993, 4294967294
        %v1346 = vadd.s32 %v994, 4294967294
        %vm1347 = vcmp.ge.s32.totalorder %v1315, 0
        %vm1348 = vcmp.ge.s32.totalorder %v1316, 0
        %vm1349 = vcmp.ge.s32.totalorder %v1317, 0
        %vm1350 = vcmp.ge.s32.totalorder %v1318, 0
        %vm1351 = vcmp.ge.s32.totalorder %v1319, 0
        %vm1352 = vcmp.ge.s32.totalorder %v1320, 0
        %vm1353 = vcmp.ge.s32.totalorder %v1321, 0
        %vm1354 = vcmp.ge.s32.totalorder %v1322, 0
        %vm1355 = vcmp.ge.s32.totalorder %v1323, 0
        %vm1356 = vcmp.ge.s32.totalorder %v1324, 0
        %vm1357 = vcmp.ge.s32.totalorder %v1325, 0
        %vm1358 = vcmp.ge.s32.totalorder %v1326, 0
        %vm1359 = vcmp.ge.s32.totalorder %v1327, 0
        %vm1360 = vcmp.ge.s32.totalorder %v1328, 0
        %vm1361 = vcmp.ge.s32.totalorder %v1329, 0
        %vm1362 = vcmp.ge.s32.totalorder %v1330, 0
        %vm1363 = vcmp.ge.s32.totalorder %v1331, 0
        %vm1364 = vcmp.ge.s32.totalorder %v1332, 0
        %vm1365 = vcmp.ge.s32.totalorder %v1333, 0
        %vm1366 = vcmp.ge.s32.totalorder %v1334, 0
        %vm1367 = vcmp.ge.s32.totalorder %v1335, 0
        %vm1368 = vcmp.ge.s32.totalorder %v1336, 0
        %vm1369 = vcmp.ge.s32.totalorder %v1337, 0
        %vm1370 = vcmp.ge.s32.totalorder %v1338, 0
        %vm1371 = vcmp.ge.s32.totalorder %v1339, 0
        %vm1372 = vcmp.ge.s32.totalorder %v1340, 0
        %vm1373 = vcmp.ge.s32.totalorder %v1341, 0
        %vm1374 = vcmp.ge.s32.totalorder %v1342, 0
        %vm1375 = vcmp.ge.s32.totalorder %v1343, 0
        %vm1376 = vcmp.ge.s32.totalorder %v1344, 0
        %vm1377 = vcmp.ge.s32.totalorder %v1345, 0
        %vm1378 = vcmp.ge.s32.totalorder %v1346, 0
        %vm1379 = vcmp.lt.s32.totalorder %v1315, 16
        %vm1380 = vcmp.lt.s32.totalorder %v1316, 16
        %vm1381 = vcmp.lt.s32.totalorder %v1317, 16
        %vm1382 = vcmp.lt.s32.totalorder %v1318, 16
        %vm1383 = vcmp.lt.s32.totalorder %v1319, 16
        %vm1384 = vcmp.lt.s32.totalorder %v1320, 16
        %vm1385 = vcmp.lt.s32.totalorder %v1321, 16
        %vm1386 = vcmp.lt.s32.totalorder %v1322, 16
        %vm1387 = vcmp.lt.s32.totalorder %v1323, 16
        %vm1388 = vcmp.lt.s32.totalorder %v1324, 16
        %vm1389 = vcmp.lt.s32.totalorder %v1325, 16
        %vm1390 = vcmp.lt.s32.totalorder %v1326, 16
        %vm1391 = vcmp.lt.s32.totalorder %v1327, 16
        %vm1392 = vcmp.lt.s32.totalorder %v1328, 16
        %vm1393 = vcmp.lt.s32.totalorder %v1329, 16
        %vm1394 = vcmp.lt.s32.totalorder %v1330, 16
        %vm1395 = vcmp.lt.s32.totalorder %v1331, 16
        %vm1396 = vcmp.lt.s32.totalorder %v1332, 16
        %vm1397 = vcmp.lt.s32.totalorder %v1333, 16
        %vm1398 = vcmp.lt.s32.totalorder %v1334, 16
        %vm1399 = vcmp.lt.s32.totalorder %v1335, 16
        %vm1400 = vcmp.lt.s32.totalorder %v1336, 16
        %vm1401 = vcmp.lt.s32.totalorder %v1337, 16
        %vm1402 = vcmp.lt.s32.totalorder %v1338, 16
        %vm1403 = vcmp.lt.s32.totalorder %v1339, 16
        %vm1404 = vcmp.lt.s32.totalorder %v1340, 16
        %vm1405 = vcmp.lt.s32.totalorder %v1341, 16
        %vm1406 = vcmp.lt.s32.totalorder %v1342, 16
        %vm1407 = vcmp.lt.s32.totalorder %v1343, 16
        %vm1408 = vcmp.lt.s32.totalorder %v1344, 16
        %vm1409 = vcmp.lt.s32.totalorder %v1345, 16
        %vm1410 = vcmp.lt.s32.totalorder %v1346, 16
        %vm1411 = vmand %vm1347, %vm1379
        %vm1412 = vmand %vm1348, %vm1380
        %vm1413 = vmand %vm1349, %vm1381
        %vm1414 = vmand %vm1350, %vm1382
        %vm1415 = vmand %vm1351, %vm1383
        %vm1416 = vmand %vm1352, %vm1384
        %vm1417 = vmand %vm1353, %vm1385
        %vm1418 = vmand %vm1354, %vm1386
        %vm1419 = vmand %vm1355, %vm1387
        %vm1420 = vmand %vm1356, %vm1388
        %vm1421 = vmand %vm1357, %vm1389
        %vm1422 = vmand %vm1358, %vm1390
        %vm1423 = vmand %vm1359, %vm1391
        %vm1424 = vmand %vm1360, %vm1392
        %vm1425 = vmand %vm1361, %vm1393
        %vm1426 = vmand %vm1362, %vm1394
        %vm1427 = vmand %vm1363, %vm1395
        %vm1428 = vmand %vm1364, %vm1396
        %vm1429 = vmand %vm1365, %vm1397
        %vm1430 = vmand %vm1366, %vm1398
        %vm1431 = vmand %vm1367, %vm1399
        %vm1432 = vmand %vm1368, %vm1400
        %vm1433 = vmand %vm1369, %vm1401
        %vm1434 = vmand %vm1370, %vm1402
        %vm1435 = vmand %vm1371, %vm1403
        %vm1436 = vmand %vm1372, %vm1404
        %vm1437 = vmand %vm1373, %vm1405
        %vm1438 = vmand %vm1374, %vm1406
        %vm1439 = vmand %vm1375, %vm1407
        %vm1440 = vmand %vm1376, %vm1408
        %vm1441 = vmand %vm1377, %vm1409
        %vm1442 = vmand %vm1378, %vm1410
        %v1443 = vsel %vm1411, 1, 0
        %v1444 = vsel %vm1412, 1, 0
        %v1445 = vsel %vm1413, 1, 0
        %v1446 = vsel %vm1414, 1, 0
        %v1447 = vsel %vm1415, 1, 0
        %v1448 = vsel %vm1416, 1, 0
        %v1449 = vsel %vm1417, 1, 0
        %v1450 = vsel %vm1418, 1, 0
        %v1451 = vsel %vm1419, 1, 0
        %v1452 = vsel %vm1420, 1, 0
        %v1453 = vsel %vm1421, 1, 0
        %v1454 = vsel %vm1422, 1, 0
        %v1455 = vsel %vm1423, 1, 0
        %v1456 = vsel %vm1424, 1, 0
        %v1457 = vsel %vm1425, 1, 0
        %v1458 = vsel %vm1426, 1, 0
        %v1459 = vsel %vm1427, 1, 0
        %v1460 = vsel %vm1428, 1, 0
        %v1461 = vsel %vm1429, 1, 0
        %v1462 = vsel %vm1430, 1, 0
        %v1463 = vsel %vm1431, 1, 0
        %v1464 = vsel %vm1432, 1, 0
        %v1465 = vsel %vm1433, 1, 0
        %v1466 = vsel %vm1434, 1, 0
        %v1467 = vsel %vm1435, 1, 0
        %v1468 = vsel %vm1436, 1, 0
        %v1469 = vsel %vm1437, 1, 0
        %v1470 = vsel %vm1438, 1, 0
        %v1471 = vsel %vm1439, 1, 0
        %v1472 = vsel %vm1440, 1, 0
        %v1473 = vsel %vm1441, 1, 0
        %v1474 = vsel %vm1442, 1, 0
        %v1475 = vcvt.s32.f32 %v1443
        %v1476 = vcvt.s32.f32 %v1444
        %v1477 = vcvt.s32.f32 %v1445
        %v1478 = vcvt.s32.f32 %v1446
        %v1479 = vcvt.s32.f32 %v1447
        %v1480 = vcvt.s32.f32 %v1448
        %v1481 = vcvt.s32.f32 %v1449
        %v1482 = vcvt.s32.f32 %v1450
        %v1483 = vcvt.s32.f32 %v1451
        %v1484 = vcvt.s32.f32 %v1452
        %v1485 = vcvt.s32.f32 %v1453
        %v1486 = vcvt.s32.f32 %v1454
        %v1487 = vcvt.s32.f32 %v1455
        %v1488 = vcvt.s32.f32 %v1456
        %v1489 = vcvt.s32.f32 %v1457
        %v1490 = vcvt.s32.f32 %v1458
        %v1491 = vcvt.s32.f32 %v1459
        %v1492 = vcvt.s32.f32 %v1460
        %v1493 = vcvt.s32.f32 %v1461
        %v1494 = vcvt.s32.f32 %v1462
        %v1495 = vcvt.s32.f32 %v1463
        %v1496 = vcvt.s32.f32 %v1464
        %v1497 = vcvt.s32.f32 %v1465
        %v1498 = vcvt.s32.f32 %v1466
        %v1499 = vcvt.s32.f32 %v1467
        %v1500 = vcvt.s32.f32 %v1468
        %v1501 = vcvt.s32.f32 %v1469
        %v1502 = vcvt.s32.f32 %v1470
        %v1503 = vcvt.s32.f32 %v1471
        %v1504 = vcvt.s32.f32 %v1472
        %v1505 = vcvt.s32.f32 %v1473
        %v1506 = vcvt.s32.f32 %v1474
        %v1507 = vmul.f32 %v1283, %v1475
        %v1508 = vmul.f32 %v1284, %v1476
        %v1509 = vmul.f32 %v1285, %v1477
        %v1510 = vmul.f32 %v1286, %v1478
        %v1511 = vmul.f32 %v1287, %v1479
        %v1512 = vmul.f32 %v1288, %v1480
        %v1513 = vmul.f32 %v1289, %v1481
        %v1514 = vmul.f32 %v1290, %v1482
        %v1515 = vmul.f32 %v1291, %v1483
        %v1516 = vmul.f32 %v1292, %v1484
        %v1517 = vmul.f32 %v1293, %v1485
        %v1518 = vmul.f32 %v1294, %v1486
        %v1519 = vmul.f32 %v1295, %v1487
        %v1520 = vmul.f32 %v1296, %v1488
        %v1521 = vmul.f32 %v1297, %v1489
        %v1522 = vmul.f32 %v1298, %v1490
        %v1523 = vmul.f32 %v1299, %v1491
        %v1524 = vmul.f32 %v1300, %v1492
        %v1525 = vmul.f32 %v1301, %v1493
        %v1526 = vmul.f32 %v1302, %v1494
        %v1527 = vmul.f32 %v1303, %v1495
        %v1528 = vmul.f32 %v1304, %v1496
        %v1529 = vmul.f32 %v1305, %v1497
        %v1530 = vmul.f32 %v1306, %v1498
        %v1531 = vmul.f32 %v1307, %v1499
        %v1532 = vmul.f32 %v1308, %v1500
        %v1533 = vmul.f32 %v1309, %v1501
        %v1534 = vmul.f32 %v1310, %v1502
        %v1535 = vmul.f32 %v1311, %v1503
        %v1536 = vmul.f32 %v1312, %v1504
        %v1537 = vmul.f32 %v1313, %v1505
        %v1538 = vmul.f32 %v1314, %v1506
        %v1539 = vpack.c.bf16 %v1507, %v1507
        %v1540 = vpack.c.bf16 %v1508, %v1508
        %v1541 = vpack.c.bf16 %v1509, %v1509
        %v1542 = vpack.c.bf16 %v1510, %v1510
        %v1543 = vpack.c.bf16 %v1511, %v1511
        %v1544 = vpack.c.bf16 %v1512, %v1512
        %v1545 = vpack.c.bf16 %v1513, %v1513
        %v1546 = vpack.c.bf16 %v1514, %v1514
        %v1547 = vpack.c.bf16 %v1515, %v1515
        %v1548 = vpack.c.bf16 %v1516, %v1516
        %v1549 = vpack.c.bf16 %v1517, %v1517
        %v1550 = vpack.c.bf16 %v1518, %v1518
        %v1551 = vpack.c.bf16 %v1519, %v1519
        %v1552 = vpack.c.bf16 %v1520, %v1520
        %v1553 = vpack.c.bf16 %v1521, %v1521
        %v1554 = vpack.c.bf16 %v1522, %v1522
        %v1555 = vpack.c.bf16 %v1523, %v1523
        %v1556 = vpack.c.bf16 %v1524, %v1524
        %v1557 = vpack.c.bf16 %v1525, %v1525
        %v1558 = vpack.c.bf16 %v1526, %v1526
        %v1559 = vpack.c.bf16 %v1527, %v1527
        %v1560 = vpack.c.bf16 %v1528, %v1528
        %v1561 = vpack.c.bf16 %v1529, %v1529
        %v1562 = vpack.c.bf16 %v1530, %v1530
        %v1563 = vpack.c.bf16 %v1531, %v1531
        %v1564 = vpack.c.bf16 %v1532, %v1532
        %v1565 = vpack.c.bf16 %v1533, %v1533
        %v1566 = vpack.c.bf16 %v1534, %v1534
        %v1567 = vpack.c.bf16 %v1535, %v1535
        %v1568 = vpack.c.bf16 %v1536, %v1536
        %v1569 = vpack.c.bf16 %v1537, %v1537
        %v1570 = vpack.c.bf16 %v1538, %v1538
        %v1571 = vld [vmem:[#allocation2 + $0x7] sm:$0xff]
        %v1572 = vld [vmem:[#allocation2 + $0xf] sm:$0xff]
        %v1573 = vld [vmem:[#allocation2 + $0x17] sm:$0xff]
        %v1574 = vld [vmem:[#allocation2 + $0x1f] sm:$0xff]
        %v1575 = vld [vmem:[#allocation2 + $0x27] sm:$0xff]
        %v1576 = vld [vmem:[#allocation2 + $0x2f] sm:$0xff]
        %v1577 = vld [vmem:[#allocation2 + $0x37] sm:$0xff]
        %v1578 = vld [vmem:[#allocation2 + $0x3f] sm:$0xff]
        %v1579 = vld [vmem:[#allocation2 + $0x47] sm:$0xff]
        %v1580 = vld [vmem:[#allocation2 + $0x4f] sm:$0xff]
        %v1581 = vld [vmem:[#allocation2 + $0x57] sm:$0xff]
        %v1582 = vld [vmem:[#allocation2 + $0x5f] sm:$0xff]
        %v1583 = vld [vmem:[#allocation2 + $0x67] sm:$0xff]
        %v1584 = vld [vmem:[#allocation2 + $0x6f] sm:$0xff]
        %v1585 = vld [vmem:[#allocation2 + $0x77] sm:$0xff]
        %v1586 = vld [vmem:[#allocation2 + $0x7f] sm:$0xff]
        %v1587 = vld [vmem:[#allocation2 + $0x87] sm:$0xff]
        %v1588 = vld [vmem:[#allocation2 + $0x8f] sm:$0xff]
        %v1589 = vld [vmem:[#allocation2 + $0x97] sm:$0xff]
        %v1590 = vld [vmem:[#allocation2 + $0x9f] sm:$0xff]
        %v1591 = vld [vmem:[#allocation2 + $0xa7] sm:$0xff]
        %v1592 = vld [vmem:[#allocation2 + $0xaf] sm:$0xff]
        %v1593 = vld [vmem:[#allocation2 + $0xb7] sm:$0xff]
        %v1594 = vld [vmem:[#allocation2 + $0xbf] sm:$0xff]
        %v1595 = vld [vmem:[#allocation2 + $0xc7] sm:$0xff]
        %v1596 = vld [vmem:[#allocation2 + $0xcf] sm:$0xff]
        %v1597 = vld [vmem:[#allocation2 + $0xd7] sm:$0xff]
        %v1598 = vld [vmem:[#allocation2 + $0xdf] sm:$0xff]
        %v1599 = vld [vmem:[#allocation2 + $0xe7] sm:$0xff]
        %v1600 = vld [vmem:[#allocation2 + $0xef] sm:$0xff]
        %v1601 = vld [vmem:[#allocation2 + $0xf7] sm:$0xff]
        %v1602 = vld [vmem:[#allocation2 + $0xff] sm:$0xff]
        %v1603 = vadd.s32 %v963, 4294967295
        %v1604 = vadd.s32 %v964, 4294967295
        %v1605 = vadd.s32 %v965, 4294967295
        %v1606 = vadd.s32 %v966, 4294967295
        %v1607 = vadd.s32 %v967, 4294967295
        %v1608 = vadd.s32 %v968, 4294967295
        %v1609 = vadd.s32 %v969, 4294967295
        %v1610 = vadd.s32 %v970, 4294967295
        %v1611 = vadd.s32 %v971, 4294967295
        %v1612 = vadd.s32 %v972, 4294967295
        %v1613 = vadd.s32 %v973, 4294967295
        %v1614 = vadd.s32 %v974, 4294967295
        %v1615 = vadd.s32 %v975, 4294967295
        %v1616 = vadd.s32 %v976, 4294967295
        %v1617 = vadd.s32 %v977, 4294967295
        %v1618 = vadd.s32 %v978, 4294967295
        %v1619 = vadd.s32 %v979, 4294967295
        %v1620 = vadd.s32 %v980, 4294967295
        %v1621 = vadd.s32 %v981, 4294967295
        %v1622 = vadd.s32 %v982, 4294967295
        %v1623 = vadd.s32 %v983, 4294967295
        %v1624 = vadd.s32 %v984, 4294967295
        %v1625 = vadd.s32 %v985, 4294967295
        %v1626 = vadd.s32 %v986, 4294967295
        %v1627 = vadd.s32 %v987, 4294967295
        %v1628 = vadd.s32 %v988, 4294967295
        %v1629 = vadd.s32 %v989, 4294967295
        %v1630 = vadd.s32 %v990, 4294967295
        %v1631 = vadd.s32 %v991, 4294967295
        %v1632 = vadd.s32 %v992, 4294967295
        %v1633 = vadd.s32 %v993, 4294967295
        %v1634 = vadd.s32 %v994, 4294967295
        %vm1635 = vcmp.ge.s32.totalorder %v1603, 0
        %vm1636 = vcmp.ge.s32.totalorder %v1604, 0
        %vm1637 = vcmp.ge.s32.totalorder %v1605, 0
        %vm1638 = vcmp.ge.s32.totalorder %v1606, 0
        %vm1639 = vcmp.ge.s32.totalorder %v1607, 0
        %vm1640 = vcmp.ge.s32.totalorder %v1608, 0
        %vm1641 = vcmp.ge.s32.totalorder %v1609, 0
        %vm1642 = vcmp.ge.s32.totalorder %v1610, 0
        %vm1643 = vcmp.ge.s32.totalorder %v1611, 0
        %vm1644 = vcmp.ge.s32.totalorder %v1612, 0
        %vm1645 = vcmp.ge.s32.totalorder %v1613, 0
        %vm1646 = vcmp.ge.s32.totalorder %v1614, 0
        %vm1647 = vcmp.ge.s32.totalorder %v1615, 0
        %vm1648 = vcmp.ge.s32.totalorder %v1616, 0
        %vm1649 = vcmp.ge.s32.totalorder %v1617, 0
        %vm1650 = vcmp.ge.s32.totalorder %v1618, 0
        %vm1651 = vcmp.ge.s32.totalorder %v1619, 0
        %vm1652 = vcmp.ge.s32.totalorder %v1620, 0
        %vm1653 = vcmp.ge.s32.totalorder %v1621, 0
        %vm1654 = vcmp.ge.s32.totalorder %v1622, 0
        %vm1655 = vcmp.ge.s32.totalorder %v1623, 0
        %vm1656 = vcmp.ge.s32.totalorder %v1624, 0
        %vm1657 = vcmp.ge.s32.totalorder %v1625, 0
        %vm1658 = vcmp.ge.s32.totalorder %v1626, 0
        %vm1659 = vcmp.ge.s32.totalorder %v1627, 0
        %vm1660 = vcmp.ge.s32.totalorder %v1628, 0
        %vm1661 = vcmp.ge.s32.totalorder %v1629, 0
        %vm1662 = vcmp.ge.s32.totalorder %v1630, 0
        %vm1663 = vcmp.ge.s32.totalorder %v1631, 0
        %vm1664 = vcmp.ge.s32.totalorder %v1632, 0
        %vm1665 = vcmp.ge.s32.totalorder %v1633, 0
        %vm1666 = vcmp.ge.s32.totalorder %v1634, 0
        %vm1667 = vcmp.lt.s32.totalorder %v1603, 16
        %vm1668 = vcmp.lt.s32.totalorder %v1604, 16
        %vm1669 = vcmp.lt.s32.totalorder %v1605, 16
        %vm1670 = vcmp.lt.s32.totalorder %v1606, 16
        %vm1671 = vcmp.lt.s32.totalorder %v1607, 16
        %vm1672 = vcmp.lt.s32.totalorder %v1608, 16
        %vm1673 = vcmp.lt.s32.totalorder %v1609, 16
        %vm1674 = vcmp.lt.s32.totalorder %v1610, 16
        %vm1675 = vcmp.lt.s32.totalorder %v1611, 16
        %vm1676 = vcmp.lt.s32.totalorder %v1612, 16
        %vm1677 = vcmp.lt.s32.totalorder %v1613, 16
        %vm1678 = vcmp.lt.s32.totalorder %v1614, 16
        %vm1679 = vcmp.lt.s32.totalorder %v1615, 16
        %vm1680 = vcmp.lt.s32.totalorder %v1616, 16
        %vm1681 = vcmp.lt.s32.totalorder %v1617, 16
        %vm1682 = vcmp.lt.s32.totalorder %v1618, 16
        %vm1683 = vcmp.lt.s32.totalorder %v1619, 16
        %vm1684 = vcmp.lt.s32.totalorder %v1620, 16
        %vm1685 = vcmp.lt.s32.totalorder %v1621, 16
        %vm1686 = vcmp.lt.s32.totalorder %v1622, 16
        %vm1687 = vcmp.lt.s32.totalorder %v1623, 16
        %vm1688 = vcmp.lt.s32.totalorder %v1624, 16
        %vm1689 = vcmp.lt.s32.totalorder %v1625, 16
        %vm1690 = vcmp.lt.s32.totalorder %v1626, 16
        %vm1691 = vcmp.lt.s32.totalorder %v1627, 16
        %vm1692 = vcmp.lt.s32.totalorder %v1628, 16
        %vm1693 = vcmp.lt.s32.totalorder %v1629, 16
        %vm1694 = vcmp.lt.s32.totalorder %v1630, 16
        %vm1695 = vcmp.lt.s32.totalorder %v1631, 16
        %vm1696 = vcmp.lt.s32.totalorder %v1632, 16
        %vm1697 = vcmp.lt.s32.totalorder %v1633, 16
        %vm1698 = vcmp.lt.s32.totalorder %v1634, 16
        %vm1699 = vmand %vm1635, %vm1667
        %vm1700 = vmand %vm1636, %vm1668
        %vm1701 = vmand %vm1637, %vm1669
        %vm1702 = vmand %vm1638, %vm1670
        %vm1703 = vmand %vm1639, %vm1671
        %vm1704 = vmand %vm1640, %vm1672
        %vm1705 = vmand %vm1641, %vm1673
        %vm1706 = vmand %vm1642, %vm1674
        %vm1707 = vmand %vm1643, %vm1675
        %vm1708 = vmand %vm1644, %vm1676
        %vm1709 = vmand %vm1645, %vm1677
        %vm1710 = vmand %vm1646, %vm1678
        %vm1711 = vmand %vm1647, %vm1679
        %vm1712 = vmand %vm1648, %vm1680
        %vm1713 = vmand %vm1649, %vm1681
        %vm1714 = vmand %vm1650, %vm1682
        %vm1715 = vmand %vm1651, %vm1683
        %vm1716 = vmand %vm1652, %vm1684
        %vm1717 = vmand %vm1653, %vm1685
        %vm1718 = vmand %vm1654, %vm1686
        %vm1719 = vmand %vm1655, %vm1687
        %vm1720 = vmand %vm1656, %vm1688
        %vm1721 = vmand %vm1657, %vm1689
        %vm1722 = vmand %vm1658, %vm1690
        %vm1723 = vmand %vm1659, %vm1691
        %vm1724 = vmand %vm1660, %vm1692
        %vm1725 = vmand %vm1661, %vm1693
        %vm1726 = vmand %vm1662, %vm1694
        %vm1727 = vmand %vm1663, %vm1695
        %vm1728 = vmand %vm1664, %vm1696
        %vm1729 = vmand %vm1665, %vm1697
        %vm1730 = vmand %vm1666, %vm1698
        %v1731 = vsel %vm1699, 1, 0
        %v1732 = vsel %vm1700, 1, 0
        %v1733 = vsel %vm1701, 1, 0
        %v1734 = vsel %vm1702, 1, 0
        %v1735 = vsel %vm1703, 1, 0
        %v1736 = vsel %vm1704, 1, 0
        %v1737 = vsel %vm1705, 1, 0
        %v1738 = vsel %vm1706, 1, 0
        %v1739 = vsel %vm1707, 1, 0
        %v1740 = vsel %vm1708, 1, 0
        %v1741 = vsel %vm1709, 1, 0
        %v1742 = vsel %vm1710, 1, 0
        %v1743 = vsel %vm1711, 1, 0
        %v1744 = vsel %vm1712, 1, 0
        %v1745 = vsel %vm1713, 1, 0
        %v1746 = vsel %vm1714, 1, 0
        %v1747 = vsel %vm1715, 1, 0
        %v1748 = vsel %vm1716, 1, 0
        %v1749 = vsel %vm1717, 1, 0
        %v1750 = vsel %vm1718, 1, 0
        %v1751 = vsel %vm1719, 1, 0
        %v1752 = vsel %vm1720, 1, 0
        %v1753 = vsel %vm1721, 1, 0
        %v1754 = vsel %vm1722, 1, 0
        %v1755 = vsel %vm1723, 1, 0
        %v1756 = vsel %vm1724, 1, 0
        %v1757 = vsel %vm1725, 1, 0
        %v1758 = vsel %vm1726, 1, 0
        %v1759 = vsel %vm1727, 1, 0
        %v1760 = vsel %vm1728, 1, 0
        %v1761 = vsel %vm1729, 1, 0
        %v1762 = vsel %vm1730, 1, 0
        %v1763 = vcvt.s32.f32 %v1731
        %v1764 = vcvt.s32.f32 %v1732
        %v1765 = vcvt.s32.f32 %v1733
        %v1766 = vcvt.s32.f32 %v1734
        %v1767 = vcvt.s32.f32 %v1735
        %v1768 = vcvt.s32.f32 %v1736
        %v1769 = vcvt.s32.f32 %v1737
        %v1770 = vcvt.s32.f32 %v1738
        %v1771 = vcvt.s32.f32 %v1739
        %v1772 = vcvt.s32.f32 %v1740
        %v1773 = vcvt.s32.f32 %v1741
        %v1774 = vcvt.s32.f32 %v1742
        %v1775 = vcvt.s32.f32 %v1743
        %v1776 = vcvt.s32.f32 %v1744
        %v1777 = vcvt.s32.f32 %v1745
        %v1778 = vcvt.s32.f32 %v1746
        %v1779 = vcvt.s32.f32 %v1747
        %v1780 = vcvt.s32.f32 %v1748
        %v1781 = vcvt.s32.f32 %v1749
        %v1782 = vcvt.s32.f32 %v1750
        %v1783 = vcvt.s32.f32 %v1751
        %v1784 = vcvt.s32.f32 %v1752
        %v1785 = vcvt.s32.f32 %v1753
        %v1786 = vcvt.s32.f32 %v1754
        %v1787 = vcvt.s32.f32 %v1755
        %v1788 = vcvt.s32.f32 %v1756
        %v1789 = vcvt.s32.f32 %v1757
        %v1790 = vcvt.s32.f32 %v1758
        %v1791 = vcvt.s32.f32 %v1759
        %v1792 = vcvt.s32.f32 %v1760
        %v1793 = vcvt.s32.f32 %v1761
        %v1794 = vcvt.s32.f32 %v1762
        %v1795 = vmul.f32 %v1571, %v1763
        %v1796 = vmul.f32 %v1572, %v1764
        %v1797 = vmul.f32 %v1573, %v1765
        %v1798 = vmul.f32 %v1574, %v1766
        %v1799 = vmul.f32 %v1575, %v1767
        %v1800 = vmul.f32 %v1576, %v1768
        %v1801 = vmul.f32 %v1577, %v1769
        %v1802 = vmul.f32 %v1578, %v1770
        %v1803 = vmul.f32 %v1579, %v1771
        %v1804 = vmul.f32 %v1580, %v1772
        %v1805 = vmul.f32 %v1581, %v1773
        %v1806 = vmul.f32 %v1582, %v1774
        %v1807 = vmul.f32 %v1583, %v1775
        %v1808 = vmul.f32 %v1584, %v1776
        %v1809 = vmul.f32 %v1585, %v1777
        %v1810 = vmul.f32 %v1586, %v1778
        %v1811 = vmul.f32 %v1587, %v1779
        %v1812 = vmul.f32 %v1588, %v1780
        %v1813 = vmul.f32 %v1589, %v1781
        %v1814 = vmul.f32 %v1590, %v1782
        %v1815 = vmul.f32 %v1591, %v1783
        %v1816 = vmul.f32 %v1592, %v1784
        %v1817 = vmul.f32 %v1593, %v1785
        %v1818 = vmul.f32 %v1594, %v1786
        %v1819 = vmul.f32 %v1595, %v1787
        %v1820 = vmul.f32 %v1596, %v1788
        %v1821 = vmul.f32 %v1597, %v1789
        %v1822 = vmul.f32 %v1598, %v1790
        %v1823 = vmul.f32 %v1599, %v1791
        %v1824 = vmul.f32 %v1600, %v1792
        %v1825 = vmul.f32 %v1601, %v1793
        %v1826 = vmul.f32 %v1602, %v1794
        %v1827 = vpack.c.bf16 %v1795, %v1795
        %v1828 = vpack.c.bf16 %v1796, %v1796
        %v1829 = vpack.c.bf16 %v1797, %v1797
        %v1830 = vpack.c.bf16 %v1798, %v1798
        %v1831 = vpack.c.bf16 %v1799, %v1799
        %v1832 = vpack.c.bf16 %v1800, %v1800
        %v1833 = vpack.c.bf16 %v1801, %v1801
        %v1834 = vpack.c.bf16 %v1802, %v1802
        %v1835 = vpack.c.bf16 %v1803, %v1803
        %v1836 = vpack.c.bf16 %v1804, %v1804
        %v1837 = vpack.c.bf16 %v1805, %v1805
        %v1838 = vpack.c.bf16 %v1806, %v1806
        %v1839 = vpack.c.bf16 %v1807, %v1807
        %v1840 = vpack.c.bf16 %v1808, %v1808
        %v1841 = vpack.c.bf16 %v1809, %v1809
        %v1842 = vpack.c.bf16 %v1810, %v1810
        %v1843 = vpack.c.bf16 %v1811, %v1811
        %v1844 = vpack.c.bf16 %v1812, %v1812
        %v1845 = vpack.c.bf16 %v1813, %v1813
        %v1846 = vpack.c.bf16 %v1814, %v1814
        %v1847 = vpack.c.bf16 %v1815, %v1815
        %v1848 = vpack.c.bf16 %v1816, %v1816
        %v1849 = vpack.c.bf16 %v1817, %v1817
        %v1850 = vpack.c.bf16 %v1818, %v1818
        %v1851 = vpack.c.bf16 %v1819, %v1819
        %v1852 = vpack.c.bf16 %v1820, %v1820
        %v1853 = vpack.c.bf16 %v1821, %v1821
        %v1854 = vpack.c.bf16 %v1822, %v1822
        %v1855 = vpack.c.bf16 %v1823, %v1823
        %v1856 = vpack.c.bf16 %v1824, %v1824
        %v1857 = vpack.c.bf16 %v1825, %v1825
        %v1858 = vpack.c.bf16 %v1826, %v1826
        %v1859 = vld [vmem:[#allocation2 + $0x8] sm:$0xff]
        %v1860 = vld [vmem:[#allocation2 + $0x10] sm:$0xff]
        %v1861 = vld [vmem:[#allocation2 + $0x18] sm:$0xff]
        %v1862 = vld [vmem:[#allocation2 + $0x20] sm:$0xff]
        %v1863 = vld [vmem:[#allocation2 + $0x28] sm:$0xff]
        %v1864 = vld [vmem:[#allocation2 + $0x30] sm:$0xff]
        %v1865 = vld [vmem:[#allocation2 + $0x38] sm:$0xff]
        %v1866 = vld [vmem:[#allocation2 + $0x40] sm:$0xff]
        %v1867 = vld [vmem:[#allocation2 + $0x48] sm:$0xff]
        %v1868 = vld [vmem:[#allocation2 + $0x50] sm:$0xff]
        %v1869 = vld [vmem:[#allocation2 + $0x58] sm:$0xff]
        %v1870 = vld [vmem:[#allocation2 + $0x60] sm:$0xff]
        %v1871 = vld [vmem:[#allocation2 + $0x68] sm:$0xff]
        %v1872 = vld [vmem:[#allocation2 + $0x70] sm:$0xff]
        %v1873 = vld [vmem:[#allocation2 + $0x78] sm:$0xff]
        %v1874 = vld [vmem:[#allocation2 + $0x80] sm:$0xff]
        %v1875 = vld [vmem:[#allocation2 + $0x88] sm:$0xff]
        %v1876 = vld [vmem:[#allocation2 + $0x90] sm:$0xff]
        %v1877 = vld [vmem:[#allocation2 + $0x98] sm:$0xff]
        %v1878 = vld [vmem:[#allocation2 + $0xa0] sm:$0xff]
        %v1879 = vld [vmem:[#allocation2 + $0xa8] sm:$0xff]
        %v1880 = vld [vmem:[#allocation2 + $0xb0] sm:$0xff]
        %v1881 = vld [vmem:[#allocation2 + $0xb8] sm:$0xff]
        %v1882 = vld [vmem:[#allocation2 + $0xc0] sm:$0xff]
        %v1883 = vld [vmem:[#allocation2 + $0xc8] sm:$0xff]
        %v1884 = vld [vmem:[#allocation2 + $0xd0] sm:$0xff]
        %v1885 = vld [vmem:[#allocation2 + $0xd8] sm:$0xff]
        %v1886 = vld [vmem:[#allocation2 + $0xe0] sm:$0xff]
        %v1887 = vld [vmem:[#allocation2 + $0xe8] sm:$0xff]
        %v1888 = vld [vmem:[#allocation2 + $0xf0] sm:$0xff]
        %v1889 = vld [vmem:[#allocation2 + $0xf8] sm:$0xff]
        %v1890 = vld [vmem:[#allocation2 + $0x100] sm:$0xff]
        %vm1891 = vcmp.ge.s32.totalorder %v963, 0
        %vm1892 = vcmp.ge.s32.totalorder %v964, 0
        %vm1893 = vcmp.ge.s32.totalorder %v965, 0
        %vm1894 = vcmp.ge.s32.totalorder %v966, 0
        %vm1895 = vcmp.ge.s32.totalorder %v967, 0
        %vm1896 = vcmp.ge.s32.totalorder %v968, 0
        %vm1897 = vcmp.ge.s32.totalorder %v969, 0
        %vm1898 = vcmp.ge.s32.totalorder %v970, 0
        %vm1899 = vcmp.ge.s32.totalorder %v971, 0
        %vm1900 = vcmp.ge.s32.totalorder %v972, 0
        %vm1901 = vcmp.ge.s32.totalorder %v973, 0
        %vm1902 = vcmp.ge.s32.totalorder %v974, 0
        %vm1903 = vcmp.ge.s32.totalorder %v975, 0
        %vm1904 = vcmp.ge.s32.totalorder %v976, 0
        %vm1905 = vcmp.ge.s32.totalorder %v977, 0
        %vm1906 = vcmp.ge.s32.totalorder %v978, 0
        %vm1907 = vcmp.ge.s32.totalorder %v979, 0
        %vm1908 = vcmp.ge.s32.totalorder %v980, 0
        %vm1909 = vcmp.ge.s32.totalorder %v981, 0
        %vm1910 = vcmp.ge.s32.totalorder %v982, 0
        %vm1911 = vcmp.ge.s32.totalorder %v983, 0
        %vm1912 = vcmp.ge.s32.totalorder %v984, 0
        %vm1913 = vcmp.ge.s32.totalorder %v985, 0
        %vm1914 = vcmp.ge.s32.totalorder %v986, 0
        %vm1915 = vcmp.ge.s32.totalorder %v987, 0
        %vm1916 = vcmp.ge.s32.totalorder %v988, 0
        %vm1917 = vcmp.ge.s32.totalorder %v989, 0
        %vm1918 = vcmp.ge.s32.totalorder %v990, 0
        %vm1919 = vcmp.ge.s32.totalorder %v991, 0
        %vm1920 = vcmp.ge.s32.totalorder %v992, 0
        %vm1921 = vcmp.ge.s32.totalorder %v993, 0
        %vm1922 = vcmp.ge.s32.totalorder %v994, 0
        %vm1923 = vcmp.lt.s32.totalorder %v963, 16
        %vm1924 = vcmp.lt.s32.totalorder %v964, 16
        %vm1925 = vcmp.lt.s32.totalorder %v965, 16
        %vm1926 = vcmp.lt.s32.totalorder %v966, 16
        %vm1927 = vcmp.lt.s32.totalorder %v967, 16
        %vm1928 = vcmp.lt.s32.totalorder %v968, 16
        %vm1929 = vcmp.lt.s32.totalorder %v969, 16
        %vm1930 = vcmp.lt.s32.totalorder %v970, 16
        %vm1931 = vcmp.lt.s32.totalorder %v971, 16
        %vm1932 = vcmp.lt.s32.totalorder %v972, 16
        %vm1933 = vcmp.lt.s32.totalorder %v973, 16
        %vm1934 = vcmp.lt.s32.totalorder %v974, 16
        %vm1935 = vcmp.lt.s32.totalorder %v975, 16
        %vm1936 = vcmp.lt.s32.totalorder %v976, 16
        %vm1937 = vcmp.lt.s32.totalorder %v977, 16
        %vm1938 = vcmp.lt.s32.totalorder %v978, 16
        %vm1939 = vcmp.lt.s32.totalorder %v979, 16
        %vm1940 = vcmp.lt.s32.totalorder %v980, 16
        %vm1941 = vcmp.lt.s32.totalorder %v981, 16
        %vm1942 = vcmp.lt.s32.totalorder %v982, 16
        %vm1943 = vcmp.lt.s32.totalorder %v983, 16
        %vm1944 = vcmp.lt.s32.totalorder %v984, 16
        %vm1945 = vcmp.lt.s32.totalorder %v985, 16
        %vm1946 = vcmp.lt.s32.totalorder %v986, 16
        %vm1947 = vcmp.lt.s32.totalorder %v987, 16
        %vm1948 = vcmp.lt.s32.totalorder %v988, 16
        %vm1949 = vcmp.lt.s32.totalorder %v989, 16
        %vm1950 = vcmp.lt.s32.totalorder %v990, 16
        %vm1951 = vcmp.lt.s32.totalorder %v991, 16
        %vm1952 = vcmp.lt.s32.totalorder %v992, 16
        %vm1953 = vcmp.lt.s32.totalorder %v993, 16
        %vm1954 = vcmp.lt.s32.totalorder %v994, 16
        %vm1955 = vmand %vm1891, %vm1923
        %vm1956 = vmand %vm1892, %vm1924
        %vm1957 = vmand %vm1893, %vm1925
        %vm1958 = vmand %vm1894, %vm1926
        %vm1959 = vmand %vm1895, %vm1927
        %vm1960 = vmand %vm1896, %vm1928
        %vm1961 = vmand %vm1897, %vm1929
        %vm1962 = vmand %vm1898, %vm1930
        %vm1963 = vmand %vm1899, %vm1931
        %vm1964 = vmand %vm1900, %vm1932
        %vm1965 = vmand %vm1901, %vm1933
        %vm1966 = vmand %vm1902, %vm1934
        %vm1967 = vmand %vm1903, %vm1935
        %vm1968 = vmand %vm1904, %vm1936
        %vm1969 = vmand %vm1905, %vm1937
        %vm1970 = vmand %vm1906, %vm1938
        %vm1971 = vmand %vm1907, %vm1939
        %vm1972 = vmand %vm1908, %vm1940
        %vm1973 = vmand %vm1909, %vm1941
        %vm1974 = vmand %vm1910, %vm1942
        %vm1975 = vmand %vm1911, %vm1943
        %vm1976 = vmand %vm1912, %vm1944
        %vm1977 = vmand %vm1913, %vm1945
        %vm1978 = vmand %vm1914, %vm1946
        %vm1979 = vmand %vm1915, %vm1947
        %vm1980 = vmand %vm1916, %vm1948
        %vm1981 = vmand %vm1917, %vm1949
        %vm1982 = vmand %vm1918, %vm1950
        %vm1983 = vmand %vm1919, %vm1951
        %vm1984 = vmand %vm1920, %vm1952
        %vm1985 = vmand %vm1921, %vm1953
        %vm1986 = vmand %vm1922, %vm1954
        %v1987 = vsel %vm1955, 1, 0
        %v1988 = vsel %vm1956, 1, 0
        %v1989 = vsel %vm1957, 1, 0
        %v1990 = vsel %vm1958, 1, 0
        %v1991 = vsel %vm1959, 1, 0
        %v1992 = vsel %vm1960, 1, 0
        %v1993 = vsel %vm1961, 1, 0
        %v1994 = vsel %vm1962, 1, 0
        %v1995 = vsel %vm1963, 1, 0
        %v1996 = vsel %vm1964, 1, 0
        %v1997 = vsel %vm1965, 1, 0
        %v1998 = vsel %vm1966, 1, 0
        %v1999 = vsel %vm1967, 1, 0
        %v2000 = vsel %vm1968, 1, 0
        %v2001 = vsel %vm1969, 1, 0
        %v2002 = vsel %vm1970, 1, 0
        %v2003 = vsel %vm1971, 1, 0
        %v2004 = vsel %vm1972, 1, 0
        %v2005 = vsel %vm1973, 1, 0
        %v2006 = vsel %vm1974, 1, 0
        %v2007 = vsel %vm1975, 1, 0
        %v2008 = vsel %vm1976, 1, 0
        %v2009 = vsel %vm1977, 1, 0
        %v2010 = vsel %vm1978, 1, 0
        %v2011 = vsel %vm1979, 1, 0
        %v2012 = vsel %vm1980, 1, 0
        %v2013 = vsel %vm1981, 1, 0
        %v2014 = vsel %vm1982, 1, 0
        %v2015 = vsel %vm1983, 1, 0
        %v2016 = vsel %vm1984, 1, 0
        %v2017 = vsel %vm1985, 1, 0
        %v2018 = vsel %vm1986, 1, 0
        %v2019 = vcvt.s32.f32 %v1987
        %v2020 = vcvt.s32.f32 %v1988
        %v2021 = vcvt.s32.f32 %v1989
        %v2022 = vcvt.s32.f32 %v1990
        %v2023 = vcvt.s32.f32 %v1991
        %v2024 = vcvt.s32.f32 %v1992
        %v2025 = vcvt.s32.f32 %v1993
        %v2026 = vcvt.s32.f32 %v1994
        %v2027 = vcvt.s32.f32 %v1995
        %v2028 = vcvt.s32.f32 %v1996
        %v2029 = vcvt.s32.f32 %v1997
        %v2030 = vcvt.s32.f32 %v1998
        %v2031 = vcvt.s32.f32 %v1999
        %v2032 = vcvt.s32.f32 %v2000
        %v2033 = vcvt.s32.f32 %v2001
        %v2034 = vcvt.s32.f32 %v2002
        %v2035 = vcvt.s32.f32 %v2003
        %v2036 = vcvt.s32.f32 %v2004
        %v2037 = vcvt.s32.f32 %v2005
        %v2038 = vcvt.s32.f32 %v2006
        %v2039 = vcvt.s32.f32 %v2007
        %v2040 = vcvt.s32.f32 %v2008
        %v2041 = vcvt.s32.f32 %v2009
        %v2042 = vcvt.s32.f32 %v2010
        %v2043 = vcvt.s32.f32 %v2011
        %v2044 = vcvt.s32.f32 %v2012
        %v2045 = vcvt.s32.f32 %v2013
        %v2046 = vcvt.s32.f32 %v2014
        %v2047 = vcvt.s32.f32 %v2015
        %v2048 = vcvt.s32.f32 %v2016
        %v2049 = vcvt.s32.f32 %v2017
        %v2050 = vcvt.s32.f32 %v2018
        %v2051 = vmul.f32 %v1859, %v2019
        %v2052 = vmul.f32 %v1860, %v2020
        %v2053 = vmul.f32 %v1861, %v2021
        %v2054 = vmul.f32 %v1862, %v2022
        %v2055 = vmul.f32 %v1863, %v2023
        %v2056 = vmul.f32 %v1864, %v2024
        %v2057 = vmul.f32 %v1865, %v2025
        %v2058 = vmul.f32 %v1866, %v2026
        %v2059 = vmul.f32 %v1867, %v2027
        %v2060 = vmul.f32 %v1868, %v2028
        %v2061 = vmul.f32 %v1869, %v2029
        %v2062 = vmul.f32 %v1870, %v2030
        %v2063 = vmul.f32 %v1871, %v2031
        %v2064 = vmul.f32 %v1872, %v2032
        %v2065 = vmul.f32 %v1873, %v2033
        %v2066 = vmul.f32 %v1874, %v2034
        %v2067 = vmul.f32 %v1875, %v2035
        %v2068 = vmul.f32 %v1876, %v2036
        %v2069 = vmul.f32 %v1877, %v2037
        %v2070 = vmul.f32 %v1878, %v2038
        %v2071 = vmul.f32 %v1879, %v2039
        %v2072 = vmul.f32 %v1880, %v2040
        %v2073 = vmul.f32 %v1881, %v2041
        %v2074 = vmul.f32 %v1882, %v2042
        %v2075 = vmul.f32 %v1883, %v2043
        %v2076 = vmul.f32 %v1884, %v2044
        %v2077 = vmul.f32 %v1885, %v2045
        %v2078 = vmul.f32 %v1886, %v2046
        %v2079 = vmul.f32 %v1887, %v2047
        %v2080 = vmul.f32 %v1888, %v2048
        %v2081 = vmul.f32 %v1889, %v2049
        %v2082 = vmul.f32 %v1890, %v2050
        %v2083 = vpack.c.bf16 %v2051, %v2051
        %v2084 = vpack.c.bf16 %v2052, %v2052
        %v2085 = vpack.c.bf16 %v2053, %v2053
        %v2086 = vpack.c.bf16 %v2054, %v2054
        %v2087 = vpack.c.bf16 %v2055, %v2055
        %v2088 = vpack.c.bf16 %v2056, %v2056
        %v2089 = vpack.c.bf16 %v2057, %v2057
        %v2090 = vpack.c.bf16 %v2058, %v2058
        %v2091 = vpack.c.bf16 %v2059, %v2059
        %v2092 = vpack.c.bf16 %v2060, %v2060
        %v2093 = vpack.c.bf16 %v2061, %v2061
        %v2094 = vpack.c.bf16 %v2062, %v2062
        %v2095 = vpack.c.bf16 %v2063, %v2063
        %v2096 = vpack.c.bf16 %v2064, %v2064
        %v2097 = vpack.c.bf16 %v2065, %v2065
        %v2098 = vpack.c.bf16 %v2066, %v2066
        %v2099 = vpack.c.bf16 %v2067, %v2067
        %v2100 = vpack.c.bf16 %v2068, %v2068
        %v2101 = vpack.c.bf16 %v2069, %v2069
        %v2102 = vpack.c.bf16 %v2070, %v2070
        %v2103 = vpack.c.bf16 %v2071, %v2071
        %v2104 = vpack.c.bf16 %v2072, %v2072
        %v2105 = vpack.c.bf16 %v2073, %v2073
        %v2106 = vpack.c.bf16 %v2074, %v2074
        %v2107 = vpack.c.bf16 %v2075, %v2075
        %v2108 = vpack.c.bf16 %v2076, %v2076
        %v2109 = vpack.c.bf16 %v2077, %v2077
        %v2110 = vpack.c.bf16 %v2078, %v2078
        %v2111 = vpack.c.bf16 %v2079, %v2079
        %v2112 = vpack.c.bf16 %v2080, %v2080
        %v2113 = vpack.c.bf16 %v2081, %v2081
        %v2114 = vpack.c.bf16 %v2082, %v2082
        %v2115 = vld [vmem:[#allocation2 + $0x9] sm:$0xff]
        %v2116 = vld [vmem:[#allocation2 + $0x11] sm:$0xff]
        %v2117 = vld [vmem:[#allocation2 + $0x19] sm:$0xff]
        %v2118 = vld [vmem:[#allocation2 + $0x21] sm:$0xff]
        %v2119 = vld [vmem:[#allocation2 + $0x29] sm:$0xff]
        %v2120 = vld [vmem:[#allocation2 + $0x31] sm:$0xff]
        %v2121 = vld [vmem:[#allocation2 + $0x39] sm:$0xff]
        %v2122 = vld [vmem:[#allocation2 + $0x41] sm:$0xff]
        %v2123 = vld [vmem:[#allocation2 + $0x49] sm:$0xff]
        %v2124 = vld [vmem:[#allocation2 + $0x51] sm:$0xff]
        %v2125 = vld [vmem:[#allocation2 + $0x59] sm:$0xff]
        %v2126 = vld [vmem:[#allocation2 + $0x61] sm:$0xff]
        %v2127 = vld [vmem:[#allocation2 + $0x69] sm:$0xff]
        %v2128 = vld [vmem:[#allocation2 + $0x71] sm:$0xff]
        %v2129 = vld [vmem:[#allocation2 + $0x79] sm:$0xff]
        %v2130 = vld [vmem:[#allocation2 + $0x81] sm:$0xff]
        %v2131 = vld [vmem:[#allocation2 + $0x89] sm:$0xff]
        %v2132 = vld [vmem:[#allocation2 + $0x91] sm:$0xff]
        %v2133 = vld [vmem:[#allocation2 + $0x99] sm:$0xff]
        %v2134 = vld [vmem:[#allocation2 + $0xa1] sm:$0xff]
        %v2135 = vld [vmem:[#allocation2 + $0xa9] sm:$0xff]
        %v2136 = vld [vmem:[#allocation2 + $0xb1] sm:$0xff]
        %v2137 = vld [vmem:[#allocation2 + $0xb9] sm:$0xff]
        %v2138 = vld [vmem:[#allocation2 + $0xc1] sm:$0xff]
        %v2139 = vld [vmem:[#allocation2 + $0xc9] sm:$0xff]
        %v2140 = vld [vmem:[#allocation2 + $0xd1] sm:$0xff]
        %v2141 = vld [vmem:[#allocation2 + $0xd9] sm:$0xff]
        %v2142 = vld [vmem:[#allocation2 + $0xe1] sm:$0xff]
        %v2143 = vld [vmem:[#allocation2 + $0xe9] sm:$0xff]
        %v2144 = vld [vmem:[#allocation2 + $0xf1] sm:$0xff]
        %v2145 = vld [vmem:[#allocation2 + $0xf9] sm:$0xff]
        %v2146 = vld [vmem:[#allocation2 + $0x101] sm:$0xff]
        %v2147 = vadd.s32 %v963, 1
        %v2148 = vadd.s32 %v964, 1
        %v2149 = vadd.s32 %v965, 1
        %v2150 = vadd.s32 %v966, 1
        %v2151 = vadd.s32 %v967, 1
        %v2152 = vadd.s32 %v968, 1
        %v2153 = vadd.s32 %v969, 1
        %v2154 = vadd.s32 %v970, 1
        %v2155 = vadd.s32 %v971, 1
        %v2156 = vadd.s32 %v972, 1
        %v2157 = vadd.s32 %v973, 1
        %v2158 = vadd.s32 %v974, 1
        %v2159 = vadd.s32 %v975, 1
        %v2160 = vadd.s32 %v976, 1
        %v2161 = vadd.s32 %v977, 1
        %v2162 = vadd.s32 %v978, 1
        %v2163 = vadd.s32 %v979, 1
        %v2164 = vadd.s32 %v980, 1
        %v2165 = vadd.s32 %v981, 1
        %v2166 = vadd.s32 %v982, 1
        %v2167 = vadd.s32 %v983, 1
        %v2168 = vadd.s32 %v984, 1
        %v2169 = vadd.s32 %v985, 1
        %v2170 = vadd.s32 %v986, 1
        %v2171 = vadd.s32 %v987, 1
        %v2172 = vadd.s32 %v988, 1
        %v2173 = vadd.s32 %v989, 1
        %v2174 = vadd.s32 %v990, 1
        %v2175 = vadd.s32 %v991, 1
        %v2176 = vadd.s32 %v992, 1
        %v2177 = vadd.s32 %v993, 1
        %v2178 = vadd.s32 %v994, 1
        %vm2179 = vcmp.ge.s32.totalorder %v2147, 0
        %vm2180 = vcmp.ge.s32.totalorder %v2148, 0
        %vm2181 = vcmp.ge.s32.totalorder %v2149, 0
        %vm2182 = vcmp.ge.s32.totalorder %v2150, 0
        %vm2183 = vcmp.ge.s32.totalorder %v2151, 0
        %vm2184 = vcmp.ge.s32.totalorder %v2152, 0
        %vm2185 = vcmp.ge.s32.totalorder %v2153, 0
        %vm2186 = vcmp.ge.s32.totalorder %v2154, 0
        %vm2187 = vcmp.ge.s32.totalorder %v2155, 0
        %vm2188 = vcmp.ge.s32.totalorder %v2156, 0
        %vm2189 = vcmp.ge.s32.totalorder %v2157, 0
        %vm2190 = vcmp.ge.s32.totalorder %v2158, 0
        %vm2191 = vcmp.ge.s32.totalorder %v2159, 0
        %vm2192 = vcmp.ge.s32.totalorder %v2160, 0
        %vm2193 = vcmp.ge.s32.totalorder %v2161, 0
        %vm2194 = vcmp.ge.s32.totalorder %v2162, 0
        %vm2195 = vcmp.ge.s32.totalorder %v2163, 0
        %vm2196 = vcmp.ge.s32.totalorder %v2164, 0
        %vm2197 = vcmp.ge.s32.totalorder %v2165, 0
        %vm2198 = vcmp.ge.s32.totalorder %v2166, 0
        %vm2199 = vcmp.ge.s32.totalorder %v2167, 0
        %vm2200 = vcmp.ge.s32.totalorder %v2168, 0
        %vm2201 = vcmp.ge.s32.totalorder %v2169, 0
        %vm2202 = vcmp.ge.s32.totalorder %v2170, 0
        %vm2203 = vcmp.ge.s32.totalorder %v2171, 0
        %vm2204 = vcmp.ge.s32.totalorder %v2172, 0
        %vm2205 = vcmp.ge.s32.totalorder %v2173, 0
        %vm2206 = vcmp.ge.s32.totalorder %v2174, 0
        %vm2207 = vcmp.ge.s32.totalorder %v2175, 0
        %vm2208 = vcmp.ge.s32.totalorder %v2176, 0
        %vm2209 = vcmp.ge.s32.totalorder %v2177, 0
        %vm2210 = vcmp.ge.s32.totalorder %v2178, 0
        %vm2211 = vcmp.lt.s32.totalorder %v2147, 16
        %vm2212 = vcmp.lt.s32.totalorder %v2148, 16
        %vm2213 = vcmp.lt.s32.totalorder %v2149, 16
        %vm2214 = vcmp.lt.s32.totalorder %v2150, 16
        %vm2215 = vcmp.lt.s32.totalorder %v2151, 16
        %vm2216 = vcmp.lt.s32.totalorder %v2152, 16
        %vm2217 = vcmp.lt.s32.totalorder %v2153, 16
        %vm2218 = vcmp.lt.s32.totalorder %v2154, 16
        %vm2219 = vcmp.lt.s32.totalorder %v2155, 16
        %vm2220 = vcmp.lt.s32.totalorder %v2156, 16
        %vm2221 = vcmp.lt.s32.totalorder %v2157, 16
        %vm2222 = vcmp.lt.s32.totalorder %v2158, 16
        %vm2223 = vcmp.lt.s32.totalorder %v2159, 16
        %vm2224 = vcmp.lt.s32.totalorder %v2160, 16
        %vm2225 = vcmp.lt.s32.totalorder %v2161, 16
        %vm2226 = vcmp.lt.s32.totalorder %v2162, 16
        %vm2227 = vcmp.lt.s32.totalorder %v2163, 16
        %vm2228 = vcmp.lt.s32.totalorder %v2164, 16
        %vm2229 = vcmp.lt.s32.totalorder %v2165, 16
        %vm2230 = vcmp.lt.s32.totalorder %v2166, 16
        %vm2231 = vcmp.lt.s32.totalorder %v2167, 16
        %vm2232 = vcmp.lt.s32.totalorder %v2168, 16
        %vm2233 = vcmp.lt.s32.totalorder %v2169, 16
        %vm2234 = vcmp.lt.s32.totalorder %v2170, 16
        %vm2235 = vcmp.lt.s32.totalorder %v2171, 16
        %vm2236 = vcmp.lt.s32.totalorder %v2172, 16
        %vm2237 = vcmp.lt.s32.totalorder %v2173, 16
        %vm2238 = vcmp.lt.s32.totalorder %v2174, 16
        %vm2239 = vcmp.lt.s32.totalorder %v2175, 16
        %vm2240 = vcmp.lt.s32.totalorder %v2176, 16
        %vm2241 = vcmp.lt.s32.totalorder %v2177, 16
        %vm2242 = vcmp.lt.s32.totalorder %v2178, 16
        %vm2243 = vmand %vm2179, %vm2211
        %vm2244 = vmand %vm2180, %vm2212
        %vm2245 = vmand %vm2181, %vm2213
        %vm2246 = vmand %vm2182, %vm2214
        %vm2247 = vmand %vm2183, %vm2215
        %vm2248 = vmand %vm2184, %vm2216
        %vm2249 = vmand %vm2185, %vm2217
        %vm2250 = vmand %vm2186, %vm2218
        %vm2251 = vmand %vm2187, %vm2219
        %vm2252 = vmand %vm2188, %vm2220
        %vm2253 = vmand %vm2189, %vm2221
        %vm2254 = vmand %vm2190, %vm2222
        %vm2255 = vmand %vm2191, %vm2223
        %vm2256 = vmand %vm2192, %vm2224
        %vm2257 = vmand %vm2193, %vm2225
        %vm2258 = vmand %vm2194, %vm2226
        %vm2259 = vmand %vm2195, %vm2227
        %vm2260 = vmand %vm2196, %vm2228
        %vm2261 = vmand %vm2197, %vm2229
        %vm2262 = vmand %vm2198, %vm2230
        %vm2263 = vmand %vm2199, %vm2231
        %vm2264 = vmand %vm2200, %vm2232
        %vm2265 = vmand %vm2201, %vm2233
        %vm2266 = vmand %vm2202, %vm2234
        %vm2267 = vmand %vm2203, %vm2235
        %vm2268 = vmand %vm2204, %vm2236
        %vm2269 = vmand %vm2205, %vm2237
        %vm2270 = vmand %vm2206, %vm2238
        %vm2271 = vmand %vm2207, %vm2239
        %vm2272 = vmand %vm2208, %vm2240
        %vm2273 = vmand %vm2209, %vm2241
        %vm2274 = vmand %vm2210, %vm2242
        %v2275 = vsel %vm2243, 1, 0
        %v2276 = vsel %vm2244, 1, 0
        %v2277 = vsel %vm2245, 1, 0
        %v2278 = vsel %vm2246, 1, 0
        %v2279 = vsel %vm2247, 1, 0
        %v2280 = vsel %vm2248, 1, 0
        %v2281 = vsel %vm2249, 1, 0
        %v2282 = vsel %vm2250, 1, 0
        %v2283 = vsel %vm2251, 1, 0
        %v2284 = vsel %vm2252, 1, 0
        %v2285 = vsel %vm2253, 1, 0
        %v2286 = vsel %vm2254, 1, 0
        %v2287 = vsel %vm2255, 1, 0
        %v2288 = vsel %vm2256, 1, 0
        %v2289 = vsel %vm2257, 1, 0
        %v2290 = vsel %vm2258, 1, 0
        %v2291 = vsel %vm2259, 1, 0
        %v2292 = vsel %vm2260, 1, 0
        %v2293 = vsel %vm2261, 1, 0
        %v2294 = vsel %vm2262, 1, 0
        %v2295 = vsel %vm2263, 1, 0
        %v2296 = vsel %vm2264, 1, 0
        %v2297 = vsel %vm2265, 1, 0
        %v2298 = vsel %vm2266, 1, 0
        %v2299 = vsel %vm2267, 1, 0
        %v2300 = vsel %vm2268, 1, 0
        %v2301 = vsel %vm2269, 1, 0
        %v2302 = vsel %vm2270, 1, 0
        %v2303 = vsel %vm2271, 1, 0
        %v2304 = vsel %vm2272, 1, 0
        %v2305 = vsel %vm2273, 1, 0
        %v2306 = vsel %vm2274, 1, 0
        %v2307 = vcvt.s32.f32 %v2275
        %v2308 = vcvt.s32.f32 %v2276
        %v2309 = vcvt.s32.f32 %v2277
        %v2310 = vcvt.s32.f32 %v2278
        %v2311 = vcvt.s32.f32 %v2279
        %v2312 = vcvt.s32.f32 %v2280
        %v2313 = vcvt.s32.f32 %v2281
        %v2314 = vcvt.s32.f32 %v2282
        %v2315 = vcvt.s32.f32 %v2283
        %v2316 = vcvt.s32.f32 %v2284
        %v2317 = vcvt.s32.f32 %v2285
        %v2318 = vcvt.s32.f32 %v2286
        %v2319 = vcvt.s32.f32 %v2287
        %v2320 = vcvt.s32.f32 %v2288
        %v2321 = vcvt.s32.f32 %v2289
        %v2322 = vcvt.s32.f32 %v2290
        %v2323 = vcvt.s32.f32 %v2291
        %v2324 = vcvt.s32.f32 %v2292
        %v2325 = vcvt.s32.f32 %v2293
        %v2326 = vcvt.s32.f32 %v2294
        %v2327 = vcvt.s32.f32 %v2295
        %v2328 = vcvt.s32.f32 %v2296
        %v2329 = vcvt.s32.f32 %v2297
        %v2330 = vcvt.s32.f32 %v2298
        %v2331 = vcvt.s32.f32 %v2299
        %v2332 = vcvt.s32.f32 %v2300
        %v2333 = vcvt.s32.f32 %v2301
        %v2334 = vcvt.s32.f32 %v2302
        %v2335 = vcvt.s32.f32 %v2303
        %v2336 = vcvt.s32.f32 %v2304
        %v2337 = vcvt.s32.f32 %v2305
        %v2338 = vcvt.s32.f32 %v2306
        %v2339 = vmul.f32 %v2115, %v2307
        %v2340 = vmul.f32 %v2116, %v2308
        %v2341 = vmul.f32 %v2117, %v2309
        %v2342 = vmul.f32 %v2118, %v2310
        %v2343 = vmul.f32 %v2119, %v2311
        %v2344 = vmul.f32 %v2120, %v2312
        %v2345 = vmul.f32 %v2121, %v2313
        %v2346 = vmul.f32 %v2122, %v2314
        %v2347 = vmul.f32 %v2123, %v2315
        %v2348 = vmul.f32 %v2124, %v2316
        %v2349 = vmul.f32 %v2125, %v2317
        %v2350 = vmul.f32 %v2126, %v2318
        %v2351 = vmul.f32 %v2127, %v2319
        %v2352 = vmul.f32 %v2128, %v2320
        %v2353 = vmul.f32 %v2129, %v2321
        %v2354 = vmul.f32 %v2130, %v2322
        %v2355 = vmul.f32 %v2131, %v2323
        %v2356 = vmul.f32 %v2132, %v2324
        %v2357 = vmul.f32 %v2133, %v2325
        %v2358 = vmul.f32 %v2134, %v2326
        %v2359 = vmul.f32 %v2135, %v2327
        %v2360 = vmul.f32 %v2136, %v2328
        %v2361 = vmul.f32 %v2137, %v2329
        %v2362 = vmul.f32 %v2138, %v2330
        %v2363 = vmul.f32 %v2139, %v2331
        %v2364 = vmul.f32 %v2140, %v2332
        %v2365 = vmul.f32 %v2141, %v2333
        %v2366 = vmul.f32 %v2142, %v2334
        %v2367 = vmul.f32 %v2143, %v2335
        %v2368 = vmul.f32 %v2144, %v2336
        %v2369 = vmul.f32 %v2145, %v2337
        %v2370 = vmul.f32 %v2146, %v2338
        %v2371 = vpack.c.bf16 %v2339, %v2339
        %v2372 = vpack.c.bf16 %v2340, %v2340
        %v2373 = vpack.c.bf16 %v2341, %v2341
        %v2374 = vpack.c.bf16 %v2342, %v2342
        %v2375 = vpack.c.bf16 %v2343, %v2343
        %v2376 = vpack.c.bf16 %v2344, %v2344
        %v2377 = vpack.c.bf16 %v2345, %v2345
        %v2378 = vpack.c.bf16 %v2346, %v2346
        %v2379 = vpack.c.bf16 %v2347, %v2347
        %v2380 = vpack.c.bf16 %v2348, %v2348
        %v2381 = vpack.c.bf16 %v2349, %v2349
        %v2382 = vpack.c.bf16 %v2350, %v2350
        %v2383 = vpack.c.bf16 %v2351, %v2351
        %v2384 = vpack.c.bf16 %v2352, %v2352
        %v2385 = vpack.c.bf16 %v2353, %v2353
        %v2386 = vpack.c.bf16 %v2354, %v2354
        %v2387 = vpack.c.bf16 %v2355, %v2355
        %v2388 = vpack.c.bf16 %v2356, %v2356
        %v2389 = vpack.c.bf16 %v2357, %v2357
        %v2390 = vpack.c.bf16 %v2358, %v2358
        %v2391 = vpack.c.bf16 %v2359, %v2359
        %v2392 = vpack.c.bf16 %v2360, %v2360
        %v2393 = vpack.c.bf16 %v2361, %v2361
        %v2394 = vpack.c.bf16 %v2362, %v2362
        %v2395 = vpack.c.bf16 %v2363, %v2363
        %v2396 = vpack.c.bf16 %v2364, %v2364
        %v2397 = vpack.c.bf16 %v2365, %v2365
        %v2398 = vpack.c.bf16 %v2366, %v2366
        %v2399 = vpack.c.bf16 %v2367, %v2367
        %v2400 = vpack.c.bf16 %v2368, %v2368
        %v2401 = vpack.c.bf16 %v2369, %v2369
        %v2402 = vpack.c.bf16 %v2370, %v2370
        %v2403 = vld [vmem:[#allocation2 + $0xa] sm:$0xff]
        %v2404 = vld [vmem:[#allocation2 + $0x12] sm:$0xff]
        %v2405 = vld [vmem:[#allocation2 + $0x1a] sm:$0xff]
        %v2406 = vld [vmem:[#allocation2 + $0x22] sm:$0xff]
        %v2407 = vld [vmem:[#allocation2 + $0x2a] sm:$0xff]
        %v2408 = vld [vmem:[#allocation2 + $0x32] sm:$0xff]
        %v2409 = vld [vmem:[#allocation2 + $0x3a] sm:$0xff]
        %v2410 = vld [vmem:[#allocation2 + $0x42] sm:$0xff]
        %v2411 = vld [vmem:[#allocation2 + $0x4a] sm:$0xff]
        %v2412 = vld [vmem:[#allocation2 + $0x52] sm:$0xff]
        %v2413 = vld [vmem:[#allocation2 + $0x5a] sm:$0xff]
        %v2414 = vld [vmem:[#allocation2 + $0x62] sm:$0xff]
        %v2415 = vld [vmem:[#allocation2 + $0x6a] sm:$0xff]
        %v2416 = vld [vmem:[#allocation2 + $0x72] sm:$0xff]
        %v2417 = vld [vmem:[#allocation2 + $0x7a] sm:$0xff]
        %v2418 = vld [vmem:[#allocation2 + $0x82] sm:$0xff]
        %v2419 = vld [vmem:[#allocation2 + $0x8a] sm:$0xff]
        %v2420 = vld [vmem:[#allocation2 + $0x92] sm:$0xff]
        %v2421 = vld [vmem:[#allocation2 + $0x9a] sm:$0xff]
        %v2422 = vld [vmem:[#allocation2 + $0xa2] sm:$0xff]
        %v2423 = vld [vmem:[#allocation2 + $0xaa] sm:$0xff]
        %v2424 = vld [vmem:[#allocation2 + $0xb2] sm:$0xff]
        %v2425 = vld [vmem:[#allocation2 + $0xba] sm:$0xff]
        %v2426 = vld [vmem:[#allocation2 + $0xc2] sm:$0xff]
        %v2427 = vld [vmem:[#allocation2 + $0xca] sm:$0xff]
        %v2428 = vld [vmem:[#allocation2 + $0xd2] sm:$0xff]
        %v2429 = vld [vmem:[#allocation2 + $0xda] sm:$0xff]
        %v2430 = vld [vmem:[#allocation2 + $0xe2] sm:$0xff]
        %v2431 = vld [vmem:[#allocation2 + $0xea] sm:$0xff]
        %v2432 = vld [vmem:[#allocation2 + $0xf2] sm:$0xff]
        %v2433 = vld [vmem:[#allocation2 + $0xfa] sm:$0xff]
        %v2434 = vld [vmem:[#allocation2 + $0x102] sm:$0xff]
        %v2435 = vadd.s32 %v963, 2
        %v2436 = vadd.s32 %v964, 2
        %v2437 = vadd.s32 %v965, 2
        %v2438 = vadd.s32 %v966, 2
        %v2439 = vadd.s32 %v967, 2
        %v2440 = vadd.s32 %v968, 2
        %v2441 = vadd.s32 %v969, 2
        %v2442 = vadd.s32 %v970, 2
        %v2443 = vadd.s32 %v971, 2
        %v2444 = vadd.s32 %v972, 2
        %v2445 = vadd.s32 %v973, 2
        %v2446 = vadd.s32 %v974, 2
        %v2447 = vadd.s32 %v975, 2
        %v2448 = vadd.s32 %v976, 2
        %v2449 = vadd.s32 %v977, 2
        %v2450 = vadd.s32 %v978, 2
        %v2451 = vadd.s32 %v979, 2
        %v2452 = vadd.s32 %v980, 2
        %v2453 = vadd.s32 %v981, 2
        %v2454 = vadd.s32 %v982, 2
        %v2455 = vadd.s32 %v983, 2
        %v2456 = vadd.s32 %v984, 2
        %v2457 = vadd.s32 %v985, 2
        %v2458 = vadd.s32 %v986, 2
        %v2459 = vadd.s32 %v987, 2
        %v2460 = vadd.s32 %v988, 2
        %v2461 = vadd.s32 %v989, 2
        %v2462 = vadd.s32 %v990, 2
        %v2463 = vadd.s32 %v991, 2
        %v2464 = vadd.s32 %v992, 2
        %v2465 = vadd.s32 %v993, 2
        %v2466 = vadd.s32 %v994, 2
        %vm2467 = vcmp.ge.s32.totalorder %v2435, 0
        %vm2468 = vcmp.ge.s32.totalorder %v2436, 0
        %vm2469 = vcmp.ge.s32.totalorder %v2437, 0
        %vm2470 = vcmp.ge.s32.totalorder %v2438, 0
        %vm2471 = vcmp.ge.s32.totalorder %v2439, 0
        %vm2472 = vcmp.ge.s32.totalorder %v2440, 0
        %vm2473 = vcmp.ge.s32.totalorder %v2441, 0
        %vm2474 = vcmp.ge.s32.totalorder %v2442, 0
        %vm2475 = vcmp.ge.s32.totalorder %v2443, 0
        %vm2476 = vcmp.ge.s32.totalorder %v2444, 0
        %vm2477 = vcmp.ge.s32.totalorder %v2445, 0
        %vm2478 = vcmp.ge.s32.totalorder %v2446, 0
        %vm2479 = vcmp.ge.s32.totalorder %v2447, 0
        %vm2480 = vcmp.ge.s32.totalorder %v2448, 0
        %vm2481 = vcmp.ge.s32.totalorder %v2449, 0
        %vm2482 = vcmp.ge.s32.totalorder %v2450, 0
        %vm2483 = vcmp.ge.s32.totalorder %v2451, 0
        %vm2484 = vcmp.ge.s32.totalorder %v2452, 0
        %vm2485 = vcmp.ge.s32.totalorder %v2453, 0
        %vm2486 = vcmp.ge.s32.totalorder %v2454, 0
        %vm2487 = vcmp.ge.s32.totalorder %v2455, 0
        %vm2488 = vcmp.ge.s32.totalorder %v2456, 0
        %vm2489 = vcmp.ge.s32.totalorder %v2457, 0
        %vm2490 = vcmp.ge.s32.totalorder %v2458, 0
        %vm2491 = vcmp.ge.s32.totalorder %v2459, 0
        %vm2492 = vcmp.ge.s32.totalorder %v2460, 0
        %vm2493 = vcmp.ge.s32.totalorder %v2461, 0
        %vm2494 = vcmp.ge.s32.totalorder %v2462, 0
        %vm2495 = vcmp.ge.s32.totalorder %v2463, 0
        %vm2496 = vcmp.ge.s32.totalorder %v2464, 0
        %vm2497 = vcmp.ge.s32.totalorder %v2465, 0
        %vm2498 = vcmp.ge.s32.totalorder %v2466, 0
        %vm2499 = vcmp.lt.s32.totalorder %v2435, 16
        %vm2500 = vcmp.lt.s32.totalorder %v2436, 16
        %vm2501 = vcmp.lt.s32.totalorder %v2437, 16
        %vm2502 = vcmp.lt.s32.totalorder %v2438, 16
        %vm2503 = vcmp.lt.s32.totalorder %v2439, 16
        %vm2504 = vcmp.lt.s32.totalorder %v2440, 16
        %vm2505 = vcmp.lt.s32.totalorder %v2441, 16
        %vm2506 = vcmp.lt.s32.totalorder %v2442, 16
        %vm2507 = vcmp.lt.s32.totalorder %v2443, 16
        %vm2508 = vcmp.lt.s32.totalorder %v2444, 16
        %vm2509 = vcmp.lt.s32.totalorder %v2445, 16
        %vm2510 = vcmp.lt.s32.totalorder %v2446, 16
        %vm2511 = vcmp.lt.s32.totalorder %v2447, 16
        %vm2512 = vcmp.lt.s32.totalorder %v2448, 16
        %vm2513 = vcmp.lt.s32.totalorder %v2449, 16
        %vm2514 = vcmp.lt.s32.totalorder %v2450, 16
        %vm2515 = vcmp.lt.s32.totalorder %v2451, 16
        %vm2516 = vcmp.lt.s32.totalorder %v2452, 16
        %vm2517 = vcmp.lt.s32.totalorder %v2453, 16
        %vm2518 = vcmp.lt.s32.totalorder %v2454, 16
        %vm2519 = vcmp.lt.s32.totalorder %v2455, 16
        %vm2520 = vcmp.lt.s32.totalorder %v2456, 16
        %vm2521 = vcmp.lt.s32.totalorder %v2457, 16
        %vm2522 = vcmp.lt.s32.totalorder %v2458, 16
        %vm2523 = vcmp.lt.s32.totalorder %v2459, 16
        %vm2524 = vcmp.lt.s32.totalorder %v2460, 16
        %vm2525 = vcmp.lt.s32.totalorder %v2461, 16
        %vm2526 = vcmp.lt.s32.totalorder %v2462, 16
        %vm2527 = vcmp.lt.s32.totalorder %v2463, 16
        %vm2528 = vcmp.lt.s32.totalorder %v2464, 16
        %vm2529 = vcmp.lt.s32.totalorder %v2465, 16
        %vm2530 = vcmp.lt.s32.totalorder %v2466, 16
        %vm2531 = vmand %vm2467, %vm2499
        %vm2532 = vmand %vm2468, %vm2500
        %vm2533 = vmand %vm2469, %vm2501
        %vm2534 = vmand %vm2470, %vm2502
        %vm2535 = vmand %vm2471, %vm2503
        %vm2536 = vmand %vm2472, %vm2504
        %vm2537 = vmand %vm2473, %vm2505
        %vm2538 = vmand %vm2474, %vm2506
        %vm2539 = vmand %vm2475, %vm2507
        %vm2540 = vmand %vm2476, %vm2508
        %vm2541 = vmand %vm2477, %vm2509
        %vm2542 = vmand %vm2478, %vm2510
        %vm2543 = vmand %vm2479, %vm2511
        %vm2544 = vmand %vm2480, %vm2512
        %vm2545 = vmand %vm2481, %vm2513
        %vm2546 = vmand %vm2482, %vm2514
        %vm2547 = vmand %vm2483, %vm2515
        %vm2548 = vmand %vm2484, %vm2516
        %vm2549 = vmand %vm2485, %vm2517
        %vm2550 = vmand %vm2486, %vm2518
        %vm2551 = vmand %vm2487, %vm2519
        %vm2552 = vmand %vm2488, %vm2520
        %vm2553 = vmand %vm2489, %vm2521
        %vm2554 = vmand %vm2490, %vm2522
        %vm2555 = vmand %vm2491, %vm2523
        %vm2556 = vmand %vm2492, %vm2524
        %vm2557 = vmand %vm2493, %vm2525
        %vm2558 = vmand %vm2494, %vm2526
        %vm2559 = vmand %vm2495, %vm2527
        %vm2560 = vmand %vm2496, %vm2528
        %vm2561 = vmand %vm2497, %vm2529
        %vm2562 = vmand %vm2498, %vm2530
        %v2563 = vsel %vm2531, 1, 0
        %v2564 = vsel %vm2532, 1, 0
        %v2565 = vsel %vm2533, 1, 0
        %v2566 = vsel %vm2534, 1, 0
        %v2567 = vsel %vm2535, 1, 0
        %v2568 = vsel %vm2536, 1, 0
        %v2569 = vsel %vm2537, 1, 0
        %v2570 = vsel %vm2538, 1, 0
        %v2571 = vsel %vm2539, 1, 0
        %v2572 = vsel %vm2540, 1, 0
        %v2573 = vsel %vm2541, 1, 0
        %v2574 = vsel %vm2542, 1, 0
        %v2575 = vsel %vm2543, 1, 0
        %v2576 = vsel %vm2544, 1, 0
        %v2577 = vsel %vm2545, 1, 0
        %v2578 = vsel %vm2546, 1, 0
        %v2579 = vsel %vm2547, 1, 0
        %v2580 = vsel %vm2548, 1, 0
        %v2581 = vsel %vm2549, 1, 0
        %v2582 = vsel %vm2550, 1, 0
        %v2583 = vsel %vm2551, 1, 0
        %v2584 = vsel %vm2552, 1, 0
        %v2585 = vsel %vm2553, 1, 0
        %v2586 = vsel %vm2554, 1, 0
        %v2587 = vsel %vm2555, 1, 0
        %v2588 = vsel %vm2556, 1, 0
        %v2589 = vsel %vm2557, 1, 0
        %v2590 = vsel %vm2558, 1, 0
        %v2591 = vsel %vm2559, 1, 0
        %v2592 = vsel %vm2560, 1, 0
        %v2593 = vsel %vm2561, 1, 0
        %v2594 = vsel %vm2562, 1, 0
        %v2595 = vcvt.s32.f32 %v2563
        %v2596 = vcvt.s32.f32 %v2564
        %v2597 = vcvt.s32.f32 %v2565
        %v2598 = vcvt.s32.f32 %v2566
        %v2599 = vcvt.s32.f32 %v2567
        %v2600 = vcvt.s32.f32 %v2568
        %v2601 = vcvt.s32.f32 %v2569
        %v2602 = vcvt.s32.f32 %v2570
        %v2603 = vcvt.s32.f32 %v2571
        %v2604 = vcvt.s32.f32 %v2572
        %v2605 = vcvt.s32.f32 %v2573
        %v2606 = vcvt.s32.f32 %v2574
        %v2607 = vcvt.s32.f32 %v2575
        %v2608 = vcvt.s32.f32 %v2576
        %v2609 = vcvt.s32.f32 %v2577
        %v2610 = vcvt.s32.f32 %v2578
        %v2611 = vcvt.s32.f32 %v2579
        %v2612 = vcvt.s32.f32 %v2580
        %v2613 = vcvt.s32.f32 %v2581
        %v2614 = vcvt.s32.f32 %v2582
        %v2615 = vcvt.s32.f32 %v2583
        %v2616 = vcvt.s32.f32 %v2584
        %v2617 = vcvt.s32.f32 %v2585
        %v2618 = vcvt.s32.f32 %v2586
        %v2619 = vcvt.s32.f32 %v2587
        %v2620 = vcvt.s32.f32 %v2588
        %v2621 = vcvt.s32.f32 %v2589
        %v2622 = vcvt.s32.f32 %v2590
        %v2623 = vcvt.s32.f32 %v2591
        %v2624 = vcvt.s32.f32 %v2592
        %v2625 = vcvt.s32.f32 %v2593
        %v2626 = vcvt.s32.f32 %v2594
        %v2627 = vmul.f32 %v2403, %v2595
        %v2628 = vmul.f32 %v2404, %v2596
        %v2629 = vmul.f32 %v2405, %v2597
        %v2630 = vmul.f32 %v2406, %v2598
        %v2631 = vmul.f32 %v2407, %v2599
        %v2632 = vmul.f32 %v2408, %v2600
        %v2633 = vmul.f32 %v2409, %v2601
        %v2634 = vmul.f32 %v2410, %v2602
        %v2635 = vmul.f32 %v2411, %v2603
        %v2636 = vmul.f32 %v2412, %v2604
        %v2637 = vmul.f32 %v2413, %v2605
        %v2638 = vmul.f32 %v2414, %v2606
        %v2639 = vmul.f32 %v2415, %v2607
        %v2640 = vmul.f32 %v2416, %v2608
        %v2641 = vmul.f32 %v2417, %v2609
        %v2642 = vmul.f32 %v2418, %v2610
        %v2643 = vmul.f32 %v2419, %v2611
        %v2644 = vmul.f32 %v2420, %v2612
        %v2645 = vmul.f32 %v2421, %v2613
        %v2646 = vmul.f32 %v2422, %v2614
        %v2647 = vmul.f32 %v2423, %v2615
        %v2648 = vmul.f32 %v2424, %v2616
        %v2649 = vmul.f32 %v2425, %v2617
        %v2650 = vmul.f32 %v2426, %v2618
        %v2651 = vmul.f32 %v2427, %v2619
        %v2652 = vmul.f32 %v2428, %v2620
        %v2653 = vmul.f32 %v2429, %v2621
        %v2654 = vmul.f32 %v2430, %v2622
        %v2655 = vmul.f32 %v2431, %v2623
        %v2656 = vmul.f32 %v2432, %v2624
        %v2657 = vmul.f32 %v2433, %v2625
        %v2658 = vmul.f32 %v2434, %v2626
        %v2659 = vpack.c.bf16 %v2627, %v2627
        %v2660 = vpack.c.bf16 %v2628, %v2628
        %v2661 = vpack.c.bf16 %v2629, %v2629
        %v2662 = vpack.c.bf16 %v2630, %v2630
        %v2663 = vpack.c.bf16 %v2631, %v2631
        %v2664 = vpack.c.bf16 %v2632, %v2632
        %v2665 = vpack.c.bf16 %v2633, %v2633
        %v2666 = vpack.c.bf16 %v2634, %v2634
        %v2667 = vpack.c.bf16 %v2635, %v2635
        %v2668 = vpack.c.bf16 %v2636, %v2636
        %v2669 = vpack.c.bf16 %v2637, %v2637
        %v2670 = vpack.c.bf16 %v2638, %v2638
        %v2671 = vpack.c.bf16 %v2639, %v2639
        %v2672 = vpack.c.bf16 %v2640, %v2640
        %v2673 = vpack.c.bf16 %v2641, %v2641
        %v2674 = vpack.c.bf16 %v2642, %v2642
        %v2675 = vpack.c.bf16 %v2643, %v2643
        %v2676 = vpack.c.bf16 %v2644, %v2644
        %v2677 = vpack.c.bf16 %v2645, %v2645
        %v2678 = vpack.c.bf16 %v2646, %v2646
        %v2679 = vpack.c.bf16 %v2647, %v2647
        %v2680 = vpack.c.bf16 %v2648, %v2648
        %v2681 = vpack.c.bf16 %v2649, %v2649
        %v2682 = vpack.c.bf16 %v2650, %v2650
        %v2683 = vpack.c.bf16 %v2651, %v2651
        %v2684 = vpack.c.bf16 %v2652, %v2652
        %v2685 = vpack.c.bf16 %v2653, %v2653
        %v2686 = vpack.c.bf16 %v2654, %v2654
        %v2687 = vpack.c.bf16 %v2655, %v2655
        %v2688 = vpack.c.bf16 %v2656, %v2656
        %v2689 = vpack.c.bf16 %v2657, %v2657
        %v2690 = vpack.c.bf16 %v2658, %v2658
        %v2691 = vld [vmem:[#allocation2 + $0xb] sm:$0xff]
        %v2692 = vld [vmem:[#allocation2 + $0x13] sm:$0xff]
        %v2693 = vld [vmem:[#allocation2 + $0x1b] sm:$0xff]
        %v2694 = vld [vmem:[#allocation2 + $0x23] sm:$0xff]
        %v2695 = vld [vmem:[#allocation2 + $0x2b] sm:$0xff]
        %v2696 = vld [vmem:[#allocation2 + $0x33] sm:$0xff]
        %v2697 = vld [vmem:[#allocation2 + $0x3b] sm:$0xff]
        %v2698 = vld [vmem:[#allocation2 + $0x43] sm:$0xff]
        %v2699 = vld [vmem:[#allocation2 + $0x4b] sm:$0xff]
        %v2700 = vld [vmem:[#allocation2 + $0x53] sm:$0xff]
        %v2701 = vld [vmem:[#allocation2 + $0x5b] sm:$0xff]
        %v2702 = vld [vmem:[#allocation2 + $0x63] sm:$0xff]
        %v2703 = vld [vmem:[#allocation2 + $0x6b] sm:$0xff]
        %v2704 = vld [vmem:[#allocation2 + $0x73] sm:$0xff]
        %v2705 = vld [vmem:[#allocation2 + $0x7b] sm:$0xff]
        %v2706 = vld [vmem:[#allocation2 + $0x83] sm:$0xff]
        %v2707 = vld [vmem:[#allocation2 + $0x8b] sm:$0xff]
        %v2708 = vld [vmem:[#allocation2 + $0x93] sm:$0xff]
        %v2709 = vld [vmem:[#allocation2 + $0x9b] sm:$0xff]
        %v2710 = vld [vmem:[#allocation2 + $0xa3] sm:$0xff]
        %v2711 = vld [vmem:[#allocation2 + $0xab] sm:$0xff]
        %v2712 = vld [vmem:[#allocation2 + $0xb3] sm:$0xff]
        %v2713 = vld [vmem:[#allocation2 + $0xbb] sm:$0xff]
        %v2714 = vld [vmem:[#allocation2 + $0xc3] sm:$0xff]
        %v2715 = vld [vmem:[#allocation2 + $0xcb] sm:$0xff]
        %v2716 = vld [vmem:[#allocation2 + $0xd3] sm:$0xff]
        %v2717 = vld [vmem:[#allocation2 + $0xdb] sm:$0xff]
        %v2718 = vld [vmem:[#allocation2 + $0xe3] sm:$0xff]
        %v2719 = vld [vmem:[#allocation2 + $0xeb] sm:$0xff]
        %v2720 = vld [vmem:[#allocation2 + $0xf3] sm:$0xff]
        %v2721 = vld [vmem:[#allocation2 + $0xfb] sm:$0xff]
        %v2722 = vld [vmem:[#allocation2 + $0x103] sm:$0xff]
        %v2723 = vadd.s32 %v963, 3
        %v2724 = vadd.s32 %v964, 3
        %v2725 = vadd.s32 %v965, 3
        %v2726 = vadd.s32 %v966, 3
        %v2727 = vadd.s32 %v967, 3
        %v2728 = vadd.s32 %v968, 3
        %v2729 = vadd.s32 %v969, 3
        %v2730 = vadd.s32 %v970, 3
        %v2731 = vadd.s32 %v971, 3
        %v2732 = vadd.s32 %v972, 3
        %v2733 = vadd.s32 %v973, 3
        %v2734 = vadd.s32 %v974, 3
        %v2735 = vadd.s32 %v975, 3
        %v2736 = vadd.s32 %v976, 3
        %v2737 = vadd.s32 %v977, 3
        %v2738 = vadd.s32 %v978, 3
        %v2739 = vadd.s32 %v979, 3
        %v2740 = vadd.s32 %v980, 3
        %v2741 = vadd.s32 %v981, 3
        %v2742 = vadd.s32 %v982, 3
        %v2743 = vadd.s32 %v983, 3
        %v2744 = vadd.s32 %v984, 3
        %v2745 = vadd.s32 %v985, 3
        %v2746 = vadd.s32 %v986, 3
        %v2747 = vadd.s32 %v987, 3
        %v2748 = vadd.s32 %v988, 3
        %v2749 = vadd.s32 %v989, 3
        %v2750 = vadd.s32 %v990, 3
        %v2751 = vadd.s32 %v991, 3
        %v2752 = vadd.s32 %v992, 3
        %v2753 = vadd.s32 %v993, 3
        %v2754 = vadd.s32 %v994, 3
        %vm2755 = vcmp.ge.s32.totalorder %v2723, 0
        %vm2756 = vcmp.ge.s32.totalorder %v2724, 0
        %vm2757 = vcmp.ge.s32.totalorder %v2725, 0
        %vm2758 = vcmp.ge.s32.totalorder %v2726, 0
        %vm2759 = vcmp.ge.s32.totalorder %v2727, 0
        %vm2760 = vcmp.ge.s32.totalorder %v2728, 0
        %vm2761 = vcmp.ge.s32.totalorder %v2729, 0
        %vm2762 = vcmp.ge.s32.totalorder %v2730, 0
        %vm2763 = vcmp.ge.s32.totalorder %v2731, 0
        %vm2764 = vcmp.ge.s32.totalorder %v2732, 0
        %vm2765 = vcmp.ge.s32.totalorder %v2733, 0
        %vm2766 = vcmp.ge.s32.totalorder %v2734, 0
        %vm2767 = vcmp.ge.s32.totalorder %v2735, 0
        %vm2768 = vcmp.ge.s32.totalorder %v2736, 0
        %vm2769 = vcmp.ge.s32.totalorder %v2737, 0
        %vm2770 = vcmp.ge.s32.totalorder %v2738, 0
        %vm2771 = vcmp.ge.s32.totalorder %v2739, 0
        %vm2772 = vcmp.ge.s32.totalorder %v2740, 0
        %vm2773 = vcmp.ge.s32.totalorder %v2741, 0
        %vm2774 = vcmp.ge.s32.totalorder %v2742, 0
        %vm2775 = vcmp.ge.s32.totalorder %v2743, 0
        %vm2776 = vcmp.ge.s32.totalorder %v2744, 0
        %vm2777 = vcmp.ge.s32.totalorder %v2745, 0
        %vm2778 = vcmp.ge.s32.totalorder %v2746, 0
        %vm2779 = vcmp.ge.s32.totalorder %v2747, 0
        %vm2780 = vcmp.ge.s32.totalorder %v2748, 0
        %vm2781 = vcmp.ge.s32.totalorder %v2749, 0
        %vm2782 = vcmp.ge.s32.totalorder %v2750, 0
        %vm2783 = vcmp.ge.s32.totalorder %v2751, 0
        %vm2784 = vcmp.ge.s32.totalorder %v2752, 0
        %vm2785 = vcmp.ge.s32.totalorder %v2753, 0
        %vm2786 = vcmp.ge.s32.totalorder %v2754, 0
        %vm2787 = vcmp.lt.s32.totalorder %v2723, 16
        %vm2788 = vcmp.lt.s32.totalorder %v2724, 16
        %vm2789 = vcmp.lt.s32.totalorder %v2725, 16
        %vm2790 = vcmp.lt.s32.totalorder %v2726, 16
        %vm2791 = vcmp.lt.s32.totalorder %v2727, 16
        %vm2792 = vcmp.lt.s32.totalorder %v2728, 16
        %vm2793 = vcmp.lt.s32.totalorder %v2729, 16
        %vm2794 = vcmp.lt.s32.totalorder %v2730, 16
        %vm2795 = vcmp.lt.s32.totalorder %v2731, 16
        %vm2796 = vcmp.lt.s32.totalorder %v2732, 16
        %vm2797 = vcmp.lt.s32.totalorder %v2733, 16
        %vm2798 = vcmp.lt.s32.totalorder %v2734, 16
        %vm2799 = vcmp.lt.s32.totalorder %v2735, 16
        %vm2800 = vcmp.lt.s32.totalorder %v2736, 16
        %vm2801 = vcmp.lt.s32.totalorder %v2737, 16
        %vm2802 = vcmp.lt.s32.totalorder %v2738, 16
        %vm2803 = vcmp.lt.s32.totalorder %v2739, 16
        %vm2804 = vcmp.lt.s32.totalorder %v2740, 16
        %vm2805 = vcmp.lt.s32.totalorder %v2741, 16
        %vm2806 = vcmp.lt.s32.totalorder %v2742, 16
        %vm2807 = vcmp.lt.s32.totalorder %v2743, 16
        %vm2808 = vcmp.lt.s32.totalorder %v2744, 16
        %vm2809 = vcmp.lt.s32.totalorder %v2745, 16
        %vm2810 = vcmp.lt.s32.totalorder %v2746, 16
        %vm2811 = vcmp.lt.s32.totalorder %v2747, 16
        %vm2812 = vcmp.lt.s32.totalorder %v2748, 16
        %vm2813 = vcmp.lt.s32.totalorder %v2749, 16
        %vm2814 = vcmp.lt.s32.totalorder %v2750, 16
        %vm2815 = vcmp.lt.s32.totalorder %v2751, 16
        %vm2816 = vcmp.lt.s32.totalorder %v2752, 16
        %vm2817 = vcmp.lt.s32.totalorder %v2753, 16
        %vm2818 = vcmp.lt.s32.totalorder %v2754, 16
        %vm2819 = vmand %vm2755, %vm2787
        %vm2820 = vmand %vm2756, %vm2788
        %vm2821 = vmand %vm2757, %vm2789
        %vm2822 = vmand %vm2758, %vm2790
        %vm2823 = vmand %vm2759, %vm2791
        %vm2824 = vmand %vm2760, %vm2792
        %vm2825 = vmand %vm2761, %vm2793
        %vm2826 = vmand %vm2762, %vm2794
        %vm2827 = vmand %vm2763, %vm2795
        %vm2828 = vmand %vm2764, %vm2796
        %vm2829 = vmand %vm2765, %vm2797
        %vm2830 = vmand %vm2766, %vm2798
        %vm2831 = vmand %vm2767, %vm2799
        %vm2832 = vmand %vm2768, %vm2800
        %vm2833 = vmand %vm2769, %vm2801
        %vm2834 = vmand %vm2770, %vm2802
        %vm2835 = vmand %vm2771, %vm2803
        %vm2836 = vmand %vm2772, %vm2804
        %vm2837 = vmand %vm2773, %vm2805
        %vm2838 = vmand %vm2774, %vm2806
        %vm2839 = vmand %vm2775, %vm2807
        %vm2840 = vmand %vm2776, %vm2808
        %vm2841 = vmand %vm2777, %vm2809
        %vm2842 = vmand %vm2778, %vm2810
        %vm2843 = vmand %vm2779, %vm2811
        %vm2844 = vmand %vm2780, %vm2812
        %vm2845 = vmand %vm2781, %vm2813
        %vm2846 = vmand %vm2782, %vm2814
        %vm2847 = vmand %vm2783, %vm2815
        %vm2848 = vmand %vm2784, %vm2816
        %vm2849 = vmand %vm2785, %vm2817
        %vm2850 = vmand %vm2786, %vm2818
        %v2851 = vsel %vm2819, 1, 0
        %v2852 = vsel %vm2820, 1, 0
        %v2853 = vsel %vm2821, 1, 0
        %v2854 = vsel %vm2822, 1, 0
        %v2855 = vsel %vm2823, 1, 0
        %v2856 = vsel %vm2824, 1, 0
        %v2857 = vsel %vm2825, 1, 0
        %v2858 = vsel %vm2826, 1, 0
        %v2859 = vsel %vm2827, 1, 0
        %v2860 = vsel %vm2828, 1, 0
        %v2861 = vsel %vm2829, 1, 0
        %v2862 = vsel %vm2830, 1, 0
        %v2863 = vsel %vm2831, 1, 0
        %v2864 = vsel %vm2832, 1, 0
        %v2865 = vsel %vm2833, 1, 0
        %v2866 = vsel %vm2834, 1, 0
        %v2867 = vsel %vm2835, 1, 0
        %v2868 = vsel %vm2836, 1, 0
        %v2869 = vsel %vm2837, 1, 0
        %v2870 = vsel %vm2838, 1, 0
        %v2871 = vsel %vm2839, 1, 0
        %v2872 = vsel %vm2840, 1, 0
        %v2873 = vsel %vm2841, 1, 0
        %v2874 = vsel %vm2842, 1, 0
        %v2875 = vsel %vm2843, 1, 0
        %v2876 = vsel %vm2844, 1, 0
        %v2877 = vsel %vm2845, 1, 0
        %v2878 = vsel %vm2846, 1, 0
        %v2879 = vsel %vm2847, 1, 0
        %v2880 = vsel %vm2848, 1, 0
        %v2881 = vsel %vm2849, 1, 0
        %v2882 = vsel %vm2850, 1, 0
        %v2883 = vcvt.s32.f32 %v2851
        %v2884 = vcvt.s32.f32 %v2852
        %v2885 = vcvt.s32.f32 %v2853
        %v2886 = vcvt.s32.f32 %v2854
        %v2887 = vcvt.s32.f32 %v2855
        %v2888 = vcvt.s32.f32 %v2856
        %v2889 = vcvt.s32.f32 %v2857
        %v2890 = vcvt.s32.f32 %v2858
        %v2891 = vcvt.s32.f32 %v2859
        %v2892 = vcvt.s32.f32 %v2860
        %v2893 = vcvt.s32.f32 %v2861
        %v2894 = vcvt.s32.f32 %v2862
        %v2895 = vcvt.s32.f32 %v2863
        %v2896 = vcvt.s32.f32 %v2864
        %v2897 = vcvt.s32.f32 %v2865
        %v2898 = vcvt.s32.f32 %v2866
        %v2899 = vcvt.s32.f32 %v2867
        %v2900 = vcvt.s32.f32 %v2868
        %v2901 = vcvt.s32.f32 %v2869
        %v2902 = vcvt.s32.f32 %v2870
        %v2903 = vcvt.s32.f32 %v2871
        %v2904 = vcvt.s32.f32 %v2872
        %v2905 = vcvt.s32.f32 %v2873
        %v2906 = vcvt.s32.f32 %v2874
        %v2907 = vcvt.s32.f32 %v2875
        %v2908 = vcvt.s32.f32 %v2876
        %v2909 = vcvt.s32.f32 %v2877
        %v2910 = vcvt.s32.f32 %v2878
        %v2911 = vcvt.s32.f32 %v2879
        %v2912 = vcvt.s32.f32 %v2880
        %v2913 = vcvt.s32.f32 %v2881
        %v2914 = vcvt.s32.f32 %v2882
        %v2915 = vmul.f32 %v2691, %v2883
        %v2916 = vmul.f32 %v2692, %v2884
        %v2917 = vmul.f32 %v2693, %v2885
        %v2918 = vmul.f32 %v2694, %v2886
        %v2919 = vmul.f32 %v2695, %v2887
        %v2920 = vmul.f32 %v2696, %v2888
        %v2921 = vmul.f32 %v2697, %v2889
        %v2922 = vmul.f32 %v2698, %v2890
        %v2923 = vmul.f32 %v2699, %v2891
        %v2924 = vmul.f32 %v2700, %v2892
        %v2925 = vmul.f32 %v2701, %v2893
        %v2926 = vmul.f32 %v2702, %v2894
        %v2927 = vmul.f32 %v2703, %v2895
        %v2928 = vmul.f32 %v2704, %v2896
        %v2929 = vmul.f32 %v2705, %v2897
        %v2930 = vmul.f32 %v2706, %v2898
        %v2931 = vmul.f32 %v2707, %v2899
        %v2932 = vmul.f32 %v2708, %v2900
        %v2933 = vmul.f32 %v2709, %v2901
        %v2934 = vmul.f32 %v2710, %v2902
        %v2935 = vmul.f32 %v2711, %v2903
        %v2936 = vmul.f32 %v2712, %v2904
        %v2937 = vmul.f32 %v2713, %v2905
        %v2938 = vmul.f32 %v2714, %v2906
        %v2939 = vmul.f32 %v2715, %v2907
        %v2940 = vmul.f32 %v2716, %v2908
        %v2941 = vmul.f32 %v2717, %v2909
        %v2942 = vmul.f32 %v2718, %v2910
        %v2943 = vmul.f32 %v2719, %v2911
        %v2944 = vmul.f32 %v2720, %v2912
        %v2945 = vmul.f32 %v2721, %v2913
        %v2946 = vmul.f32 %v2722, %v2914
        %v2947 = vpack.c.bf16 %v2915, %v2915
        %v2948 = vpack.c.bf16 %v2916, %v2916
        %v2949 = vpack.c.bf16 %v2917, %v2917
        %v2950 = vpack.c.bf16 %v2918, %v2918
        %v2951 = vpack.c.bf16 %v2919, %v2919
        %v2952 = vpack.c.bf16 %v2920, %v2920
        %v2953 = vpack.c.bf16 %v2921, %v2921
        %v2954 = vpack.c.bf16 %v2922, %v2922
        %v2955 = vpack.c.bf16 %v2923, %v2923
        %v2956 = vpack.c.bf16 %v2924, %v2924
        %v2957 = vpack.c.bf16 %v2925, %v2925
        %v2958 = vpack.c.bf16 %v2926, %v2926
        %v2959 = vpack.c.bf16 %v2927, %v2927
        %v2960 = vpack.c.bf16 %v2928, %v2928
        %v2961 = vpack.c.bf16 %v2929, %v2929
        %v2962 = vpack.c.bf16 %v2930, %v2930
        %v2963 = vpack.c.bf16 %v2931, %v2931
        %v2964 = vpack.c.bf16 %v2932, %v2932
        %v2965 = vpack.c.bf16 %v2933, %v2933
        %v2966 = vpack.c.bf16 %v2934, %v2934
        %v2967 = vpack.c.bf16 %v2935, %v2935
        %v2968 = vpack.c.bf16 %v2936, %v2936
        %v2969 = vpack.c.bf16 %v2937, %v2937
        %v2970 = vpack.c.bf16 %v2938, %v2938
        %v2971 = vpack.c.bf16 %v2939, %v2939
        %v2972 = vpack.c.bf16 %v2940, %v2940
        %v2973 = vpack.c.bf16 %v2941, %v2941
        %v2974 = vpack.c.bf16 %v2942, %v2942
        %v2975 = vpack.c.bf16 %v2943, %v2943
        %v2976 = vpack.c.bf16 %v2944, %v2944
        %v2977 = vpack.c.bf16 %v2945, %v2945
        %v2978 = vpack.c.bf16 %v2946, %v2946
        %v3011 = vunpack.c.l.b16 %v1251
        %v3012 = vunpack.c.l.b16 %v1252
        %v3013 = vunpack.c.l.b16 %v1253
        %v3014 = vunpack.c.l.b16 %v1254
        %v3015 = vunpack.c.l.b16 %v1255
        %v3016 = vunpack.c.l.b16 %v1256
        %v3017 = vunpack.c.l.b16 %v1257
        %v3018 = vunpack.c.l.b16 %v1258
        %v3019 = vunpack.c.l.b16 %v1259
        %v3020 = vunpack.c.l.b16 %v1260
        %v3021 = vunpack.c.l.b16 %v1261
        %v3022 = vunpack.c.l.b16 %v1262
        %v3023 = vunpack.c.l.b16 %v1263
        %v3024 = vunpack.c.l.b16 %v1264
        %v3025 = vunpack.c.l.b16 %v1265
        %v3026 = vunpack.c.l.b16 %v1266
        %v3027 = vunpack.c.l.b16 %v1267
        %v3028 = vunpack.c.l.b16 %v1268
        %v3029 = vunpack.c.l.b16 %v1269
        %v3030 = vunpack.c.l.b16 %v1270
        %v3031 = vunpack.c.l.b16 %v1271
        %v3032 = vunpack.c.l.b16 %v1272
        %v3033 = vunpack.c.l.b16 %v1273
        %v3034 = vunpack.c.l.b16 %v1274
        %v3035 = vunpack.c.l.b16 %v1275
        %v3036 = vunpack.c.l.b16 %v1276
        %v3037 = vunpack.c.l.b16 %v1277
        %v3038 = vunpack.c.l.b16 %v1278
        %v3039 = vunpack.c.l.b16 %v1279
        %v3040 = vunpack.c.l.b16 %v1280
        %v3041 = vunpack.c.l.b16 %v1281
        %v3042 = vunpack.c.l.b16 %v1282
        %v3043 = vpack.c.b16 %v3012, %v3011
        %v3044 = vpack.c.b16 %v3014, %v3013
        %v3045 = vpack.c.b16 %v3016, %v3015
        %v3046 = vpack.c.b16 %v3018, %v3017
        %v3047 = vpack.c.b16 %v3020, %v3019
        %v3048 = vpack.c.b16 %v3022, %v3021
        %v3049 = vpack.c.b16 %v3024, %v3023
        %v3050 = vpack.c.b16 %v3026, %v3025
        %v3051 = vpack.c.b16 %v3028, %v3027
        %v3052 = vpack.c.b16 %v3030, %v3029
        %v3053 = vpack.c.b16 %v3032, %v3031
        %v3054 = vpack.c.b16 %v3034, %v3033
        %v3055 = vpack.c.b16 %v3036, %v3035
        %v3056 = vpack.c.b16 %v3038, %v3037
        %v3057 = vpack.c.b16 %v3040, %v3039
        %v3058 = vpack.c.b16 %v3042, %v3041
        %v3107 = vunpack.c.l.b16 %v1539
        %v3108 = vunpack.c.l.b16 %v1540
        %v3109 = vunpack.c.l.b16 %v1541
        %v3110 = vunpack.c.l.b16 %v1542
        %v3111 = vunpack.c.l.b16 %v1543
        %v3112 = vunpack.c.l.b16 %v1544
        %v3113 = vunpack.c.l.b16 %v1545
        %v3114 = vunpack.c.l.b16 %v1546
        %v3115 = vunpack.c.l.b16 %v1547
        %v3116 = vunpack.c.l.b16 %v1548
        %v3117 = vunpack.c.l.b16 %v1549
        %v3118 = vunpack.c.l.b16 %v1550
        %v3119 = vunpack.c.l.b16 %v1551
        %v3120 = vunpack.c.l.b16 %v1552
        %v3121 = vunpack.c.l.b16 %v1553
        %v3122 = vunpack.c.l.b16 %v1554
        %v3123 = vunpack.c.l.b16 %v1555
        %v3124 = vunpack.c.l.b16 %v1556
        %v3125 = vunpack.c.l.b16 %v1557
        %v3126 = vunpack.c.l.b16 %v1558
        %v3127 = vunpack.c.l.b16 %v1559
        %v3128 = vunpack.c.l.b16 %v1560
        %v3129 = vunpack.c.l.b16 %v1561
        %v3130 = vunpack.c.l.b16 %v1562
        %v3131 = vunpack.c.l.b16 %v1563
        %v3132 = vunpack.c.l.b16 %v1564
        %v3133 = vunpack.c.l.b16 %v1565
        %v3134 = vunpack.c.l.b16 %v1566
        %v3135 = vunpack.c.l.b16 %v1567
        %v3136 = vunpack.c.l.b16 %v1568
        %v3137 = vunpack.c.l.b16 %v1569
        %v3138 = vunpack.c.l.b16 %v1570
        %v3139 = vpack.c.b16 %v3108, %v3107
        %v3140 = vpack.c.b16 %v3110, %v3109
        %v3141 = vpack.c.b16 %v3112, %v3111
        %v3142 = vpack.c.b16 %v3114, %v3113
        %v3143 = vpack.c.b16 %v3116, %v3115
        %v3144 = vpack.c.b16 %v3118, %v3117
        %v3145 = vpack.c.b16 %v3120, %v3119
        %v3146 = vpack.c.b16 %v3122, %v3121
        %v3147 = vpack.c.b16 %v3124, %v3123
        %v3148 = vpack.c.b16 %v3126, %v3125
        %v3149 = vpack.c.b16 %v3128, %v3127
        %v3150 = vpack.c.b16 %v3130, %v3129
        %v3151 = vpack.c.b16 %v3132, %v3131
        %v3152 = vpack.c.b16 %v3134, %v3133
        %v3153 = vpack.c.b16 %v3136, %v3135
        %v3154 = vpack.c.b16 %v3138, %v3137
        %v3203 = vunpack.c.l.b16 %v1827
        %v3204 = vunpack.c.l.b16 %v1828
        %v3205 = vunpack.c.l.b16 %v1829
        %v3206 = vunpack.c.l.b16 %v1830
        %v3207 = vunpack.c.l.b16 %v1831
        %v3208 = vunpack.c.l.b16 %v1832
        %v3209 = vunpack.c.l.b16 %v1833
        %v3210 = vunpack.c.l.b16 %v1834
        %v3211 = vunpack.c.l.b16 %v1835
        %v3212 = vunpack.c.l.b16 %v1836
        %v3213 = vunpack.c.l.b16 %v1837
        %v3214 = vunpack.c.l.b16 %v1838
        %v3215 = vunpack.c.l.b16 %v1839
        %v3216 = vunpack.c.l.b16 %v1840
        %v3217 = vunpack.c.l.b16 %v1841
        %v3218 = vunpack.c.l.b16 %v1842
        %v3219 = vunpack.c.l.b16 %v1843
        %v3220 = vunpack.c.l.b16 %v1844
        %v3221 = vunpack.c.l.b16 %v1845
        %v3222 = vunpack.c.l.b16 %v1846
        %v3223 = vunpack.c.l.b16 %v1847
        %v3224 = vunpack.c.l.b16 %v1848
        %v3225 = vunpack.c.l.b16 %v1849
        %v3226 = vunpack.c.l.b16 %v1850
        %v3227 = vunpack.c.l.b16 %v1851
        %v3228 = vunpack.c.l.b16 %v1852
        %v3229 = vunpack.c.l.b16 %v1853
        %v3230 = vunpack.c.l.b16 %v1854
        %v3231 = vunpack.c.l.b16 %v1855
        %v3232 = vunpack.c.l.b16 %v1856
        %v3233 = vunpack.c.l.b16 %v1857
        %v3234 = vunpack.c.l.b16 %v1858
        %v3235 = vpack.c.b16 %v3204, %v3203
        %v3236 = vpack.c.b16 %v3206, %v3205
        %v3237 = vpack.c.b16 %v3208, %v3207
        %v3238 = vpack.c.b16 %v3210, %v3209
        %v3239 = vpack.c.b16 %v3212, %v3211
        %v3240 = vpack.c.b16 %v3214, %v3213
        %v3241 = vpack.c.b16 %v3216, %v3215
        %v3242 = vpack.c.b16 %v3218, %v3217
        %v3243 = vpack.c.b16 %v3220, %v3219
        %v3244 = vpack.c.b16 %v3222, %v3221
        %v3245 = vpack.c.b16 %v3224, %v3223
        %v3246 = vpack.c.b16 %v3226, %v3225
        %v3247 = vpack.c.b16 %v3228, %v3227
        %v3248 = vpack.c.b16 %v3230, %v3229
        %v3249 = vpack.c.b16 %v3232, %v3231
        %v3250 = vpack.c.b16 %v3234, %v3233
        %v3299 = vunpack.c.l.b16 %v2083
        %v3300 = vunpack.c.l.b16 %v2084
        %v3301 = vunpack.c.l.b16 %v2085
        %v3302 = vunpack.c.l.b16 %v2086
        %v3303 = vunpack.c.l.b16 %v2087
        %v3304 = vunpack.c.l.b16 %v2088
        %v3305 = vunpack.c.l.b16 %v2089
        %v3306 = vunpack.c.l.b16 %v2090
        %v3307 = vunpack.c.l.b16 %v2091
        %v3308 = vunpack.c.l.b16 %v2092
        %v3309 = vunpack.c.l.b16 %v2093
        %v3310 = vunpack.c.l.b16 %v2094
        %v3311 = vunpack.c.l.b16 %v2095
        %v3312 = vunpack.c.l.b16 %v2096
        %v3313 = vunpack.c.l.b16 %v2097
        %v3314 = vunpack.c.l.b16 %v2098
        %v3315 = vunpack.c.l.b16 %v2099
        %v3316 = vunpack.c.l.b16 %v2100
        %v3317 = vunpack.c.l.b16 %v2101
        %v3318 = vunpack.c.l.b16 %v2102
        %v3319 = vunpack.c.l.b16 %v2103
        %v3320 = vunpack.c.l.b16 %v2104
        %v3321 = vunpack.c.l.b16 %v2105
        %v3322 = vunpack.c.l.b16 %v2106
        %v3323 = vunpack.c.l.b16 %v2107
        %v3324 = vunpack.c.l.b16 %v2108
        %v3325 = vunpack.c.l.b16 %v2109
        %v3326 = vunpack.c.l.b16 %v2110
        %v3327 = vunpack.c.l.b16 %v2111
        %v3328 = vunpack.c.l.b16 %v2112
        %v3329 = vunpack.c.l.b16 %v2113
        %v3330 = vunpack.c.l.b16 %v2114
        %v3331 = vpack.c.b16 %v3300, %v3299
        %v3332 = vpack.c.b16 %v3302, %v3301
        %v3333 = vpack.c.b16 %v3304, %v3303
        %v3334 = vpack.c.b16 %v3306, %v3305
        %v3335 = vpack.c.b16 %v3308, %v3307
        %v3336 = vpack.c.b16 %v3310, %v3309
        %v3337 = vpack.c.b16 %v3312, %v3311
        %v3338 = vpack.c.b16 %v3314, %v3313
        %v3339 = vpack.c.b16 %v3316, %v3315
        %v3340 = vpack.c.b16 %v3318, %v3317
        %v3341 = vpack.c.b16 %v3320, %v3319
        %v3342 = vpack.c.b16 %v3322, %v3321
        %v3343 = vpack.c.b16 %v3324, %v3323
        %v3344 = vpack.c.b16 %v3326, %v3325
        %v3345 = vpack.c.b16 %v3328, %v3327
        %v3346 = vpack.c.b16 %v3330, %v3329
        %v3395 = vunpack.c.l.b16 %v2371
        %v3396 = vunpack.c.l.b16 %v2372
        %v3397 = vunpack.c.l.b16 %v2373
        %v3398 = vunpack.c.l.b16 %v2374
        %v3399 = vunpack.c.l.b16 %v2375
        %v3400 = vunpack.c.l.b16 %v2376
        %v3401 = vunpack.c.l.b16 %v2377
        %v3402 = vunpack.c.l.b16 %v2378
        %v3403 = vunpack.c.l.b16 %v2379
        %v3404 = vunpack.c.l.b16 %v2380
        %v3405 = vunpack.c.l.b16 %v2381
        %v3406 = vunpack.c.l.b16 %v2382
        %v3407 = vunpack.c.l.b16 %v2383
        %v3408 = vunpack.c.l.b16 %v2384
        %v3409 = vunpack.c.l.b16 %v2385
        %v3410 = vunpack.c.l.b16 %v2386
        %v3411 = vunpack.c.l.b16 %v2387
        %v3412 = vunpack.c.l.b16 %v2388
        %v3413 = vunpack.c.l.b16 %v2389
        %v3414 = vunpack.c.l.b16 %v2390
        %v3415 = vunpack.c.l.b16 %v2391
        %v3416 = vunpack.c.l.b16 %v2392
        %v3417 = vunpack.c.l.b16 %v2393
        %v3418 = vunpack.c.l.b16 %v2394
        %v3419 = vunpack.c.l.b16 %v2395
        %v3420 = vunpack.c.l.b16 %v2396
        %v3421 = vunpack.c.l.b16 %v2397
        %v3422 = vunpack.c.l.b16 %v2398
        %v3423 = vunpack.c.l.b16 %v2399
        %v3424 = vunpack.c.l.b16 %v2400
        %v3425 = vunpack.c.l.b16 %v2401
        %v3426 = vunpack.c.l.b16 %v2402
        %v3427 = vpack.c.b16 %v3396, %v3395
        %v3428 = vpack.c.b16 %v3398, %v3397
        %v3429 = vpack.c.b16 %v3400, %v3399
        %v3430 = vpack.c.b16 %v3402, %v3401
        %v3431 = vpack.c.b16 %v3404, %v3403
        %v3432 = vpack.c.b16 %v3406, %v3405
        %v3433 = vpack.c.b16 %v3408, %v3407
        %v3434 = vpack.c.b16 %v3410, %v3409
        %v3435 = vpack.c.b16 %v3412, %v3411
        %v3436 = vpack.c.b16 %v3414, %v3413
        %v3437 = vpack.c.b16 %v3416, %v3415
        %v3438 = vpack.c.b16 %v3418, %v3417
        %v3439 = vpack.c.b16 %v3420, %v3419
        %v3440 = vpack.c.b16 %v3422, %v3421
        %v3441 = vpack.c.b16 %v3424, %v3423
        %v3442 = vpack.c.b16 %v3426, %v3425
        %v3491 = vunpack.c.l.b16 %v2659
        %v3492 = vunpack.c.l.b16 %v2660
        %v3493 = vunpack.c.l.b16 %v2661
        %v3494 = vunpack.c.l.b16 %v2662
        %v3495 = vunpack.c.l.b16 %v2663
        %v3496 = vunpack.c.l.b16 %v2664
        %v3497 = vunpack.c.l.b16 %v2665
        %v3498 = vunpack.c.l.b16 %v2666
        %v3499 = vunpack.c.l.b16 %v2667
        %v3500 = vunpack.c.l.b16 %v2668
        %v3501 = vunpack.c.l.b16 %v2669
        %v3502 = vunpack.c.l.b16 %v2670
        %v3503 = vunpack.c.l.b16 %v2671
        %v3504 = vunpack.c.l.b16 %v2672
        %v3505 = vunpack.c.l.b16 %v2673
        %v3506 = vunpack.c.l.b16 %v2674
        %v3507 = vunpack.c.l.b16 %v2675
        %v3508 = vunpack.c.l.b16 %v2676
        %v3509 = vunpack.c.l.b16 %v2677
        %v3510 = vunpack.c.l.b16 %v2678
        %v3511 = vunpack.c.l.b16 %v2679
        %v3512 = vunpack.c.l.b16 %v2680
        %v3513 = vunpack.c.l.b16 %v2681
        %v3514 = vunpack.c.l.b16 %v2682
        %v3515 = vunpack.c.l.b16 %v2683
        %v3516 = vunpack.c.l.b16 %v2684
        %v3517 = vunpack.c.l.b16 %v2685
        %v3518 = vunpack.c.l.b16 %v2686
        %v3519 = vunpack.c.l.b16 %v2687
        %v3520 = vunpack.c.l.b16 %v2688
        %v3521 = vunpack.c.l.b16 %v2689
        %v3522 = vunpack.c.l.b16 %v2690
        %v3523 = vpack.c.b16 %v3492, %v3491
        %v3524 = vpack.c.b16 %v3494, %v3493
        %v3525 = vpack.c.b16 %v3496, %v3495
        %v3526 = vpack.c.b16 %v3498, %v3497
        %v3527 = vpack.c.b16 %v3500, %v3499
        %v3528 = vpack.c.b16 %v3502, %v3501
        %v3529 = vpack.c.b16 %v3504, %v3503
        %v3530 = vpack.c.b16 %v3506, %v3505
        %v3531 = vpack.c.b16 %v3508, %v3507
        %v3532 = vpack.c.b16 %v3510, %v3509
        %v3533 = vpack.c.b16 %v3512, %v3511
        %v3534 = vpack.c.b16 %v3514, %v3513
        %v3535 = vpack.c.b16 %v3516, %v3515
        %v3536 = vpack.c.b16 %v3518, %v3517
        %v3537 = vpack.c.b16 %v3520, %v3519
        %v3538 = vpack.c.b16 %v3522, %v3521
        %v3587 = vunpack.c.l.b16 %v2947
        %v3588 = vunpack.c.l.b16 %v2948
        %v3589 = vunpack.c.l.b16 %v2949
        %v3590 = vunpack.c.l.b16 %v2950
        %v3591 = vunpack.c.l.b16 %v2951
        %v3592 = vunpack.c.l.b16 %v2952
        %v3593 = vunpack.c.l.b16 %v2953
        %v3594 = vunpack.c.l.b16 %v2954
        %v3595 = vunpack.c.l.b16 %v2955
        %v3596 = vunpack.c.l.b16 %v2956
        %v3597 = vunpack.c.l.b16 %v2957
        %v3598 = vunpack.c.l.b16 %v2958
        %v3599 = vunpack.c.l.b16 %v2959
        %v3600 = vunpack.c.l.b16 %v2960
        %v3601 = vunpack.c.l.b16 %v2961
        %v3602 = vunpack.c.l.b16 %v2962
        %v3603 = vunpack.c.l.b16 %v2963
        %v3604 = vunpack.c.l.b16 %v2964
        %v3605 = vunpack.c.l.b16 %v2965
        %v3606 = vunpack.c.l.b16 %v2966
        %v3607 = vunpack.c.l.b16 %v2967
        %v3608 = vunpack.c.l.b16 %v2968
        %v3609 = vunpack.c.l.b16 %v2969
        %v3610 = vunpack.c.l.b16 %v2970
        %v3611 = vunpack.c.l.b16 %v2971
        %v3612 = vunpack.c.l.b16 %v2972
        %v3613 = vunpack.c.l.b16 %v2973
        %v3614 = vunpack.c.l.b16 %v2974
        %v3615 = vunpack.c.l.b16 %v2975
        %v3616 = vunpack.c.l.b16 %v2976
        %v3617 = vunpack.c.l.b16 %v2977
        %v3618 = vunpack.c.l.b16 %v2978
        %v3619 = vpack.c.b16 %v3588, %v3587
        %v3620 = vpack.c.b16 %v3590, %v3589
        %v3621 = vpack.c.b16 %v3592, %v3591
        %v3622 = vpack.c.b16 %v3594, %v3593
        %v3623 = vpack.c.b16 %v3596, %v3595
        %v3624 = vpack.c.b16 %v3598, %v3597
        %v3625 = vpack.c.b16 %v3600, %v3599
        %v3626 = vpack.c.b16 %v3602, %v3601
        %v3627 = vpack.c.b16 %v3604, %v3603
        %v3628 = vpack.c.b16 %v3606, %v3605
        %v3629 = vpack.c.b16 %v3608, %v3607
        %v3630 = vpack.c.b16 %v3610, %v3609
        %v3631 = vpack.c.b16 %v3612, %v3611
        %v3632 = vpack.c.b16 %v3614, %v3613
        %v3633 = vpack.c.b16 %v3616, %v3615
        %v3634 = vpack.c.b16 %v3618, %v3617
        %v3651 = vld [vmem:[#allocation3] sm:$0xf]
        %v3652 = vld [vmem:[#allocation3 + $0x4] sm:$0xf]
        %v3653 = vld [vmem:[#allocation3 + $0x8] sm:$0xf]
        %v3654 = vld [vmem:[#allocation3 + $0xc] sm:$0xf]
        %v3655 = vld [vmem:[#allocation3 + $0x10] sm:$0xf]
        %v3656 = vld [vmem:[#allocation3 + $0x14] sm:$0xf]
        %v3657 = vld [vmem:[#allocation3 + $0x18] sm:$0xf]
        %v3658 = vld [vmem:[#allocation3 + $0x1c] sm:$0xf]
        %v3659 = vld [vmem:[#allocation3 + $0x20] sm:$0xf]
        %v3660 = vld [vmem:[#allocation3 + $0x24] sm:$0xf]
        %v3661 = vld [vmem:[#allocation3 + $0x28] sm:$0xf]
        %v3662 = vld [vmem:[#allocation3 + $0x2c] sm:$0xf]
        %v3663 = vld [vmem:[#allocation3 + $0x30] sm:$0xf]
        %v3664 = vld [vmem:[#allocation3 + $0x34] sm:$0xf]
        %v3665 = vld [vmem:[#allocation3 + $0x38] sm:$0xf]
        %v3666 = vld [vmem:[#allocation3 + $0x3c] sm:$0xf]
        %v3667 = vld [vmem:[#allocation3 + $0x40] sm:$0xf]
        %v3668 = vld [vmem:[#allocation3 + $0x44] sm:$0xf]
        %v3669 = vld [vmem:[#allocation3 + $0x48] sm:$0xf]
        %v3670 = vld [vmem:[#allocation3 + $0x4c] sm:$0xf]
        %v3671 = vld [vmem:[#allocation3 + $0x50] sm:$0xf]
        %v3672 = vld [vmem:[#allocation3 + $0x54] sm:$0xf]
        %v3673 = vld [vmem:[#allocation3 + $0x58] sm:$0xf]
        %v3674 = vld [vmem:[#allocation3 + $0x5c] sm:$0xf]
        %v3675 = vld [vmem:[#allocation3 + $0x60] sm:$0xf]
        %v3676 = vld [vmem:[#allocation3 + $0x64] sm:$0xf]
        %v3677 = vld [vmem:[#allocation3 + $0x68] sm:$0xf]
        %v3678 = vld [vmem:[#allocation3 + $0x6c] sm:$0xf]
        %v3679 = vld [vmem:[#allocation3 + $0x70] sm:$0xf]
        %v3680 = vld [vmem:[#allocation3 + $0x74] sm:$0xf]
        %v3681 = vld [vmem:[#allocation3 + $0x78] sm:$0xf]
        %v3682 = vld [vmem:[#allocation3 + $0x7c] sm:$0xf]
        %v3683 = vld [vmem:[#allocation3 + $0x80] sm:$0xf]
        %v3684 = vld [vmem:[#allocation3 + $0x84] sm:$0xf]
        %v3685 = vld [vmem:[#allocation3 + $0x88] sm:$0xf]
        %v3686 = vld [vmem:[#allocation3 + $0x8c] sm:$0xf]
        %v3687 = vld [vmem:[#allocation3 + $0x90] sm:$0xf]
        %v3688 = vld [vmem:[#allocation3 + $0x94] sm:$0xf]
        %v3689 = vld [vmem:[#allocation3 + $0x98] sm:$0xf]
        %v3690 = vld [vmem:[#allocation3 + $0x9c] sm:$0xf]
        %v3691 = vld [vmem:[#allocation3 + $0xa0] sm:$0xf]
        %v3692 = vld [vmem:[#allocation3 + $0xa4] sm:$0xf]
        %v3693 = vld [vmem:[#allocation3 + $0xa8] sm:$0xf]
        %v3694 = vld [vmem:[#allocation3 + $0xac] sm:$0xf]
        %v3695 = vld [vmem:[#allocation3 + $0xb0] sm:$0xf]
        %v3696 = vld [vmem:[#allocation3 + $0xb4] sm:$0xf]
        %v3697 = vld [vmem:[#allocation3 + $0xb8] sm:$0xf]
        %v3698 = vld [vmem:[#allocation3 + $0xbc] sm:$0xf]
        %v3699 = vld [vmem:[#allocation3 + $0xc0] sm:$0xf]
        %v3700 = vld [vmem:[#allocation3 + $0xc4] sm:$0xf]
        %v3701 = vld [vmem:[#allocation3 + $0xc8] sm:$0xf]
        %v3702 = vld [vmem:[#allocation3 + $0xcc] sm:$0xf]
        %v3703 = vld [vmem:[#allocation3 + $0xd0] sm:$0xf]
        %v3704 = vld [vmem:[#allocation3 + $0xd4] sm:$0xf]
        %v3705 = vld [vmem:[#allocation3 + $0xd8] sm:$0xf]
        %v3706 = vld [vmem:[#allocation3 + $0xdc] sm:$0xf]
        %v3707 = vld [vmem:[#allocation3 + $0xe0] sm:$0xf]
        %v3708 = vld [vmem:[#allocation3 + $0xe4] sm:$0xf]
        %v3709 = vld [vmem:[#allocation3 + $0xe8] sm:$0xf]
        %v3710 = vld [vmem:[#allocation3 + $0xec] sm:$0xf]
        %v3711 = vld [vmem:[#allocation3 + $0xf0] sm:$0xf]
        %v3712 = vld [vmem:[#allocation3 + $0xf4] sm:$0xf]
        %v3713 = vld [vmem:[#allocation3 + $0xf8] sm:$0xf]
        %v3714 = vld [vmem:[#allocation3 + $0xfc] sm:$0xf]
        %v3715 = vld [vmem:[#allocation3 + $0x100] sm:$0xf]
        %v3716 = vld [vmem:[#allocation3 + $0x104] sm:$0xf]
        %v3717 = vld [vmem:[#allocation3 + $0x108] sm:$0xf]
        %v3718 = vld [vmem:[#allocation3 + $0x10c] sm:$0xf]
        %v3719 = vld [vmem:[#allocation3 + $0x110] sm:$0xf]
        %v3720 = vld [vmem:[#allocation3 + $0x114] sm:$0xf]
        %v3721 = vld [vmem:[#allocation3 + $0x118] sm:$0xf]
        %v3722 = vld [vmem:[#allocation3 + $0x11c] sm:$0xf]
        %v3723 = vld [vmem:[#allocation3 + $0x120] sm:$0xf]
        %v3724 = vld [vmem:[#allocation3 + $0x124] sm:$0xf]
        %v3725 = vld [vmem:[#allocation3 + $0x128] sm:$0xf]
        %v3726 = vld [vmem:[#allocation3 + $0x12c] sm:$0xf]
        %v3727 = vld [vmem:[#allocation3 + $0x130] sm:$0xf]
        %v3728 = vld [vmem:[#allocation3 + $0x134] sm:$0xf]
        %v3729 = vld [vmem:[#allocation3 + $0x138] sm:$0xf]
        %v3730 = vld [vmem:[#allocation3 + $0x13c] sm:$0xf]
        %v3731 = vld [vmem:[#allocation3 + $0x140] sm:$0xf]
        %v3732 = vld [vmem:[#allocation3 + $0x144] sm:$0xf]
        %v3733 = vld [vmem:[#allocation3 + $0x148] sm:$0xf]
        %v3734 = vld [vmem:[#allocation3 + $0x14c] sm:$0xf]
        %v3735 = vld [vmem:[#allocation3 + $0x150] sm:$0xf]
        %v3736 = vld [vmem:[#allocation3 + $0x154] sm:$0xf]
        %v3737 = vld [vmem:[#allocation3 + $0x158] sm:$0xf]
        %v3738 = vld [vmem:[#allocation3 + $0x15c] sm:$0xf]
        %v3739 = vld [vmem:[#allocation3 + $0x160] sm:$0xf]
        %v3740 = vld [vmem:[#allocation3 + $0x164] sm:$0xf]
        %v3741 = vld [vmem:[#allocation3 + $0x168] sm:$0xf]
        %v3742 = vld [vmem:[#allocation3 + $0x16c] sm:$0xf]
        %v3743 = vld [vmem:[#allocation3 + $0x170] sm:$0xf]
        %v3744 = vld [vmem:[#allocation3 + $0x174] sm:$0xf]
        %v3745 = vld [vmem:[#allocation3 + $0x178] sm:$0xf]
        %v3746 = vld [vmem:[#allocation3 + $0x17c] sm:$0xf]
        %v3747 = vld [vmem:[#allocation3 + $0x180] sm:$0xf]
        %v3748 = vld [vmem:[#allocation3 + $0x184] sm:$0xf]
        %v3749 = vld [vmem:[#allocation3 + $0x188] sm:$0xf]
        %v3750 = vld [vmem:[#allocation3 + $0x18c] sm:$0xf]
        %v3751 = vld [vmem:[#allocation3 + $0x190] sm:$0xf]
        %v3752 = vld [vmem:[#allocation3 + $0x194] sm:$0xf]
        %v3753 = vld [vmem:[#allocation3 + $0x198] sm:$0xf]
        %v3754 = vld [vmem:[#allocation3 + $0x19c] sm:$0xf]
        %v3755 = vld [vmem:[#allocation3 + $0x1a0] sm:$0xf]
        %v3756 = vld [vmem:[#allocation3 + $0x1a4] sm:$0xf]
        %v3757 = vld [vmem:[#allocation3 + $0x1a8] sm:$0xf]
        %v3758 = vld [vmem:[#allocation3 + $0x1ac] sm:$0xf]
        %v3759 = vld [vmem:[#allocation3 + $0x1b0] sm:$0xf]
        %v3760 = vld [vmem:[#allocation3 + $0x1b4] sm:$0xf]
        %v3761 = vld [vmem:[#allocation3 + $0x1b8] sm:$0xf]
        %v3762 = vld [vmem:[#allocation3 + $0x1bc] sm:$0xf]
        %v3875 = vunpack.c.l.b16 %v3651
        %v3876 = vunpack.c.l.b16 %v3652
        %v3877 = vunpack.c.l.b16 %v3653
        %v3878 = vunpack.c.l.b16 %v3654
        %v3879 = vunpack.c.l.b16 %v3655
        %v3880 = vunpack.c.l.b16 %v3656
        %v3881 = vunpack.c.l.b16 %v3657
        %v3882 = vunpack.c.l.b16 %v3658
        %v3883 = vunpack.c.l.b16 %v3659
        %v3884 = vunpack.c.l.b16 %v3660
        %v3885 = vunpack.c.l.b16 %v3661
        %v3886 = vunpack.c.l.b16 %v3662
        %v3887 = vunpack.c.l.b16 %v3663
        %v3888 = vunpack.c.l.b16 %v3664
        %v3889 = vunpack.c.l.b16 %v3665
        %v3890 = vunpack.c.l.b16 %v3666
        %v3891 = vunpack.c.l.b16 %v3667
        %v3892 = vunpack.c.l.b16 %v3668
        %v3893 = vunpack.c.l.b16 %v3669
        %v3894 = vunpack.c.l.b16 %v3670
        %v3895 = vunpack.c.l.b16 %v3671
        %v3896 = vunpack.c.l.b16 %v3672
        %v3897 = vunpack.c.l.b16 %v3673
        %v3898 = vunpack.c.l.b16 %v3674
        %v3899 = vunpack.c.l.b16 %v3675
        %v3900 = vunpack.c.l.b16 %v3676
        %v3901 = vunpack.c.l.b16 %v3677
        %v3902 = vunpack.c.l.b16 %v3678
        %v3903 = vunpack.c.l.b16 %v3679
        %v3904 = vunpack.c.l.b16 %v3680
        %v3905 = vunpack.c.l.b16 %v3681
        %v3906 = vunpack.c.l.b16 %v3682
        %v3907 = vunpack.c.l.b16 %v3683
        %v3908 = vunpack.c.l.b16 %v3684
        %v3909 = vunpack.c.l.b16 %v3685
        %v3910 = vunpack.c.l.b16 %v3686
        %v3911 = vunpack.c.l.b16 %v3687
        %v3912 = vunpack.c.l.b16 %v3688
        %v3913 = vunpack.c.l.b16 %v3689
        %v3914 = vunpack.c.l.b16 %v3690
        %v3915 = vunpack.c.l.b16 %v3691
        %v3916 = vunpack.c.l.b16 %v3692
        %v3917 = vunpack.c.l.b16 %v3693
        %v3918 = vunpack.c.l.b16 %v3694
        %v3919 = vunpack.c.l.b16 %v3695
        %v3920 = vunpack.c.l.b16 %v3696
        %v3921 = vunpack.c.l.b16 %v3697
        %v3922 = vunpack.c.l.b16 %v3698
        %v3923 = vunpack.c.l.b16 %v3699
        %v3924 = vunpack.c.l.b16 %v3700
        %v3925 = vunpack.c.l.b16 %v3701
        %v3926 = vunpack.c.l.b16 %v3702
        %v3927 = vunpack.c.l.b16 %v3703
        %v3928 = vunpack.c.l.b16 %v3704
        %v3929 = vunpack.c.l.b16 %v3705
        %v3930 = vunpack.c.l.b16 %v3706
        %v3931 = vunpack.c.l.b16 %v3707
        %v3932 = vunpack.c.l.b16 %v3708
        %v3933 = vunpack.c.l.b16 %v3709
        %v3934 = vunpack.c.l.b16 %v3710
        %v3935 = vunpack.c.l.b16 %v3711
        %v3936 = vunpack.c.l.b16 %v3712
        %v3937 = vunpack.c.l.b16 %v3713
        %v3938 = vunpack.c.l.b16 %v3714
        %v3939 = vunpack.c.l.b16 %v3715
        %v3940 = vunpack.c.l.b16 %v3716
        %v3941 = vunpack.c.l.b16 %v3717
        %v3942 = vunpack.c.l.b16 %v3718
        %v3943 = vunpack.c.l.b16 %v3719
        %v3944 = vunpack.c.l.b16 %v3720
        %v3945 = vunpack.c.l.b16 %v3721
        %v3946 = vunpack.c.l.b16 %v3722
        %v3947 = vunpack.c.l.b16 %v3723
        %v3948 = vunpack.c.l.b16 %v3724
        %v3949 = vunpack.c.l.b16 %v3725
        %v3950 = vunpack.c.l.b16 %v3726
        %v3951 = vunpack.c.l.b16 %v3727
        %v3952 = vunpack.c.l.b16 %v3728
        %v3953 = vunpack.c.l.b16 %v3729
        %v3954 = vunpack.c.l.b16 %v3730
        %v3955 = vunpack.c.l.b16 %v3731
        %v3956 = vunpack.c.l.b16 %v3732
        %v3957 = vunpack.c.l.b16 %v3733
        %v3958 = vunpack.c.l.b16 %v3734
        %v3959 = vunpack.c.l.b16 %v3735
        %v3960 = vunpack.c.l.b16 %v3736
        %v3961 = vunpack.c.l.b16 %v3737
        %v3962 = vunpack.c.l.b16 %v3738
        %v3963 = vunpack.c.l.b16 %v3739
        %v3964 = vunpack.c.l.b16 %v3740
        %v3965 = vunpack.c.l.b16 %v3741
        %v3966 = vunpack.c.l.b16 %v3742
        %v3967 = vunpack.c.l.b16 %v3743
        %v3968 = vunpack.c.l.b16 %v3744
        %v3969 = vunpack.c.l.b16 %v3745
        %v3970 = vunpack.c.l.b16 %v3746
        %v3971 = vunpack.c.l.b16 %v3747
        %v3972 = vunpack.c.l.b16 %v3748
        %v3973 = vunpack.c.l.b16 %v3749
        %v3974 = vunpack.c.l.b16 %v3750
        %v3975 = vunpack.c.l.b16 %v3751
        %v3976 = vunpack.c.l.b16 %v3752
        %v3977 = vunpack.c.l.b16 %v3753
        %v3978 = vunpack.c.l.b16 %v3754
        %v3979 = vunpack.c.l.b16 %v3755
        %v3980 = vunpack.c.l.b16 %v3756
        %v3981 = vunpack.c.l.b16 %v3757
        %v3982 = vunpack.c.l.b16 %v3758
        %v3983 = vunpack.c.l.b16 %v3759
        %v3984 = vunpack.c.l.b16 %v3760
        %v3985 = vunpack.c.l.b16 %v3761
        %v3986 = vunpack.c.l.b16 %v3762
        %v3987 = vpack.c.b16 %v3876, %v3875
        %v3988 = vpack.c.b16 %v3878, %v3877
        %v3989 = vpack.c.b16 %v3880, %v3879
        %v3990 = vpack.c.b16 %v3882, %v3881
        %v3991 = vpack.c.b16 %v3884, %v3883
        %v3992 = vpack.c.b16 %v3886, %v3885
        %v3993 = vpack.c.b16 %v3888, %v3887
        %v3994 = vpack.c.b16 %v3890, %v3889
        %v3995 = vpack.c.b16 %v3892, %v3891
        %v3996 = vpack.c.b16 %v3894, %v3893
        %v3997 = vpack.c.b16 %v3896, %v3895
        %v3998 = vpack.c.b16 %v3898, %v3897
        %v3999 = vpack.c.b16 %v3900, %v3899
        %v4000 = vpack.c.b16 %v3902, %v3901
        %v4001 = vpack.c.b16 %v3904, %v3903
        %v4002 = vpack.c.b16 %v3906, %v3905
        %v4003 = vpack.c.b16 %v3908, %v3907
        %v4004 = vpack.c.b16 %v3910, %v3909
        %v4005 = vpack.c.b16 %v3912, %v3911
        %v4006 = vpack.c.b16 %v3914, %v3913
        %v4007 = vpack.c.b16 %v3916, %v3915
        %v4008 = vpack.c.b16 %v3918, %v3917
        %v4009 = vpack.c.b16 %v3920, %v3919
        %v4010 = vpack.c.b16 %v3922, %v3921
        %v4011 = vpack.c.b16 %v3924, %v3923
        %v4012 = vpack.c.b16 %v3926, %v3925
        %v4013 = vpack.c.b16 %v3928, %v3927
        %v4014 = vpack.c.b16 %v3930, %v3929
        %v4015 = vpack.c.b16 %v3932, %v3931
        %v4016 = vpack.c.b16 %v3934, %v3933
        %v4017 = vpack.c.b16 %v3936, %v3935
        %v4018 = vpack.c.b16 %v3938, %v3937
        %v4019 = vpack.c.b16 %v3940, %v3939
        %v4020 = vpack.c.b16 %v3942, %v3941
        %v4021 = vpack.c.b16 %v3944, %v3943
        %v4022 = vpack.c.b16 %v3946, %v3945
        %v4023 = vpack.c.b16 %v3948, %v3947
        %v4024 = vpack.c.b16 %v3950, %v3949
        %v4025 = vpack.c.b16 %v3952, %v3951
        %v4026 = vpack.c.b16 %v3954, %v3953
        %v4027 = vpack.c.b16 %v3956, %v3955
        %v4028 = vpack.c.b16 %v3958, %v3957
        %v4029 = vpack.c.b16 %v3960, %v3959
        %v4030 = vpack.c.b16 %v3962, %v3961
        %v4031 = vpack.c.b16 %v3964, %v3963
        %v4032 = vpack.c.b16 %v3966, %v3965
        %v4033 = vpack.c.b16 %v3968, %v3967
        %v4034 = vpack.c.b16 %v3970, %v3969
        %v4035 = vpack.c.b16 %v3972, %v3971
        %v4036 = vpack.c.b16 %v3974, %v3973
        %v4037 = vpack.c.b16 %v3976, %v3975
        %v4038 = vpack.c.b16 %v3978, %v3977
        %v4039 = vpack.c.b16 %v3980, %v3979
        %v4040 = vpack.c.b16 %v3982, %v3981
        %v4041 = vpack.c.b16 %v3984, %v3983
        %v4042 = vpack.c.b16 %v3986, %v3985
        %4099 = vmatpush.bf16.msra.mxu0 %v3994
        %4100 = vmatpush.bf16.msra.mxu0 %v3993
        %4101 = vmatpush.bf16.msra.mxu0 %v3992
        %4102 = vmatpush.bf16.msra.mxu0 %v3991
        %4103 = vmatpush.bf16.msra.mxu0 %v3990
        %4104 = vmatpush.bf16.msra.mxu0 %v3989
        %4105 = vmatpush.bf16.msra.mxu0 %v3988
        %4106 = vmatpush.bf16.msra.mxu0 %v3987
        %4107 = vmatmul.bf16.gmra.mxu0 %v3043
        %v4108 = vpop.f32.mrf.mxu0
        %v4109 = vadd.f32 0.0, %v4108
        %v4110 = vpop.f32.mrf.mxu0
        %v4111 = vadd.f32 0.0, %v4110
        %4112 = vmatmul.bf16.gmra.mxu0 %v3044
        %v4113 = vpop.f32.mrf.mxu0
        %v4114 = vadd.f32 0.0, %v4113
        %v4115 = vpop.f32.mrf.mxu0
        %v4116 = vadd.f32 0.0, %v4115
        %4117 = vmatmul.bf16.gmra.mxu0 %v3045
        %v4118 = vpop.f32.mrf.mxu0
        %v4119 = vadd.f32 0.0, %v4118
        %v4120 = vpop.f32.mrf.mxu0
        %v4121 = vadd.f32 0.0, %v4120
        %4122 = vmatmul.bf16.gmra.mxu0 %v3046
        %v4123 = vpop.f32.mrf.mxu0
        %v4124 = vadd.f32 0.0, %v4123
        %v4125 = vpop.f32.mrf.mxu0
        %v4126 = vadd.f32 0.0, %v4125
        %4127 = vmatmul.bf16.gmra.mxu0 %v3047
        %v4128 = vpop.f32.mrf.mxu0
        %v4129 = vadd.f32 0.0, %v4128
        %v4130 = vpop.f32.mrf.mxu0
        %v4131 = vadd.f32 0.0, %v4130
        %4132 = vmatmul.bf16.gmra.mxu0 %v3048
        %v4133 = vpop.f32.mrf.mxu0
        %v4134 = vadd.f32 0.0, %v4133
        %v4135 = vpop.f32.mrf.mxu0
        %v4136 = vadd.f32 0.0, %v4135
        %4137 = vmatmul.bf16.gmra.mxu0 %v3049
        %v4138 = vpop.f32.mrf.mxu0
        %v4139 = vadd.f32 0.0, %v4138
        %v4140 = vpop.f32.mrf.mxu0
        %v4141 = vadd.f32 0.0, %v4140
        %4142 = vmatmul.bf16.gmra.mxu0 %v3050
        %v4143 = vpop.f32.mrf.mxu0
        %v4144 = vadd.f32 0.0, %v4143
        %v4145 = vpop.f32.mrf.mxu0
        %v4146 = vadd.f32 0.0, %v4145
        %4147 = vmatmul.bf16.gmra.mxu0 %v3051
        %v4148 = vpop.f32.mrf.mxu0
        %v4149 = vadd.f32 0.0, %v4148
        %v4150 = vpop.f32.mrf.mxu0
        %v4151 = vadd.f32 0.0, %v4150
        %4152 = vmatmul.bf16.gmra.mxu0 %v3052
        %v4153 = vpop.f32.mrf.mxu0
        %v4154 = vadd.f32 0.0, %v4153
        %v4155 = vpop.f32.mrf.mxu0
        %v4156 = vadd.f32 0.0, %v4155
        %4157 = vmatmul.bf16.gmra.mxu0 %v3053
        %v4158 = vpop.f32.mrf.mxu0
        %v4159 = vadd.f32 0.0, %v4158
        %v4160 = vpop.f32.mrf.mxu0
        %v4161 = vadd.f32 0.0, %v4160
        %4162 = vmatmul.bf16.gmra.mxu0 %v3054
        %v4163 = vpop.f32.mrf.mxu0
        %v4164 = vadd.f32 0.0, %v4163
        %v4165 = vpop.f32.mrf.mxu0
        %v4166 = vadd.f32 0.0, %v4165
        %4167 = vmatmul.bf16.gmra.mxu0 %v3055
        %v4168 = vpop.f32.mrf.mxu0
        %v4169 = vadd.f32 0.0, %v4168
        %v4170 = vpop.f32.mrf.mxu0
        %v4171 = vadd.f32 0.0, %v4170
        %4172 = vmatmul.bf16.gmra.mxu0 %v3056
        %v4173 = vpop.f32.mrf.mxu0
        %v4174 = vadd.f32 0.0, %v4173
        %v4175 = vpop.f32.mrf.mxu0
        %v4176 = vadd.f32 0.0, %v4175
        %4177 = vmatmul.bf16.gmra.mxu0 %v3057
        %v4178 = vpop.f32.mrf.mxu0
        %v4179 = vadd.f32 0.0, %v4178
        %v4180 = vpop.f32.mrf.mxu0
        %v4181 = vadd.f32 0.0, %v4180
        %4182 = vmatmul.bf16.gmra.mxu0 %v3058
        %v4183 = vpop.f32.mrf.mxu0
        %v4184 = vadd.f32 0.0, %v4183
        %v4185 = vpop.f32.mrf.mxu0
        %v4186 = vadd.f32 0.0, %v4185
        %4187 = vdwg.mxu0
        %4188 = vmatpush.bf16.msra.mxu0 %v4002
        %4189 = vmatpush.bf16.msra.mxu0 %v4001
        %4190 = vmatpush.bf16.msra.mxu0 %v4000
        %4191 = vmatpush.bf16.msra.mxu0 %v3999
        %4192 = vmatpush.bf16.msra.mxu0 %v3998
        %4193 = vmatpush.bf16.msra.mxu0 %v3997
        %4194 = vmatpush.bf16.msra.mxu0 %v3996
        %4195 = vmatpush.bf16.msra.mxu0 %v3995
        %4196 = vmatmul.bf16.gmra.mxu0 %v3139
        %v4197 = vpop.f32.mrf.mxu0
        %v4198 = vadd.f32 %v4109, %v4197
        %v4199 = vpop.f32.mrf.mxu0
        %v4200 = vadd.f32 %v4111, %v4199
        %4201 = vmatmul.bf16.gmra.mxu0 %v3140
        %v4202 = vpop.f32.mrf.mxu0
        %v4203 = vadd.f32 %v4114, %v4202
        %v4204 = vpop.f32.mrf.mxu0
        %v4205 = vadd.f32 %v4116, %v4204
        %4206 = vmatmul.bf16.gmra.mxu0 %v3141
        %v4207 = vpop.f32.mrf.mxu0
        %v4208 = vadd.f32 %v4119, %v4207
        %v4209 = vpop.f32.mrf.mxu0
        %v4210 = vadd.f32 %v4121, %v4209
        %4211 = vmatmul.bf16.gmra.mxu0 %v3142
        %v4212 = vpop.f32.mrf.mxu0
        %v4213 = vadd.f32 %v4124, %v4212
        %v4214 = vpop.f32.mrf.mxu0
        %v4215 = vadd.f32 %v4126, %v4214
        %4216 = vmatmul.bf16.gmra.mxu0 %v3143
        %v4217 = vpop.f32.mrf.mxu0
        %v4218 = vadd.f32 %v4129, %v4217
        %v4219 = vpop.f32.mrf.mxu0
        %v4220 = vadd.f32 %v4131, %v4219
        %4221 = vmatmul.bf16.gmra.mxu0 %v3144
        %v4222 = vpop.f32.mrf.mxu0
        %v4223 = vadd.f32 %v4134, %v4222
        %v4224 = vpop.f32.mrf.mxu0
        %v4225 = vadd.f32 %v4136, %v4224
        %4226 = vmatmul.bf16.gmra.mxu0 %v3145
        %v4227 = vpop.f32.mrf.mxu0
        %v4228 = vadd.f32 %v4139, %v4227
        %v4229 = vpop.f32.mrf.mxu0
        %v4230 = vadd.f32 %v4141, %v4229
        %4231 = vmatmul.bf16.gmra.mxu0 %v3146
        %v4232 = vpop.f32.mrf.mxu0
        %v4233 = vadd.f32 %v4144, %v4232
        %v4234 = vpop.f32.mrf.mxu0
        %v4235 = vadd.f32 %v4146, %v4234
        %4236 = vmatmul.bf16.gmra.mxu0 %v3147
        %v4237 = vpop.f32.mrf.mxu0
        %v4238 = vadd.f32 %v4149, %v4237
        %v4239 = vpop.f32.mrf.mxu0
        %v4240 = vadd.f32 %v4151, %v4239
        %4241 = vmatmul.bf16.gmra.mxu0 %v3148
        %v4242 = vpop.f32.mrf.mxu0
        %v4243 = vadd.f32 %v4154, %v4242
        %v4244 = vpop.f32.mrf.mxu0
        %v4245 = vadd.f32 %v4156, %v4244
        %4246 = vmatmul.bf16.gmra.mxu0 %v3149
        %v4247 = vpop.f32.mrf.mxu0
        %v4248 = vadd.f32 %v4159, %v4247
        %v4249 = vpop.f32.mrf.mxu0
        %v4250 = vadd.f32 %v4161, %v4249
        %4251 = vmatmul.bf16.gmra.mxu0 %v3150
        %v4252 = vpop.f32.mrf.mxu0
        %v4253 = vadd.f32 %v4164, %v4252
        %v4254 = vpop.f32.mrf.mxu0
        %v4255 = vadd.f32 %v4166, %v4254
        %4256 = vmatmul.bf16.gmra.mxu0 %v3151
        %v4257 = vpop.f32.mrf.mxu0
        %v4258 = vadd.f32 %v4169, %v4257
        %v4259 = vpop.f32.mrf.mxu0
        %v4260 = vadd.f32 %v4171, %v4259
        %4261 = vmatmul.bf16.gmra.mxu0 %v3152
        %v4262 = vpop.f32.mrf.mxu0
        %v4263 = vadd.f32 %v4174, %v4262
        %v4264 = vpop.f32.mrf.mxu0
        %v4265 = vadd.f32 %v4176, %v4264
        %4266 = vmatmul.bf16.gmra.mxu0 %v3153
        %v4267 = vpop.f32.mrf.mxu0
        %v4268 = vadd.f32 %v4179, %v4267
        %v4269 = vpop.f32.mrf.mxu0
        %v4270 = vadd.f32 %v4181, %v4269
        %4271 = vmatmul.bf16.gmra.mxu0 %v3154
        %v4272 = vpop.f32.mrf.mxu0
        %v4273 = vadd.f32 %v4184, %v4272
        %v4274 = vpop.f32.mrf.mxu0
        %v4275 = vadd.f32 %v4186, %v4274
        %4276 = vdwg.mxu0
        %4277 = vmatpush.bf16.msra.mxu0 %v4010
        %4278 = vmatpush.bf16.msra.mxu0 %v4009
        %4279 = vmatpush.bf16.msra.mxu0 %v4008
        %4280 = vmatpush.bf16.msra.mxu0 %v4007
        %4281 = vmatpush.bf16.msra.mxu0 %v4006
        %4282 = vmatpush.bf16.msra.mxu0 %v4005
        %4283 = vmatpush.bf16.msra.mxu0 %v4004
        %4284 = vmatpush.bf16.msra.mxu0 %v4003
        %4285 = vmatmul.bf16.gmra.mxu0 %v3235
        %v4286 = vpop.f32.mrf.mxu0
        %v4287 = vadd.f32 %v4198, %v4286
        %v4288 = vpop.f32.mrf.mxu0
        %v4289 = vadd.f32 %v4200, %v4288
        %4290 = vmatmul.bf16.gmra.mxu0 %v3236
        %v4291 = vpop.f32.mrf.mxu0
        %v4292 = vadd.f32 %v4203, %v4291
        %v4293 = vpop.f32.mrf.mxu0
        %v4294 = vadd.f32 %v4205, %v4293
        %4295 = vmatmul.bf16.gmra.mxu0 %v3237
        %v4296 = vpop.f32.mrf.mxu0
        %v4297 = vadd.f32 %v4208, %v4296
        %v4298 = vpop.f32.mrf.mxu0
        %v4299 = vadd.f32 %v4210, %v4298
        %4300 = vmatmul.bf16.gmra.mxu0 %v3238
        %v4301 = vpop.f32.mrf.mxu0
        %v4302 = vadd.f32 %v4213, %v4301
        %v4303 = vpop.f32.mrf.mxu0
        %v4304 = vadd.f32 %v4215, %v4303
        %4305 = vmatmul.bf16.gmra.mxu0 %v3239
        %v4306 = vpop.f32.mrf.mxu0
        %v4307 = vadd.f32 %v4218, %v4306
        %v4308 = vpop.f32.mrf.mxu0
        %v4309 = vadd.f32 %v4220, %v4308
        %4310 = vmatmul.bf16.gmra.mxu0 %v3240
        %v4311 = vpop.f32.mrf.mxu0
        %v4312 = vadd.f32 %v4223, %v4311
        %v4313 = vpop.f32.mrf.mxu0
        %v4314 = vadd.f32 %v4225, %v4313
        %4315 = vmatmul.bf16.gmra.mxu0 %v3241
        %v4316 = vpop.f32.mrf.mxu0
        %v4317 = vadd.f32 %v4228, %v4316
        %v4318 = vpop.f32.mrf.mxu0
        %v4319 = vadd.f32 %v4230, %v4318
        %4320 = vmatmul.bf16.gmra.mxu0 %v3242
        %v4321 = vpop.f32.mrf.mxu0
        %v4322 = vadd.f32 %v4233, %v4321
        %v4323 = vpop.f32.mrf.mxu0
        %v4324 = vadd.f32 %v4235, %v4323
        %4325 = vmatmul.bf16.gmra.mxu0 %v3243
        %v4326 = vpop.f32.mrf.mxu0
        %v4327 = vadd.f32 %v4238, %v4326
        %v4328 = vpop.f32.mrf.mxu0
        %v4329 = vadd.f32 %v4240, %v4328
        %4330 = vmatmul.bf16.gmra.mxu0 %v3244
        %v4331 = vpop.f32.mrf.mxu0
        %v4332 = vadd.f32 %v4243, %v4331
        %v4333 = vpop.f32.mrf.mxu0
        %v4334 = vadd.f32 %v4245, %v4333
        %4335 = vmatmul.bf16.gmra.mxu0 %v3245
        %v4336 = vpop.f32.mrf.mxu0
        %v4337 = vadd.f32 %v4248, %v4336
        %v4338 = vpop.f32.mrf.mxu0
        %v4339 = vadd.f32 %v4250, %v4338
        %4340 = vmatmul.bf16.gmra.mxu0 %v3246
        %v4341 = vpop.f32.mrf.mxu0
        %v4342 = vadd.f32 %v4253, %v4341
        %v4343 = vpop.f32.mrf.mxu0
        %v4344 = vadd.f32 %v4255, %v4343
        %4345 = vmatmul.bf16.gmra.mxu0 %v3247
        %v4346 = vpop.f32.mrf.mxu0
        %v4347 = vadd.f32 %v4258, %v4346
        %v4348 = vpop.f32.mrf.mxu0
        %v4349 = vadd.f32 %v4260, %v4348
        %4350 = vmatmul.bf16.gmra.mxu0 %v3248
        %v4351 = vpop.f32.mrf.mxu0
        %v4352 = vadd.f32 %v4263, %v4351
        %v4353 = vpop.f32.mrf.mxu0
        %v4354 = vadd.f32 %v4265, %v4353
        %4355 = vmatmul.bf16.gmra.mxu0 %v3249
        %v4356 = vpop.f32.mrf.mxu0
        %v4357 = vadd.f32 %v4268, %v4356
        %v4358 = vpop.f32.mrf.mxu0
        %v4359 = vadd.f32 %v4270, %v4358
        %4360 = vmatmul.bf16.gmra.mxu0 %v3250
        %v4361 = vpop.f32.mrf.mxu0
        %v4362 = vadd.f32 %v4273, %v4361
        %v4363 = vpop.f32.mrf.mxu0
        %v4364 = vadd.f32 %v4275, %v4363
        %4365 = vdwg.mxu0
        %4366 = vmatpush.bf16.msra.mxu0 %v4018
        %4367 = vmatpush.bf16.msra.mxu0 %v4017
        %4368 = vmatpush.bf16.msra.mxu0 %v4016
        %4369 = vmatpush.bf16.msra.mxu0 %v4015
        %4370 = vmatpush.bf16.msra.mxu0 %v4014
        %4371 = vmatpush.bf16.msra.mxu0 %v4013
        %4372 = vmatpush.bf16.msra.mxu0 %v4012
        %4373 = vmatpush.bf16.msra.mxu0 %v4011
        %4374 = vmatmul.bf16.gmra.mxu0 %v3331
        %v4375 = vpop.f32.mrf.mxu0
        %v4376 = vadd.f32 %v4287, %v4375
        %v4377 = vpop.f32.mrf.mxu0
        %v4378 = vadd.f32 %v4289, %v4377
        %4379 = vmatmul.bf16.gmra.mxu0 %v3332
        %v4380 = vpop.f32.mrf.mxu0
        %v4381 = vadd.f32 %v4292, %v4380
        %v4382 = vpop.f32.mrf.mxu0
        %v4383 = vadd.f32 %v4294, %v4382
        %4384 = vmatmul.bf16.gmra.mxu0 %v3333
        %v4385 = vpop.f32.mrf.mxu0
        %v4386 = vadd.f32 %v4297, %v4385
        %v4387 = vpop.f32.mrf.mxu0
        %v4388 = vadd.f32 %v4299, %v4387
        %4389 = vmatmul.bf16.gmra.mxu0 %v3334
        %v4390 = vpop.f32.mrf.mxu0
        %v4391 = vadd.f32 %v4302, %v4390
        %v4392 = vpop.f32.mrf.mxu0
        %v4393 = vadd.f32 %v4304, %v4392
        %4394 = vmatmul.bf16.gmra.mxu0 %v3335
        %v4395 = vpop.f32.mrf.mxu0
        %v4396 = vadd.f32 %v4307, %v4395
        %v4397 = vpop.f32.mrf.mxu0
        %v4398 = vadd.f32 %v4309, %v4397
        %4399 = vmatmul.bf16.gmra.mxu0 %v3336
        %v4400 = vpop.f32.mrf.mxu0
        %v4401 = vadd.f32 %v4312, %v4400
        %v4402 = vpop.f32.mrf.mxu0
        %v4403 = vadd.f32 %v4314, %v4402
        %4404 = vmatmul.bf16.gmra.mxu0 %v3337
        %v4405 = vpop.f32.mrf.mxu0
        %v4406 = vadd.f32 %v4317, %v4405
        %v4407 = vpop.f32.mrf.mxu0
        %v4408 = vadd.f32 %v4319, %v4407
        %4409 = vmatmul.bf16.gmra.mxu0 %v3338
        %v4410 = vpop.f32.mrf.mxu0
        %v4411 = vadd.f32 %v4322, %v4410
        %v4412 = vpop.f32.mrf.mxu0
        %v4413 = vadd.f32 %v4324, %v4412
        %4414 = vmatmul.bf16.gmra.mxu0 %v3339
        %v4415 = vpop.f32.mrf.mxu0
        %v4416 = vadd.f32 %v4327, %v4415
        %v4417 = vpop.f32.mrf.mxu0
        %v4418 = vadd.f32 %v4329, %v4417
        %4419 = vmatmul.bf16.gmra.mxu0 %v3340
        %v4420 = vpop.f32.mrf.mxu0
        %v4421 = vadd.f32 %v4332, %v4420
        %v4422 = vpop.f32.mrf.mxu0
        %v4423 = vadd.f32 %v4334, %v4422
        %4424 = vmatmul.bf16.gmra.mxu0 %v3341
        %v4425 = vpop.f32.mrf.mxu0
        %v4426 = vadd.f32 %v4337, %v4425
        %v4427 = vpop.f32.mrf.mxu0
        %v4428 = vadd.f32 %v4339, %v4427
        %4429 = vmatmul.bf16.gmra.mxu0 %v3342
        %v4430 = vpop.f32.mrf.mxu0
        %v4431 = vadd.f32 %v4342, %v4430
        %v4432 = vpop.f32.mrf.mxu0
        %v4433 = vadd.f32 %v4344, %v4432
        %4434 = vmatmul.bf16.gmra.mxu0 %v3343
        %v4435 = vpop.f32.mrf.mxu0
        %v4436 = vadd.f32 %v4347, %v4435
        %v4437 = vpop.f32.mrf.mxu0
        %v4438 = vadd.f32 %v4349, %v4437
        %4439 = vmatmul.bf16.gmra.mxu0 %v3344
        %v4440 = vpop.f32.mrf.mxu0
        %v4441 = vadd.f32 %v4352, %v4440
        %v4442 = vpop.f32.mrf.mxu0
        %v4443 = vadd.f32 %v4354, %v4442
        %4444 = vmatmul.bf16.gmra.mxu0 %v3345
        %v4445 = vpop.f32.mrf.mxu0
        %v4446 = vadd.f32 %v4357, %v4445
        %v4447 = vpop.f32.mrf.mxu0
        %v4448 = vadd.f32 %v4359, %v4447
        %4449 = vmatmul.bf16.gmra.mxu0 %v3346
        %v4450 = vpop.f32.mrf.mxu0
        %v4451 = vadd.f32 %v4362, %v4450
        %v4452 = vpop.f32.mrf.mxu0
        %v4453 = vadd.f32 %v4364, %v4452
        %4454 = vdwg.mxu0
        %4455 = vmatpush.bf16.msra.mxu0 %v4026
        %4456 = vmatpush.bf16.msra.mxu0 %v4025
        %4457 = vmatpush.bf16.msra.mxu0 %v4024
        %4458 = vmatpush.bf16.msra.mxu0 %v4023
        %4459 = vmatpush.bf16.msra.mxu0 %v4022
        %4460 = vmatpush.bf16.msra.mxu0 %v4021
        %4461 = vmatpush.bf16.msra.mxu0 %v4020
        %4462 = vmatpush.bf16.msra.mxu0 %v4019
        %4463 = vmatmul.bf16.gmra.mxu0 %v3427
        %v4464 = vpop.f32.mrf.mxu0
        %v4465 = vadd.f32 %v4376, %v4464
        %v4466 = vpop.f32.mrf.mxu0
        %v4467 = vadd.f32 %v4378, %v4466
        %4468 = vmatmul.bf16.gmra.mxu0 %v3428
        %v4469 = vpop.f32.mrf.mxu0
        %v4470 = vadd.f32 %v4381, %v4469
        %v4471 = vpop.f32.mrf.mxu0
        %v4472 = vadd.f32 %v4383, %v4471
        %4473 = vmatmul.bf16.gmra.mxu0 %v3429
        %v4474 = vpop.f32.mrf.mxu0
        %v4475 = vadd.f32 %v4386, %v4474
        %v4476 = vpop.f32.mrf.mxu0
        %v4477 = vadd.f32 %v4388, %v4476
        %4478 = vmatmul.bf16.gmra.mxu0 %v3430
        %v4479 = vpop.f32.mrf.mxu0
        %v4480 = vadd.f32 %v4391, %v4479
        %v4481 = vpop.f32.mrf.mxu0
        %v4482 = vadd.f32 %v4393, %v4481
        %4483 = vmatmul.bf16.gmra.mxu0 %v3431
        %v4484 = vpop.f32.mrf.mxu0
        %v4485 = vadd.f32 %v4396, %v4484
        %v4486 = vpop.f32.mrf.mxu0
        %v4487 = vadd.f32 %v4398, %v4486
        %4488 = vmatmul.bf16.gmra.mxu0 %v3432
        %v4489 = vpop.f32.mrf.mxu0
        %v4490 = vadd.f32 %v4401, %v4489
        %v4491 = vpop.f32.mrf.mxu0
        %v4492 = vadd.f32 %v4403, %v4491
        %4493 = vmatmul.bf16.gmra.mxu0 %v3433
        %v4494 = vpop.f32.mrf.mxu0
        %v4495 = vadd.f32 %v4406, %v4494
        %v4496 = vpop.f32.mrf.mxu0
        %v4497 = vadd.f32 %v4408, %v4496
        %4498 = vmatmul.bf16.gmra.mxu0 %v3434
        %v4499 = vpop.f32.mrf.mxu0
        %v4500 = vadd.f32 %v4411, %v4499
        %v4501 = vpop.f32.mrf.mxu0
        %v4502 = vadd.f32 %v4413, %v4501
        %4503 = vmatmul.bf16.gmra.mxu0 %v3435
        %v4504 = vpop.f32.mrf.mxu0
        %v4505 = vadd.f32 %v4416, %v4504
        %v4506 = vpop.f32.mrf.mxu0
        %v4507 = vadd.f32 %v4418, %v4506
        %4508 = vmatmul.bf16.gmra.mxu0 %v3436
        %v4509 = vpop.f32.mrf.mxu0
        %v4510 = vadd.f32 %v4421, %v4509
        %v4511 = vpop.f32.mrf.mxu0
        %v4512 = vadd.f32 %v4423, %v4511
        %4513 = vmatmul.bf16.gmra.mxu0 %v3437
        %v4514 = vpop.f32.mrf.mxu0
        %v4515 = vadd.f32 %v4426, %v4514
        %v4516 = vpop.f32.mrf.mxu0
        %v4517 = vadd.f32 %v4428, %v4516
        %4518 = vmatmul.bf16.gmra.mxu0 %v3438
        %v4519 = vpop.f32.mrf.mxu0
        %v4520 = vadd.f32 %v4431, %v4519
        %v4521 = vpop.f32.mrf.mxu0
        %v4522 = vadd.f32 %v4433, %v4521
        %4523 = vmatmul.bf16.gmra.mxu0 %v3439
        %v4524 = vpop.f32.mrf.mxu0
        %v4525 = vadd.f32 %v4436, %v4524
        %v4526 = vpop.f32.mrf.mxu0
        %v4527 = vadd.f32 %v4438, %v4526
        %4528 = vmatmul.bf16.gmra.mxu0 %v3440
        %v4529 = vpop.f32.mrf.mxu0
        %v4530 = vadd.f32 %v4441, %v4529
        %v4531 = vpop.f32.mrf.mxu0
        %v4532 = vadd.f32 %v4443, %v4531
        %4533 = vmatmul.bf16.gmra.mxu0 %v3441
        %v4534 = vpop.f32.mrf.mxu0
        %v4535 = vadd.f32 %v4446, %v4534
        %v4536 = vpop.f32.mrf.mxu0
        %v4537 = vadd.f32 %v4448, %v4536
        %4538 = vmatmul.bf16.gmra.mxu0 %v3442
        %v4539 = vpop.f32.mrf.mxu0
        %v4540 = vadd.f32 %v4451, %v4539
        %v4541 = vpop.f32.mrf.mxu0
        %v4542 = vadd.f32 %v4453, %v4541
        %4543 = vdwg.mxu0
        %4544 = vmatpush.bf16.msra.mxu0 %v4034
        %4545 = vmatpush.bf16.msra.mxu0 %v4033
        %4546 = vmatpush.bf16.msra.mxu0 %v4032
        %4547 = vmatpush.bf16.msra.mxu0 %v4031
        %4548 = vmatpush.bf16.msra.mxu0 %v4030
        %4549 = vmatpush.bf16.msra.mxu0 %v4029
        %4550 = vmatpush.bf16.msra.mxu0 %v4028
        %4551 = vmatpush.bf16.msra.mxu0 %v4027
        %4552 = vmatmul.bf16.gmra.mxu0 %v3523
        %v4553 = vpop.f32.mrf.mxu0
        %v4554 = vadd.f32 %v4465, %v4553
        %v4555 = vpop.f32.mrf.mxu0
        %v4556 = vadd.f32 %v4467, %v4555
        %4557 = vmatmul.bf16.gmra.mxu0 %v3524
        %v4558 = vpop.f32.mrf.mxu0
        %v4559 = vadd.f32 %v4470, %v4558
        %v4560 = vpop.f32.mrf.mxu0
        %v4561 = vadd.f32 %v4472, %v4560
        %4562 = vmatmul.bf16.gmra.mxu0 %v3525
        %v4563 = vpop.f32.mrf.mxu0
        %v4564 = vadd.f32 %v4475, %v4563
        %v4565 = vpop.f32.mrf.mxu0
        %v4566 = vadd.f32 %v4477, %v4565
        %4567 = vmatmul.bf16.gmra.mxu0 %v3526
        %v4568 = vpop.f32.mrf.mxu0
        %v4569 = vadd.f32 %v4480, %v4568
        %v4570 = vpop.f32.mrf.mxu0
        %v4571 = vadd.f32 %v4482, %v4570
        %4572 = vmatmul.bf16.gmra.mxu0 %v3527
        %v4573 = vpop.f32.mrf.mxu0
        %v4574 = vadd.f32 %v4485, %v4573
        %v4575 = vpop.f32.mrf.mxu0
        %v4576 = vadd.f32 %v4487, %v4575
        %4577 = vmatmul.bf16.gmra.mxu0 %v3528
        %v4578 = vpop.f32.mrf.mxu0
        %v4579 = vadd.f32 %v4490, %v4578
        %v4580 = vpop.f32.mrf.mxu0
        %v4581 = vadd.f32 %v4492, %v4580
        %4582 = vmatmul.bf16.gmra.mxu0 %v3529
        %v4583 = vpop.f32.mrf.mxu0
        %v4584 = vadd.f32 %v4495, %v4583
        %v4585 = vpop.f32.mrf.mxu0
        %v4586 = vadd.f32 %v4497, %v4585
        %4587 = vmatmul.bf16.gmra.mxu0 %v3530
        %v4588 = vpop.f32.mrf.mxu0
        %v4589 = vadd.f32 %v4500, %v4588
        %v4590 = vpop.f32.mrf.mxu0
        %v4591 = vadd.f32 %v4502, %v4590
        %4592 = vmatmul.bf16.gmra.mxu0 %v3531
        %v4593 = vpop.f32.mrf.mxu0
        %v4594 = vadd.f32 %v4505, %v4593
        %v4595 = vpop.f32.mrf.mxu0
        %v4596 = vadd.f32 %v4507, %v4595
        %4597 = vmatmul.bf16.gmra.mxu0 %v3532
        %v4598 = vpop.f32.mrf.mxu0
        %v4599 = vadd.f32 %v4510, %v4598
        %v4600 = vpop.f32.mrf.mxu0
        %v4601 = vadd.f32 %v4512, %v4600
        %4602 = vmatmul.bf16.gmra.mxu0 %v3533
        %v4603 = vpop.f32.mrf.mxu0
        %v4604 = vadd.f32 %v4515, %v4603
        %v4605 = vpop.f32.mrf.mxu0
        %v4606 = vadd.f32 %v4517, %v4605
        %4607 = vmatmul.bf16.gmra.mxu0 %v3534
        %v4608 = vpop.f32.mrf.mxu0
        %v4609 = vadd.f32 %v4520, %v4608
        %v4610 = vpop.f32.mrf.mxu0
        %v4611 = vadd.f32 %v4522, %v4610
        %4612 = vmatmul.bf16.gmra.mxu0 %v3535
        %v4613 = vpop.f32.mrf.mxu0
        %v4614 = vadd.f32 %v4525, %v4613
        %v4615 = vpop.f32.mrf.mxu0
        %v4616 = vadd.f32 %v4527, %v4615
        %4617 = vmatmul.bf16.gmra.mxu0 %v3536
        %v4618 = vpop.f32.mrf.mxu0
        %v4619 = vadd.f32 %v4530, %v4618
        %v4620 = vpop.f32.mrf.mxu0
        %v4621 = vadd.f32 %v4532, %v4620
        %4622 = vmatmul.bf16.gmra.mxu0 %v3537
        %v4623 = vpop.f32.mrf.mxu0
        %v4624 = vadd.f32 %v4535, %v4623
        %v4625 = vpop.f32.mrf.mxu0
        %v4626 = vadd.f32 %v4537, %v4625
        %4627 = vmatmul.bf16.gmra.mxu0 %v3538
        %v4628 = vpop.f32.mrf.mxu0
        %v4629 = vadd.f32 %v4540, %v4628
        %v4630 = vpop.f32.mrf.mxu0
        %v4631 = vadd.f32 %v4542, %v4630
        %4632 = vdwg.mxu0
        %4633 = vmatpush.bf16.msra.mxu0 %v4042
        %4634 = vmatpush.bf16.msra.mxu0 %v4041
        %4635 = vmatpush.bf16.msra.mxu0 %v4040
        %4636 = vmatpush.bf16.msra.mxu0 %v4039
        %4637 = vmatpush.bf16.msra.mxu0 %v4038
        %4638 = vmatpush.bf16.msra.mxu0 %v4037
        %4639 = vmatpush.bf16.msra.mxu0 %v4036
        %4640 = vmatpush.bf16.msra.mxu0 %v4035
        %4641 = vmatmul.bf16.gmra.mxu0 %v3619
        %v4642 = vpop.f32.mrf.mxu0
        %v4643 = vadd.f32 %v4554, %v4642
        %v4644 = vpop.f32.mrf.mxu0
        %v4645 = vadd.f32 %v4556, %v4644
        %4646 = vmatmul.bf16.gmra.mxu0 %v3620
        %v4647 = vpop.f32.mrf.mxu0
        %v4648 = vadd.f32 %v4559, %v4647
        %v4649 = vpop.f32.mrf.mxu0
        %v4650 = vadd.f32 %v4561, %v4649
        %4651 = vmatmul.bf16.gmra.mxu0 %v3621
        %v4652 = vpop.f32.mrf.mxu0
        %v4653 = vadd.f32 %v4564, %v4652
        %v4654 = vpop.f32.mrf.mxu0
        %v4655 = vadd.f32 %v4566, %v4654
        %4656 = vmatmul.bf16.gmra.mxu0 %v3622
        %v4657 = vpop.f32.mrf.mxu0
        %v4658 = vadd.f32 %v4569, %v4657
        %v4659 = vpop.f32.mrf.mxu0
        %v4660 = vadd.f32 %v4571, %v4659
        %4661 = vmatmul.bf16.gmra.mxu0 %v3623
        %v4662 = vpop.f32.mrf.mxu0
        %v4663 = vadd.f32 %v4574, %v4662
        %v4664 = vpop.f32.mrf.mxu0
        %v4665 = vadd.f32 %v4576, %v4664
        %4666 = vmatmul.bf16.gmra.mxu0 %v3624
        %v4667 = vpop.f32.mrf.mxu0
        %v4668 = vadd.f32 %v4579, %v4667
        %v4669 = vpop.f32.mrf.mxu0
        %v4670 = vadd.f32 %v4581, %v4669
        %4671 = vmatmul.bf16.gmra.mxu0 %v3625
        %v4672 = vpop.f32.mrf.mxu0
        %v4673 = vadd.f32 %v4584, %v4672
        %v4674 = vpop.f32.mrf.mxu0
        %v4675 = vadd.f32 %v4586, %v4674
        %4676 = vmatmul.bf16.gmra.mxu0 %v3626
        %v4677 = vpop.f32.mrf.mxu0
        %v4678 = vadd.f32 %v4589, %v4677
        %v4679 = vpop.f32.mrf.mxu0
        %v4680 = vadd.f32 %v4591, %v4679
        %4681 = vmatmul.bf16.gmra.mxu0 %v3627
        %v4682 = vpop.f32.mrf.mxu0
        %v4683 = vadd.f32 %v4594, %v4682
        %v4684 = vpop.f32.mrf.mxu0
        %v4685 = vadd.f32 %v4596, %v4684
        %4686 = vmatmul.bf16.gmra.mxu0 %v3628
        %v4687 = vpop.f32.mrf.mxu0
        %v4688 = vadd.f32 %v4599, %v4687
        %v4689 = vpop.f32.mrf.mxu0
        %v4690 = vadd.f32 %v4601, %v4689
        %4691 = vmatmul.bf16.gmra.mxu0 %v3629
        %v4692 = vpop.f32.mrf.mxu0
        %v4693 = vadd.f32 %v4604, %v4692
        %v4694 = vpop.f32.mrf.mxu0
        %v4695 = vadd.f32 %v4606, %v4694
        %4696 = vmatmul.bf16.gmra.mxu0 %v3630
        %v4697 = vpop.f32.mrf.mxu0
        %v4698 = vadd.f32 %v4609, %v4697
        %v4699 = vpop.f32.mrf.mxu0
        %v4700 = vadd.f32 %v4611, %v4699
        %4701 = vmatmul.bf16.gmra.mxu0 %v3631
        %v4702 = vpop.f32.mrf.mxu0
        %v4703 = vadd.f32 %v4614, %v4702
        %v4704 = vpop.f32.mrf.mxu0
        %v4705 = vadd.f32 %v4616, %v4704
        %4706 = vmatmul.bf16.gmra.mxu0 %v3632
        %v4707 = vpop.f32.mrf.mxu0
        %v4708 = vadd.f32 %v4619, %v4707
        %v4709 = vpop.f32.mrf.mxu0
        %v4710 = vadd.f32 %v4621, %v4709
        %4711 = vmatmul.bf16.gmra.mxu0 %v3633
        %v4712 = vpop.f32.mrf.mxu0
        %v4713 = vadd.f32 %v4624, %v4712
        %v4714 = vpop.f32.mrf.mxu0
        %v4715 = vadd.f32 %v4626, %v4714
        %4716 = vmatmul.bf16.gmra.mxu0 %v3634
        %v4717 = vpop.f32.mrf.mxu0
        %v4718 = vadd.f32 %v4629, %v4717
        %v4719 = vpop.f32.mrf.mxu0
        %v4720 = vadd.f32 %v4631, %v4719
        %4721 = vdwg.mxu0
        %v4722 = vpack.c.bf16 %v4643, %v4643
        %v4723 = vpack.c.bf16 %v4645, %v4645
        %v4724 = vpack.c.bf16 %v4648, %v4648
        %v4725 = vpack.c.bf16 %v4650, %v4650
        %v4726 = vpack.c.bf16 %v4653, %v4653
        %v4727 = vpack.c.bf16 %v4655, %v4655
        %v4728 = vpack.c.bf16 %v4658, %v4658
        %v4729 = vpack.c.bf16 %v4660, %v4660
        %v4730 = vpack.c.bf16 %v4663, %v4663
        %v4731 = vpack.c.bf16 %v4665, %v4665
        %v4732 = vpack.c.bf16 %v4668, %v4668
        %v4733 = vpack.c.bf16 %v4670, %v4670
        %v4734 = vpack.c.bf16 %v4673, %v4673
        %v4735 = vpack.c.bf16 %v4675, %v4675
        %v4736 = vpack.c.bf16 %v4678, %v4678
        %v4737 = vpack.c.bf16 %v4680, %v4680
        %v4738 = vpack.c.bf16 %v4683, %v4683
        %v4739 = vpack.c.bf16 %v4685, %v4685
        %v4740 = vpack.c.bf16 %v4688, %v4688
        %v4741 = vpack.c.bf16 %v4690, %v4690
        %v4742 = vpack.c.bf16 %v4693, %v4693
        %v4743 = vpack.c.bf16 %v4695, %v4695
        %v4744 = vpack.c.bf16 %v4698, %v4698
        %v4745 = vpack.c.bf16 %v4700, %v4700
        %v4746 = vpack.c.bf16 %v4703, %v4703
        %v4747 = vpack.c.bf16 %v4705, %v4705
        %v4748 = vpack.c.bf16 %v4708, %v4708
        %v4749 = vpack.c.bf16 %v4710, %v4710
        %v4750 = vpack.c.bf16 %v4713, %v4713
        %v4751 = vpack.c.bf16 %v4715, %v4715
        %v4752 = vpack.c.bf16 %v4718, %v4718
        %v4753 = vpack.c.bf16 %v4720, %v4720
        %4754 = vst [vmem:[%s239] sm:$0xf] %v4722
        %4755 = vst [vmem:[%s239 + $0x4] sm:$0xf] %v4723
        %4756 = vst [vmem:[%s239 + $0x8] sm:$0xf] %v4724
        %4757 = vst [vmem:[%s239 + $0xc] sm:$0xf] %v4725
        %4758 = vst [vmem:[%s239 + $0x10] sm:$0xf] %v4726
        %4759 = vst [vmem:[%s239 + $0x14] sm:$0xf] %v4727
        %4760 = vst [vmem:[%s239 + $0x18] sm:$0xf] %v4728
        %4761 = vst [vmem:[%s239 + $0x1c] sm:$0xf] %v4729
        %4762 = vst [vmem:[%s239 + $0x20] sm:$0xf] %v4730
        %4763 = vst [vmem:[%s239 + $0x24] sm:$0xf] %v4731
        %4764 = vst [vmem:[%s239 + $0x28] sm:$0xf] %v4732
        %4765 = vst [vmem:[%s239 + $0x2c] sm:$0xf] %v4733
        %4766 = vst [vmem:[%s239 + $0x30] sm:$0xf] %v4734
        %4767 = vst [vmem:[%s239 + $0x34] sm:$0xf] %v4735
        %4768 = vst [vmem:[%s239 + $0x38] sm:$0xf] %v4736
        %4769 = vst [vmem:[%s239 + $0x3c] sm:$0xf] %v4737
        %4770 = vst [vmem:[%s239 + $0x40] sm:$0xf] %v4738
        %4771 = vst [vmem:[%s239 + $0x44] sm:$0xf] %v4739
        %4772 = vst [vmem:[%s239 + $0x48] sm:$0xf] %v4740
        %4773 = vst [vmem:[%s239 + $0x4c] sm:$0xf] %v4741
        %4774 = vst [vmem:[%s239 + $0x50] sm:$0xf] %v4742
        %4775 = vst [vmem:[%s239 + $0x54] sm:$0xf] %v4743
        %4776 = vst [vmem:[%s239 + $0x58] sm:$0xf] %v4744
        %4777 = vst [vmem:[%s239 + $0x5c] sm:$0xf] %v4745
        %4778 = vst [vmem:[%s239 + $0x60] sm:$0xf] %v4746
        %4779 = vst [vmem:[%s239 + $0x64] sm:$0xf] %v4747
        %4780 = vst [vmem:[%s239 + $0x68] sm:$0xf] %v4748
        %4781 = vst [vmem:[%s239 + $0x6c] sm:$0xf] %v4749
        %4782 = vst [vmem:[%s239 + $0x70] sm:$0xf] %v4750
        %4783 = vst [vmem:[%s239 + $0x74] sm:$0xf] %v4751
        %4784 = vst [vmem:[%s239 + $0x78] sm:$0xf] %v4752
        %4785 = vst [vmem:[%s239 + $0x7c] sm:$0xf] %v4753
        %v4786 = vadd.f32 %v4643, %v4645
        %v4787 = vadd.f32 %v4786, %v4648
        %v4788 = vadd.f32 %v4787, %v4650
        %v4789 = vadd.f32 %v4788, %v4653
        %v4790 = vadd.f32 %v4789, %v4655
        %v4791 = vadd.f32 %v4790, %v4658
        %v4792 = vadd.f32 %v4791, %v4660
        %v4793 = vadd.f32 %v4792, %v4663
        %v4794 = vadd.f32 %v4793, %v4665
        %v4795 = vadd.f32 %v4794, %v4668
        %v4796 = vadd.f32 %v4795, %v4670
        %v4797 = vadd.f32 %v4796, %v4673
        %v4798 = vadd.f32 %v4797, %v4675
        %v4799 = vadd.f32 %v4798, %v4678
        %v4800 = vadd.f32 %v4799, %v4680
        %v4801 = vadd.f32 %v4800, %v4683
        %v4802 = vadd.f32 %v4801, %v4685
        %v4803 = vadd.f32 %v4802, %v4688
        %v4804 = vadd.f32 %v4803, %v4690
        %v4805 = vadd.f32 %v4804, %v4693
        %v4806 = vadd.f32 %v4805, %v4695
        %v4807 = vadd.f32 %v4806, %v4698
        %v4808 = vadd.f32 %v4807, %v4700
        %v4809 = vadd.f32 %v4808, %v4703
        %v4810 = vadd.f32 %v4809, %v4705
        %v4811 = vadd.f32 %v4810, %v4708
        %v4812 = vadd.f32 %v4811, %v4710
        %v4813 = vadd.f32 %v4812, %v4713
        %v4814 = vadd.f32 %v4813, %v4715
        %v4815 = vadd.f32 %v4814, %v4718
        %v4816 = vadd.f32 %v4815, %v4720
        %v4817 = vrot.slane %v4816, 4
        %v4818 = vadd.f32 %v4816, %v4817
        %v4819 = vrot.slane %v4818, 2
        %v4820 = vadd.f32 %v4818, %v4819
        %v4821 = vrot.slane %v4820, 1
        %v4822 = vadd.f32 %v4820, %v4821
        %4823 = vst [vmem:[%s246] sm:$0xff] %v4822
        %v4824 = vmul.f32 %v4643, %v4643
        %v4825 = vmul.f32 %v4645, %v4645
        %v4826 = vmul.f32 %v4648, %v4648
        %v4827 = vmul.f32 %v4650, %v4650
        %v4828 = vmul.f32 %v4653, %v4653
        %v4829 = vmul.f32 %v4655, %v4655
        %v4830 = vmul.f32 %v4658, %v4658
        %v4831 = vmul.f32 %v4660, %v4660
        %v4832 = vmul.f32 %v4663, %v4663
        %v4833 = vmul.f32 %v4665, %v4665
        %v4834 = vmul.f32 %v4668, %v4668
        %v4835 = vmul.f32 %v4670, %v4670
        %v4836 = vmul.f32 %v4673, %v4673
        %v4837 = vmul.f32 %v4675, %v4675
        %v4838 = vmul.f32 %v4678, %v4678
        %v4839 = vmul.f32 %v4680, %v4680
        %v4840 = vmul.f32 %v4683, %v4683
        %v4841 = vmul.f32 %v4685, %v4685
        %v4842 = vmul.f32 %v4688, %v4688
        %v4843 = vmul.f32 %v4690, %v4690
        %v4844 = vmul.f32 %v4693, %v4693
        %v4845 = vmul.f32 %v4695, %v4695
        %v4846 = vmul.f32 %v4698, %v4698
        %v4847 = vmul.f32 %v4700, %v4700
        %v4848 = vmul.f32 %v4703, %v4703
        %v4849 = vmul.f32 %v4705, %v4705
        %v4850 = vmul.f32 %v4708, %v4708
        %v4851 = vmul.f32 %v4710, %v4710
        %v4852 = vmul.f32 %v4713, %v4713
        %v4853 = vmul.f32 %v4715, %v4715
        %v4854 = vmul.f32 %v4718, %v4718
        %v4855 = vmul.f32 %v4720, %v4720
        %v4856 = vadd.f32 %v4824, %v4825
        %v4857 = vadd.f32 %v4856, %v4826
        %v4858 = vadd.f32 %v4857, %v4827
        %v4859 = vadd.f32 %v4858, %v4828
        %v4860 = vadd.f32 %v4859, %v4829
        %v4861 = vadd.f32 %v4860, %v4830
        %v4862 = vadd.f32 %v4861, %v4831
        %v4863 = vadd.f32 %v4862, %v4832
        %v4864 = vadd.f32 %v4863, %v4833
        %v4865 = vadd.f32 %v4864, %v4834
        %v4866 = vadd.f32 %v4865, %v4835
        %v4867 = vadd.f32 %v4866, %v4836
        %v4868 = vadd.f32 %v4867, %v4837
        %v4869 = vadd.f32 %v4868, %v4838
        %v4870 = vadd.f32 %v4869, %v4839
        %v4871 = vadd.f32 %v4870, %v4840
        %v4872 = vadd.f32 %v4871, %v4841
        %v4873 = vadd.f32 %v4872, %v4842
        %v4874 = vadd.f32 %v4873, %v4843
        %v4875 = vadd.f32 %v4874, %v4844
        %v4876 = vadd.f32 %v4875, %v4845
        %v4877 = vadd.f32 %v4876, %v4846
        %v4878 = vadd.f32 %v4877, %v4847
        %v4879 = vadd.f32 %v4878, %v4848
        %v4880 = vadd.f32 %v4879, %v4849
        %v4881 = vadd.f32 %v4880, %v4850
        %v4882 = vadd.f32 %v4881, %v4851
        %v4883 = vadd.f32 %v4882, %v4852
        %v4884 = vadd.f32 %v4883, %v4853
        %v4885 = vadd.f32 %v4884, %v4854
        %v4886 = vadd.f32 %v4885, %v4855
        %v4887 = vrot.slane %v4886, 4
        %v4888 = vadd.f32 %v4886, %v4887
        %v4889 = vrot.slane %v4888, 2
        %v4890 = vadd.f32 %v4888, %v4889
        %v4891 = vrot.slane %v4890, 1
        %v4892 = vadd.f32 %v4890, %v4891
        %4893 = vst [vmem:[%s253] sm:$0xff] %v4892
        %s4894 = sand.u32 %s100, 1
        %s4895 = scalar_lea.sflag [#allocation5], %s4894
        %s4896 = sand.u32 %s100, 1
        %s4897 = smul.addr %s4896, 128
        %s4898 = scalar_lea.vmem [#allocation6], %s4897
        %s4899 = sand.u32 %s24, 1
        %s4900 = scalar_lea.sflag [#allocation8], %s4899
        %s4901 = sand.u32 %s126, 1
        %s4902 = smul.addr %s4901, 8
        %s4903 = scalar_lea.vmem [#allocation7], %s4902
        %s4904 = sand.u32 %s24, 1
        %s4905 = scalar_lea.sflag [#allocation8], %s4904
        %s4906 = sand.u32 %s152, 1
        %s4907 = smul.addr %s4906, 8
        %s4908 = scalar_lea.vmem [#allocation9], %s4907
        // Predicated region
        $region37: #{tpu_custom_call.1} parent=31 // pred_check
          %p4909 = pneg %p110
        $region38: #{tpu_custom_call.1} parent=31 // pred_check_branch
          %4911 = sbr.rel (%p4909) target = $region40
        $region39: #{tpu_custom_call.1} parent=31 // pred_region
          %s4912 = smul.u32 32, %s24
          %4914 = vsyncadd %s4895, 0
          %s4915 = smul.addr %s4912, 4
          %s4916 = scalar_lea.hbm %s3, %s4915
          %s4917 = sshll.u32 %s4898, 4
          %s4918 = int_to_ptr.vmem [resolvable:$true] %s4917
          %s4919 = sshll.u32 %s4916, 4
          %s4920 = int_to_ptr.hbm [resolvable:$true] %s4919
          %4925 = dma.vmem_to_hbm [thread:$0]  %s4918, 2048, %s4920, %s4895, 64, 64, 4
        $region40: #{tpu_custom_call.1} parent=31 // pred_fallthru
          _
        // Predicated region
        $region41: #{tpu_custom_call.1} parent=31 // pred_check
          %p4926 = pneg %p136
        $region42: #{tpu_custom_call.1} parent=31 // pred_check_branch
          %4928 = sbr.rel (%p4926) target = $region44
        $region43: #{tpu_custom_call.1} parent=31 // pred_region
          %4930 = vsyncadd %s4900, 0
          %s4931 = smul.addr %s24, 8
          %s4932 = scalar_lea.hbm %s4, %s4931
          %s4934 = sshll.u32 %s4903, 4
          %s4935 = int_to_ptr.vmem [resolvable:$true] %s4934
          %s4936 = sshll.u32 %s4932, 4
          %s4937 = int_to_ptr.hbm [resolvable:$true] %s4936
          %4939 = dma.vmem_to_hbm [thread:$0]  %s4935, 128, %s4937, %s4900
        $region44: #{tpu_custom_call.1} parent=31 // pred_fallthru
          _
        // Predicated region
        $region45: #{tpu_custom_call.1} parent=31 // pred_check
          %p4940 = pneg %p162
        $region46: #{tpu_custom_call.1} parent=31 // pred_check_branch
          %4942 = sbr.rel (%p4940) target = $region48
        $region47: #{tpu_custom_call.1} parent=31 // pred_region
          %4944 = vsyncadd %s4905, 0
          %s4945 = smul.addr %s24, 8
          %s4946 = scalar_lea.hbm %s5, %s4945
          %s4948 = sshll.u32 %s4908, 4
          %s4949 = int_to_ptr.vmem [resolvable:$true] %s4948
          %s4950 = sshll.u32 %s4946, 4
          %s4951 = int_to_ptr.hbm [resolvable:$true] %s4950
          %4953 = dma.vmem_to_hbm [thread:$0]  %s4949, 128, %s4951, %s4905
        $region48: #{tpu_custom_call.1} parent=31 // pred_fallthru
          _
      $region32: #{tpu_custom_call.1} parent=5 // pred_fallthru
        _
      %p4954 = scmp.le.s32.totalorder 2, %s19
      // Predicated region
      $region49: #{tpu_custom_call.1} parent=5 // pred_check
        %p4955 = pneg %p4954
      $region50: #{tpu_custom_call.1} parent=5 // pred_check_branch
        %4957 = sbr.rel (%p4955) target = $region52
      $region51: #{tpu_custom_call.1} parent=5 // pred_region
        %s4958 = ssub.s32 %s19, 2
        // Predicated region
        $region53: #{tpu_custom_call.1} parent=51 // pred_check
          %p4959 = pneg %p116
        $region54: #{tpu_custom_call.1} parent=51 // pred_check_branch
          %4961 = sbr.rel (%p4959) target = $region56
        $region55: #{tpu_custom_call.1} parent=51 // pred_region
          %s4962 = sand.u32 %s101, 1
          %s4963 = scalar_lea.sflag [#allocation5], %s4962
          %s4964 = sand.u32 %s101, 1
          %s4965 = smul.addr %s4964, 128
          %s4966 = scalar_lea.vmem [#allocation6], %s4965
          %4968 = dma.done %s4963, 2048
        $region56: #{tpu_custom_call.1} parent=51 // pred_fallthru
          _
        // Predicated region
        $region57: #{tpu_custom_call.1} parent=51 // pred_check
          %p4969 = pneg %p142
        $region58: #{tpu_custom_call.1} parent=51 // pred_check_branch
          %4971 = sbr.rel (%p4969) target = $region60
        $region59: #{tpu_custom_call.1} parent=51 // pred_region
          %s4972 = sand.u32 %s25, 1
          %s4973 = scalar_lea.sflag [#allocation8], %s4972
          %s4974 = sand.u32 %s127, 1
          %s4975 = smul.addr %s4974, 8
          %s4976 = scalar_lea.vmem [#allocation7], %s4975
          %4978 = dma.done %s4973, 128
        $region60: #{tpu_custom_call.1} parent=51 // pred_fallthru
          _
        // Predicated region
        $region61: #{tpu_custom_call.1} parent=51 // pred_check
          %p4979 = pneg %p168
        $region62: #{tpu_custom_call.1} parent=51 // pred_check_branch
          %4981 = sbr.rel (%p4979) target = $region64
        $region63: #{tpu_custom_call.1} parent=51 // pred_region
          %s4982 = sand.u32 %s25, 1
          %s4983 = scalar_lea.sflag [#allocation8], %s4982
          %s4984 = sand.u32 %s153, 1
          %s4985 = smul.addr %s4984, 8
          %s4986 = scalar_lea.vmem [#allocation9], %s4985
          %4988 = dma.done %s4983, 128
        $region64: #{tpu_custom_call.1} parent=51 // pred_fallthru
          _
      $region52: #{tpu_custom_call.1} parent=5 // pred_fallthru
        _
    $region6: #{tpu_custom_call.1} parent=1 // loop_footer
      %s23 = sadd.s32 1, %s19
    $region7: #{tpu_custom_call.1} parent=1 // loop_footer_branch
      %18 = sbr.rel target = $region3
    $region8: #{tpu_custom_call.1} parent=1 // loop_exit
      _
    %4989 = vsyncpa [#allocation4], 1
    %s4990 = scalar_lea.sflag [#allocation4], 1
    %4991 = vsyncpa %s4990, 1
    %4992 = vsyncpa [#allocation5], 1
    %s4993 = scalar_lea.sflag [#allocation5], 1
    %4994 = vsyncpa %s4993, 1
    %4995 = vsyncpa [#allocation8], 1
    %s4996 = scalar_lea.sflag [#allocation8], 1
    %4997 = vsyncpa %s4996, 1

</llo_original>
